<compile_context>
chip_gen: v7x
topology: tpu7x:2x2x1
jax: 0.10.0
libtpu: 0.0.40
codegen_flags: <defaults>
</compile_context>

<pallas_src>
import functools

import jax
import jax.numpy as jnp
from jax.experimental import pallas as pl
from jax.experimental.pallas import tpu as pltpu

NUM_CLASSES = 1000
GROUPS = 64


def _vmem_limit_bytes():
    """Generation-aware scoped-VMEM budget (v5e/v6e -> ~96 MiB, v7x -> ~48 MiB)."""
    try:
        info = pltpu.get_tpu_info()
        cap = int(getattr(info, "vmem_capacity_bytes", 0) or 0)
        if cap > 0:
            return int(max(min(cap * 3 // 4, 100 * 1024 * 1024),
                           32 * 1024 * 1024))
    except Exception:
        pass
    return 48 * 1024 * 1024


VMEM_LIMIT = _vmem_limit_bytes()


# ----------------------------------------------------------------------------
# Tiling helpers
# ----------------------------------------------------------------------------
def _pick_m_tile(m, max_tile=1024):
    """Row tile for the M axis: full extent when small, else the largest
    divisor <= max_tile that is a multiple of 8, else zero-pad M to x256."""
    if m <= max_tile:
        return m, m
    start = max_tile - (max_tile % 8)
    for t in range(start, 7, -8):
        if m % t == 0:
            return t, m
    t = 256
    return t, ((m + t - 1) // t) * t


def _largest_divisor(total, cap, multiple):
    """Largest divisor of `total` <= cap and a multiple of `multiple`;
    falls back to the full extent if none exists."""
    if total <= cap:
        return total
    t = cap - (cap % multiple)
    while t >= multiple:
        if total % t == 0:
            return t
        t -= multiple
    return total


# ----------------------------------------------------------------------------
# Pallas kernels
# ----------------------------------------------------------------------------
def _matmul_bn_kernel(a_ref, b_ref, s_ref, *rest, relu, has_res):
    """(tm, tk) @ (tk, tn) with K-grid accumulation; epilogue adds the folded
    BN shift, optional residual and optional ReLU; stores bf16."""
    if has_res:
        r_ref, o_ref, acc_ref = rest
    else:
        o_ref, acc_ref = rest
    k = pl.program_id(2)

    @pl.when(k == 0)
    def _init():
        acc_ref[...] = jnp.zeros_like(acc_ref)

    acc_ref[...] += jnp.dot(a_ref[...], b_ref[...],
                            preferred_element_type=jnp.float32)

    @pl.when(k == pl.num_programs(2) - 1)
    def _finalize():
        out = acc_ref[...] + s_ref[...]
        if has_res:
            out = out + r_ref[...].astype(jnp.float32)
        if relu:
            out = jnp.maximum(out, 0.0)
        o_ref[...] = out.astype(o_ref.dtype)


def _gconv3x3_kernel(x_ref, w_ref, s_ref, o_ref, *, tr, wo, relu):
    """Grouped 3x3 conv (stride 1, pad 1) on one 128-channel slab.

    x_ref : (1, Hp, Wp, 128) padded input slab, resident across row tiles.
    w_ref : (1, 9*128, 128)  block-diagonal slab weight, rows = (tap, cin).
    s_ref : (1, 128)         folded BN shift for this slab.
    o_ref : (1, tr*wo, 128)  lane-dense flattened output rows.
    """
    r = pl.program_id(2)
    row0 = r * tr
    acc = jnp.zeros((tr * wo, 128), jnp.float32)
    for kh in range(3):
        for kw in range(3):
            xs = x_ref[0, pl.ds(row0 + kh, tr), pl.ds(kw, wo), :]
            xs = xs.reshape(tr * wo, 128)
            t = kh * 3 + kw
            acc = acc + jnp.dot(xs, w_ref[0, t * 128:(t + 1) * 128, :],
                                preferred_element_type=jnp.float32)
    out = acc + s_ref[...]
    if relu:
        out = jnp.maximum(out, 0.0)
    o_ref[0] = out.astype(o_ref.dtype)


def _head_kernel(x_ref, w_ref, b_ref, o_ref):
    pooled = jnp.mean(x_ref[...].astype(jnp.float32), axis=1)   # 7x7 avg pool
    o_ref[...] = jnp.dot(pooled.astype(jnp.bfloat16), w_ref[...],
                         preferred_element_type=jnp.float32) + b_ref[...]


# ----------------------------------------------------------------------------
# Wrappers (pallas_call glue)
# ----------------------------------------------------------------------------
def matmul_bn(a, b, shift, *, residual=None, relu=True,
              max_tm=1024, max_tn=512, max_tk=1024):
    """(M, K) @ (K, Cout) + shift [+ residual] [+ ReLU], bf16 in / bf16 out."""
    m, kdim = a.shape
    cout = b.shape[1]
    tm, mp = _pick_m_tile(m, max_tm)
    if mp != m:
        a = jnp.pad(a, ((0, mp - m), (0, 0)))
        if residual is not None:
            residual = jnp.pad(residual, ((0, mp - m), (0, 0)))
    tn = _largest_divisor(cout, max_tn, 128)
    tk = _largest_divisor(kdim, max_tk, 128)
    has_res = residual is not None
    grid = (mp // tm, cout // tn, kdim // tk)

    in_specs = [
        pl.BlockSpec((tm, tk), lambda i, j, k: (i, k)),
        pl.BlockSpec((tk, tn), lambda i, j, k: (k, j)),
        pl.BlockSpec((1, tn), lambda i, j, k: (0, j)),
    ]
    inputs = [a, b, shift.reshape(1, cout)]
    if has_res:
        in_specs.append(pl.BlockSpec((tm, tn), lambda i, j, k: (i, j)))
        inputs.append(residual)

    out = pl.pallas_call(
        functools.partial(_matmul_bn_kernel, relu=relu, has_res=has_res),
        out_shape=jax.ShapeDtypeStruct((mp, cout), jnp.bfloat16),
        grid=grid,
        in_specs=in_specs,
        out_specs=pl.BlockSpec((tm, tn), lambda i, j, k: (i, j)),
        scratch_shapes=[pltpu.VMEM((tm, tn), jnp.float32)],
        compiler_params=pltpu.CompilerParams(
            dimension_semantics=("parallel", "parallel", "arbitrary"),
            vmem_limit_bytes=VMEM_LIMIT),
    )(*inputs)
    if mp != m:
        out = out[:m]
    return out


@functools.partial(jax.jit, static_argnames=("stride", "relu"))
def conv1x1_bn(x, w_t, shift, residual=None, *, stride=1, relu=True):
    """1x1 conv (no bias) + folded BN [+ residual] [+ ReLU]; NHWC bf16."""
    if stride > 1:
        x = x[:, ::stride, ::stride, :]
    n, h, w_, c = x.shape
    a = x.reshape(n * h * w_, c)
    r = None if residual is None else residual.reshape(n * h * w_, -1)
    out = matmul_bn(a, w_t, shift, residual=r, relu=relu)
    return out.reshape(n, h, w_, -1)


@jax.jit
def stem_conv_bn(x, w_t, shift):
    """7x7 stride-2 pad-3 conv + folded BN + ReLU (im2col + dense matmul).
    Output channels are padded to 128 at pack time for lane-dense stores."""
    n, h, w_, c = x.shape
    xp = jnp.pad(x, ((0, 0), (3, 3), (3, 3), (0, 0)))
    ho = (h + 6 - 7) // 2 + 1
    wo = (w_ + 6 - 7) // 2 + 1
    parts = []
    for kh in range(7):
        for kw in range(7):
            parts.append(xp[:, kh:kh + 2 * (ho - 1) + 1:2,
                             kw:kw + 2 * (wo - 1) + 1:2, :])
    pt = jnp.stack(parts, axis=3)                   # (N, Ho, Wo, 49, C)
    a = pt.reshape(n * ho * wo, 49 * c)
    out = matmul_bn(a, w_t, shift, relu=True, max_tm=2048)
    return out.reshape(n, ho, wo, -1)


@functools.partial(jax.jit, static_argnames=("stride", "relu"))
def grouped_conv3x3_bn(x, w_slab, shift, *, stride=1, relu=True):
    """Grouped 3x3 conv (pad 1) + folded BN [+ ReLU], 64 groups.

    Runs the stride-1 slab kernel (in-kernel halo taps, no HBM im2col); the
    stride-2 case is computed at stride 1 and subsampled (exact).
    """
    n, h, w_, c = x.shape
    nslab = c // 128
    xp = jnp.pad(x, ((0, 0), (1, 1), (1, 1), (0, 0)))
    hp, wp = h + 2, w_ + 2
    ho, wo = h, w_                                   # stride-1 output size
    # Row tile: largest divisor of Ho with tr*Wo <= 1024 rows per grid step.
    tr = ho
    for cand in range(ho, 0, -1):
        if ho % cand == 0 and cand * wo <= 1024:
            tr = cand
            break
    grid = (nslab, n, ho // tr)
    out = pl.pallas_call(
        functools.partial(_gconv3x3_kernel, tr=tr, wo=wo, relu=relu),
        out_shape=jax.ShapeDtypeStruct((n, ho * wo, c), jnp.bfloat16),
        grid=grid,
        in_specs=[
            pl.BlockSpec((1, hp, wp, 128), lambda s, b, r: (b, 0, 0, s)),
            pl.BlockSpec((1, 9 * 128, 128), lambda s, b, r: (s, 0, 0)),
            pl.BlockSpec((1, 128), lambda s, b, r: (0, s)),
        ],
        out_specs=pl.BlockSpec((1, tr * wo, 128), lambda s, b, r: (b, r, s)),
        compiler_params=pltpu.CompilerParams(
            dimension_semantics=("parallel", "parallel", "arbitrary"),
            vmem_limit_bytes=VMEM_LIMIT),
    )(xp, w_slab, shift.reshape(1, c))
    out = out.reshape(n, ho, wo, c)
    if stride > 1:
        # TODO(synk): strided in-kernel tap loads would avoid computing the
        #             full stride-1 output for the 3 stride-2 layers.
        out = out[:, ::stride, ::stride, :]
    return out


@jax.jit
def maxpool_3x3_s2(x):
    """MaxPool2d(kernel=3, stride=2, padding=1) as a fused jnp.maximum tree."""
    n, h, w_, c = x.shape
    ho = (h + 2 - 3) // 2 + 1
    wo = (w_ + 2 - 3) // 2 + 1
    xp = jnp.pad(x, ((0, 0), (1, 1), (1, 1), (0, 0)),
                 constant_values=-jnp.inf)
    out = None
    for kh in range(3):
        for kw in range(3):
            s = xp[:, kh:kh + 2 * (ho - 1) + 1:2, kw:kw + 2 * (wo - 1) + 1:2, :]
            out = s if out is None else jnp.maximum(out, s)
    return out


@jax.jit
def head(x, fc_w_t, fc_b):
    """AvgPool2d((7,7),(1,1)) + flatten + Linear(2048, num_classes_padded)."""
    n, h, w_, c = x.shape
    xr = x.reshape(n, h * w_, c)
    ncp = fc_w_t.shape[1]
    return pl.pallas_call(
        _head_kernel,
        out_shape=jax.ShapeDtypeStruct((n, ncp), jnp.float32),
        grid=(1,),
        in_specs=[pl.BlockSpec((n, h * w_, c), lambda i: (0, 0, 0)),
                  pl.BlockSpec((c, ncp), lambda i: (0, 0)),
                  pl.BlockSpec((1, ncp), lambda i: (0, 0))],
        out_specs=pl.BlockSpec((n, ncp), lambda i: (0, 0)),
        compiler_params=pltpu.CompilerParams(
            dimension_semantics=("arbitrary",),
            vmem_limit_bytes=VMEM_LIMIT),
    )(xr, fc_w_t, fc_b.reshape(1, ncp))


# ----------------------------------------------------------------------------
# ResNeXt-101 64x4d model
# ----------------------------------------------------------------------------
def _bottleneck(x, p, stride):
    if 'wd' in p:
        sc = conv1x1_bn(x, p['wd'], p['bd'], stride=stride, relu=False)
    else:
        sc = x
    out = conv1x1_bn(x, p['w1'], p['b1'], relu=True)
    out = grouped_conv3x3_bn(out, p['w2'], p['b2'], stride=stride, relu=True)
    # residual add + final ReLU fused into the w3 epilogue
    out = conv1x1_bn(out, p['w3'], p['b3'], residual=sc, relu=True)
    return out


def resnext101_64x4d_forward(x_nchw, pp):
    x = jnp.transpose(x_nchw, (0, 2, 3, 1)).astype(jnp.bfloat16)   # NCHW->NHWC
    x = stem_conv_bn(x, pp['stem_w'], pp['stem_shift'])
    x = maxpool_3x3_s2(x)
    for stage in pp['stages']:
        for bi, blk in enumerate(stage['blocks']):
            stride = stage['stride'] if bi == 0 else 1
            x = _bottleneck(x, blk, stride)
    logits = head(x, pp['fc_w'], pp['fc_b'])
    return logits[:, :NUM_CLASSES]


# ----------------------------------------------------------------------------
# Deterministic parameter construction + kernel-ready packing
# ----------------------------------------------------------------------------
class _ParamGen:
    def __init__(self, key):
        self._key = key

    def _next(self):
        self._key, sub = jax.random.split(self._key)
        return sub

    def normal(self, shape, std):
        return (std * jax.random.normal(self._next(), shape)).astype(jnp.float32)

    def conv(self, shape):
        fan_in = shape[1] * shape[2] * shape[3]
        return self.normal(shape, 1.0 / (fan_in ** 0.5))

    def bn(self, c):
        gamma = 1.0 + 0.1 * jax.random.normal(self._next(), (c,))
        beta = 0.1 * jax.random.normal(self._next(), (c,))
        mean = 0.1 * jax.random.normal(self._next(), (c,))
        var = 1.0 + 0.1 * jax.random.uniform(self._next(), (c,))
        scale = gamma * jax.lax.rsqrt(var + 1e-5)
        shift = beta - mean * scale
        return (scale.astype(jnp.float32), shift.astype(jnp.float32))


def build_params(key, num_classes=NUM_CLASSES):
    """Raw params in PyTorch layout: conv [Cout, Cin/g, kh, kw]; eval-mode BN
    already folded into per-channel (scale, shift)."""
    pg = _ParamGen(key)
    params = {'stem_w': pg.conv((64, 3, 7, 7)), 'stem_bn': pg.bn(64)}
    # (num_blocks, in_ch, grouped width, out_ch, first stride)
    cfg = [(3, 64, 256, 256, 1),
           (4, 256, 512, 512, 2),
           (23, 512, 1024, 1024, 2),
           (3, 1024, 2048, 2048, 2)]
    stages = []
    for nblocks, cin, width, cout, stride in cfg:
        blocks = []
        in_c = cin
        for bi in range(nblocks):
            blk = {
                'w1': pg.conv((width, in_c, 1, 1)), 'bn1': pg.bn(width),
                'w2': pg.conv((width, width // GROUPS, 3, 3)), 'bn2': pg.bn(width),
                'w3': pg.conv((cout, width, 1, 1)), 'bn3': pg.bn(cout),
            }
            if bi == 0:
                blk['wd'] = pg.conv((cout, in_c, 1, 1))
                blk['bnd'] = pg.bn(cout)
            blocks.append(blk)
            in_c = cout
        stages.append({'blocks': blocks, 'first_stride': stride})
    params['stages'] = stages
    params['fc_w'] = pg.normal((num_classes, 2048), 1.0 / (2048 ** 0.5))
    params['fc_b'] = pg.normal((num_classes,), 0.01)
    return params


def pack_params(raw, num_classes=NUM_CLASSES):
    """Fold BN scale into weights, cast to bf16, and pre-lay-out for kernels."""

    def fold_dense(w, bn, pad_cout_to=None, pad_cin_to=None):
        scale, shift = bn
        cout, cin = w.shape[0], w.shape[1]
        kk = w.shape[2] * w.shape[3]
        wt = jnp.transpose(w, (2, 3, 1, 0)).reshape(kk * cin, cout) * scale[None, :]
        if pad_cin_to is not None and pad_cin_to > cin:
            # only used on 1x1 convs (kk == 1): zero rows for zero-padded inputs
            wt = jnp.pad(wt, ((0, pad_cin_to - cin), (0, 0)))
        if pad_cout_to is not None and pad_cout_to > cout:
            wt = jnp.pad(wt, ((0, 0), (0, pad_cout_to - cout)))
            shift = jnp.pad(shift, (0, pad_cout_to - cout))
        return wt.astype(jnp.bfloat16), shift.astype(jnp.float32)

    def fold_grouped(w, bn, groups):
        """Pack grouped 3x3 weights as per-128-channel-slab block-diagonal
        matrices of shape (nslab, 9*128, 128), rows = (tap, local cin)."""
        scale, shift = bn
        cout, cg = w.shape[0], w.shape[1]
        og = cout // groups
        wg = w.reshape(groups, og, cg, 9) * scale.reshape(groups, og, 1, 1)
        gps = 128 // og                              # groups per slab
        nslab = groups // gps
        wg = wg.reshape(nslab, gps, og, cg, 9)
        eye = jnp.eye(gps, dtype=wg.dtype)
        # [s, t, gi, ci, go, oi] = wg[s, go, oi, ci, t] * (gi == go)
        wbd = jnp.einsum('sgoct,gh->sthcgo', wg, eye)
        wbd = wbd.reshape(nslab, 9 * 128, 128)
        return wbd.astype(jnp.bfloat16), shift.astype(jnp.float32)

    packed = {}
    # stem: pad Cout 64 -> 128 so the largest-M matmul stores 128-lane tiles
    packed['stem_w'], packed['stem_shift'] = fold_dense(
        raw['stem_w'], raw['stem_bn'], pad_cout_to=128)
    stages = []
    for si, st in enumerate(raw['stages']):
        blocks = []
        for bi, blk in enumerate(st['blocks']):
            pad_cin = 128 if (si == 0 and bi == 0) else None
            b = {}
            b['w1'], b['b1'] = fold_dense(blk['w1'], blk['bn1'], pad_cin_to=pad_cin)
            b['w2'], b['b2'] = fold_grouped(blk['w2'], blk['bn2'], GROUPS)
            b['w3'], b['b3'] = fold_dense(blk['w3'], blk['bn3'])
            if 'wd' in blk:
                b['wd'], b['bd'] = fold_dense(blk['wd'], blk['bnd'],
                                              pad_cin_to=pad_cin)
            blocks.append(b)
        stages.append({'blocks': blocks, 'stride': st['first_stride']})
    packed['stages'] = stages
    # FC: pad 1000 -> 1024 output columns for a lane-dense head store
    ncp = ((num_classes + 127) // 128) * 128
    fc_w_t = jnp.transpose(raw['fc_w'], (1, 0))
    packed['fc_w'] = jnp.pad(fc_w_t, ((0, 0), (0, ncp - num_classes))
                             ).astype(jnp.bfloat16)
    packed['fc_b'] = jnp.pad(raw['fc_b'], (0, ncp - num_classes)
                             ).astype(jnp.float32)
    return packed


# ----------------------------------------------------------------------------
if __name__ == "__main__":
    key = jax.random.PRNGKey(0)
    pkey, xkey = jax.random.split(key)
    raw_params = build_params(pkey)
    params = pack_params(raw_params)
    # 224x224 input is implied by AvgPool2d((7,7)) + Linear(2048, num_classes).
    x = jax.random.normal(xkey, (2, 3, 224, 224), dtype=jnp.float32)
    logits = resnext101_64x4d_forward(x, params)
    logits = jax.block_until_ready(logits)
    assert logits.shape == (2, NUM_CLASSES), logits.shape
    assert bool(jnp.all(jnp.isfinite(logits)))
    print("KERNEL_OK")
</pallas_src>

<mosaic_0001>
module attributes {stable_mosaic.version = 11 : i64} {
  func.func @_matmul_bn_kernel(%arg0: i32, %arg1: i32, %arg2: i32, %arg3: memref<1792x147xbf16, #tpu.memory_space<vmem>>, %arg4: memref<147x128xbf16, #tpu.memory_space<vmem>>, %arg5: memref<1x128xf32, #tpu.memory_space<vmem>>, %arg6: memref<1792x128xbf16, #tpu.memory_space<vmem>>, %arg7: memref<1792x128xf32, #tpu.memory_space<vmem>>) attributes {dimension_semantics = [#tpu.dimension_semantics<parallel>, #tpu.dimension_semantics<parallel>, #tpu.dimension_semantics<arbitrary>], iteration_bounds = array<i64: 14, 1, 1>, scalar_prefetch = 0 : i64, scratch_operands = 1 : i64, tpu.core_type = #tpu.core_type<tc>, window_params = [{transform_indices = @transform_0, window_bounds = array<i64: 1792, 147>}, {transform_indices = @transform_1, window_bounds = array<i64: 147, 128>}, {transform_indices = @transform_2, window_bounds = array<i64: 1, 128>}, {transform_indices = @transform_3, window_bounds = array<i64: 1792, 128>}]} {
    %c0_i32 = arith.constant 0 : i32
    %0 = arith.cmpi eq, %arg2, %c0_i32 : i32
    %1 = arith.extui %0 : i1 to i32
    %c0_i32_0 = arith.constant 0 : i32
    %2 = arith.cmpi ne, %1, %c0_i32_0 : i32
    scf.if %2 {
      %cst_10 = arith.constant 0.000000e+00 : f32
      %12 = vector.broadcast %cst_10 : f32 to vector<1792x128xf32>
      %c0_11 = arith.constant 0 : index
      %c0_12 = arith.constant 0 : index
      %13 = vector.load %arg7[%c0_11, %c0_12] : memref<1792x128xf32, #tpu.memory_space<vmem>>, vector<1792x128xf32>
      tpu.vector_store %arg7[%c0_11, %c0_12], %12 {strides = array<i32>} : memref<1792x128xf32, #tpu.memory_space<vmem>>, vector<1792x128xf32>,
    } else {
    }
    %c0 = arith.constant 0 : index
    %c0_1 = arith.constant 0 : index
    %3 = vector.load %arg7[%c0, %c0_1] : memref<1792x128xf32, #tpu.memory_space<vmem>>, vector<1792x128xf32>
    %c0_2 = arith.constant 0 : index
    %c0_3 = arith.constant 0 : index
    %4 = vector.load %arg3[%c0_2, %c0_3] : memref<1792x147xbf16, #tpu.memory_space<vmem>>, vector<1792x147xbf16>
    %c0_4 = arith.constant 0 : index
    %c0_5 = arith.constant 0 : index
    %5 = vector.load %arg4[%c0_4, %c0_5] : memref<147x128xbf16, #tpu.memory_space<vmem>>, vector<147x128xbf16>
    %cst = arith.constant dense<0.000000e+00> : vector<1792x128xf32>
    %6 = tpu.matmul %4, %5, %cst {dimension_numbers = #tpu.dot_dimension_numbers<[1], [0], [0], [1], [0, 0, 1, 1], [], []>} : vector<1792x147xbf16>, vector<147x128xbf16>, vector<1792x128xf32> -> vector<1792x128xf32>
    %7 = arith.addf %3, %6 : vector<1792x128xf32>
    %c0_6 = arith.constant 0 : index
    %c0_7 = arith.constant 0 : index
    %8 = vector.load %arg7[%c0_6, %c0_7] : memref<1792x128xf32, #tpu.memory_space<vmem>>, vector<1792x128xf32>
    tpu.vector_store %arg7[%c0_6, %c0_7], %7 {strides = array<i32>} : memref<1792x128xf32, #tpu.memory_space<vmem>>, vector<1792x128xf32>,
    %c0_i32_8 = arith.constant 0 : i32
    %9 = arith.cmpi eq, %arg2, %c0_i32_8 : i32
    %10 = arith.extui %9 : i1 to i32
    %c0_i32_9 = arith.constant 0 : i32
    %11 = arith.cmpi ne, %10, %c0_i32_9 : i32
    scf.if %11 {
      %c0_10 = arith.constant 0 : index
      %c0_11 = arith.constant 0 : index
      %12 = vector.load %arg7[%c0_10, %c0_11] : memref<1792x128xf32, #tpu.memory_space<vmem>>, vector<1792x128xf32>
      %c0_12 = arith.constant 0 : index
      %c0_13 = arith.constant 0 : index
      %13 = vector.load %arg5[%c0_12, %c0_13] : memref<1x128xf32, #tpu.memory_space<vmem>>, vector<1x128xf32>
      %14 = vector.broadcast %13 : vector<1x128xf32> to vector<1792x128xf32>
      %15 = arith.addf %12, %14 : vector<1792x128xf32>
      %cst_14 = arith.constant 0.000000e+00 : f32
      %16 = vector.broadcast %cst_14 : f32 to vector<1792x128xf32>
      %17 = arith.maximumf %15, %16 : vector<1792x128xf32>
      %18 = arith.truncf %17 : vector<1792x128xf32> to vector<1792x128xbf16>
      %c0_15 = arith.constant 0 : index
      %c0_16 = arith.constant 0 : index
      %19 = vector.load %arg6[%c0_15, %c0_16] : memref<1792x128xbf16, #tpu.memory_space<vmem>>, vector<1792x128xbf16>
      tpu.vector_store %arg6[%c0_15, %c0_16], %18 {strides = array<i32>} : memref<1792x128xbf16, #tpu.memory_space<vmem>>, vector<1792x128xbf16>,
    } else {
    }
    return
  }
  func.func @transform_0(%arg0: i32, %arg1: i32, %arg2: i32) -> (i32, i32) {
    %c0_i32 = arith.constant 0 : i32
    return %arg0, %arg2 : i32, i32
  }
  func.func @transform_1(%arg0: i32, %arg1: i32, %arg2: i32) -> (i32, i32) {
    %c0_i32 = arith.constant 0 : i32
    return %arg2, %arg1 : i32, i32
  }
  func.func @transform_2(%arg0: i32, %arg1: i32, %arg2: i32) -> (i32, i32) {
    %c0_i32 = arith.constant 0 : i32
    %c0_i32_0 = arith.constant 0 : i32
    return %c0_i32, %arg1 : i32, i32
  }
  func.func @transform_3(%arg0: i32, %arg1: i32, %arg2: i32) -> (i32, i32) {
    %c0_i32 = arith.constant 0 : i32
    return %arg0, %arg1 : i32, i32
  }
}

</mosaic_0001>

<llo_original>
// kernel: stem_conv_bn.1
$region0: #{stem_conv_bn.1}
  #allocation0 [shape = 'u32[]', space=smem, size = 0x4, offset = 0x4, fixed_abs, tag = 'smem constant byte address 0x4 - core index']
  #allocation1 [shape = 'u32[144,128]{1,0:T(1,128)}', space=vmem, size = 0x12000, scoped, tag = 'internal scratch']
  #allocation2 [shape = 'f32[1792,128]{1,0:T(8,128)}', space=vmem, size = 0xe0000, scoped, tag = 'scratch operand']
  %s0 = inlined_call_operand.vmem [shape: bf16[25088,147], index: 0, kind: input, shape index: {}]
  %s1 = inlined_call_operand.vmem [shape: bf16[147,128], index: 1, kind: input, shape index: {}]
  %s2 = inlined_call_operand.vmem [shape: f32[1,128], index: 2, kind: input, shape index: {}]
  %s3 = inlined_call_operand.hbm [shape: bf16[25088,128], index: 3, kind: output, shape index: {}]
  %s4 = sld [smem:[#allocation0]]
  $region53: #{stem_conv_bn.1} parent=0
    _
  %s6 = ssub.s32 1, %s4
  %s7 = scalar_select 0, %s6, %s4
  $region1: #{stem_conv_bn.1} parent=0
    #allocation3 [shape = 'u8[917504]{0}', space=vmem, size = 0xe0000, scoped, tag = 'output window, operand 0']
    #allocation4 [shape = 's32[2]{0}', space=sflag, size = 0x8, scoped, tag = 'scoped memory for stem_conv_bn.1']
    %8 = vsyncpa [#allocation4], 0
    %s9 = scalar_lea.sflag [#allocation4], 1
    %10 = vsyncpa %s9, 0
    loop: start=0, step=1, limit=16
    $region2: #{stem_conv_bn.1} parent=1 // loop_pre_header
      _
    $region3: #{stem_conv_bn.1} parent=1 // loop_header
      %s12 = sphi 0, %s16
      %p13 = scmp.ge.s32.totalorder %s12, 16
      %s19 = sphi 0, %s38
      %s20 = sphi 0, %s34
      %s21 = sphi 0, %s30
      %s22 = sphi 0, %s19
      %s23 = sphi 0, %s20
      %s24 = sphi 0, %s21
      %s25 = sphi 0, %s22
      %s26 = sphi 0, %s23
      %s27 = sphi 0, %s24
      %s43 = sphi 0, %s45
      %s46 = sphi 0, %s43
      %s47 = sphi 0, %s46
      %s63 = sphi 0, %s47
      %s71 = sphi 0, %s73
      %s74 = sphi 0, %s71
      %s75 = sphi 0, %s74
      %s91 = sphi 0, %s75
      %s97 = sphi 0, %s99
      %s100 = sphi 0, %s97
      %s101 = sphi 0, %s100
      %s117 = sphi 0, %s101
      %s125 = sphi 0, %s127
      %s128 = sphi 0, %s125
      %s129 = sphi 0, %s128
      %s145 = sphi 0, %s129
    $region4: #{stem_conv_bn.1} parent=1 // loop_header_branch
      %15 = sbr.rel (%p13) target = $region8
    $region5: #{stem_conv_bn.1} parent=1 // loop_body
      %s17 = ssub.s32 %s12, 1
      %s18 = ssub.s32 %s12, 2
      %s28 = sadd.s32 1, %s21
      %p29 = scmp.ge.s32.totalorder %s28, 1
      %s30 = scalar_select %p29, 0, %s28
      %s31 = sadd.s32 1, %s20
      %s32 = scalar_select %p29, %s31, %s20
      %p33 = scmp.ge.s32.totalorder %s32, 1
      %s34 = scalar_select %p33, 0, %s32
      %s35 = sadd.s32 1, %s19
      %s36 = scalar_select %p33, %s35, %s19
      %p37 = scmp.ge.s32.totalorder %s36, 14
      %s38 = scalar_select %p37, 0, %s36
      %s39 = ssub.s32 %s19, %s38
      %s40 = ssub.s32 %s21, %s30
      %s41 = sor.u32 %s39, %s40
      %p42 = scmp.eq.s32.totalorder %s41, 0
      %s44 = sadd.s32 %s43, 1
      %s45 = scalar_select %p42, %s43, %s44
      %p48 = pneg %p42
      %p49 = scmp.eq.s32.totalorder %s12, 13
      %p50 = por %p48, %p49
      %p51 = scmp.ne.s32.totalorder %s43, %s46
      %p52 = scmp.eq.s32.totalorder %s12, 0
      %p53 = por %p51, %p52
      %p54 = scmp.ne.s32.totalorder %s43, %s46
      %p55 = scmp.eq.s32.totalorder %s17, 13
      %p56 = por %p54, %p55
      %p57 = scmp.ne.s32.totalorder %s46, %s47
      %p58 = scmp.eq.s32.totalorder %s17, 0
      %p59 = por %p57, %p58
      %p60 = scmp.ne.s32.totalorder %s46, %s47
      %p61 = scmp.eq.s32.totalorder %s18, 13
      %p62 = por %p60, %p61
      %p64 = scmp.ne.s32.totalorder %s47, %s63
      %p65 = scmp.eq.s32.totalorder %s18, 0
      %p66 = por %p64, %p65
      %s67 = ssub.s32 %s21, %s30
      %s68 = ssub.s32 %s20, %s34
      %s69 = sor.u32 %s67, %s68
      %p70 = scmp.eq.s32.totalorder %s69, 0
      %s72 = sadd.s32 %s71, 1
      %s73 = scalar_select %p70, %s71, %s72
      %p76 = pneg %p70
      %p77 = scmp.eq.s32.totalorder %s12, 13
      %p78 = por %p76, %p77
      %p79 = scmp.ne.s32.totalorder %s71, %s74
      %p80 = scmp.eq.s32.totalorder %s12, 0
      %p81 = por %p79, %p80
      %p82 = scmp.ne.s32.totalorder %s71, %s74
      %p83 = scmp.eq.s32.totalorder %s17, 13
      %p84 = por %p82, %p83
      %p85 = scmp.ne.s32.totalorder %s74, %s75
      %p86 = scmp.eq.s32.totalorder %s17, 0
      %p87 = por %p85, %p86
      %p88 = scmp.ne.s32.totalorder %s74, %s75
      %p89 = scmp.eq.s32.totalorder %s18, 13
      %p90 = por %p88, %p89
      %p92 = scmp.ne.s32.totalorder %s75, %s91
      %p93 = scmp.eq.s32.totalorder %s18, 0
      %p94 = por %p92, %p93
      %s95 = ssub.s32 %s20, %s34
      %p96 = scmp.eq.s32.totalorder %s95, 0
      %s98 = sadd.s32 %s97, 1
      %s99 = scalar_select %p96, %s97, %s98
      %p102 = pneg %p96
      %p103 = scmp.eq.s32.totalorder %s12, 13
      %p104 = por %p102, %p103
      %p105 = scmp.ne.s32.totalorder %s97, %s100
      %p106 = scmp.eq.s32.totalorder %s12, 0
      %p107 = por %p105, %p106
      %p108 = scmp.ne.s32.totalorder %s97, %s100
      %p109 = scmp.eq.s32.totalorder %s17, 13
      %p110 = por %p108, %p109
      %p111 = scmp.ne.s32.totalorder %s100, %s101
      %p112 = scmp.eq.s32.totalorder %s17, 0
      %p113 = por %p111, %p112
      %p114 = scmp.ne.s32.totalorder %s100, %s101
      %p115 = scmp.eq.s32.totalorder %s18, 13
      %p116 = por %p114, %p115
      %p118 = scmp.ne.s32.totalorder %s101, %s117
      %p119 = scmp.eq.s32.totalorder %s18, 0
      %p120 = por %p118, %p119
      %s121 = ssub.s32 %s19, %s38
      %s122 = ssub.s32 %s20, %s34
      %s123 = sor.u32 %s121, %s122
      %p124 = scmp.eq.s32.totalorder %s123, 0
      %s126 = sadd.s32 %s125, 1
      %s127 = scalar_select %p124, %s125, %s126
      %p130 = pneg %p124
      %p131 = scmp.eq.s32.totalorder %s12, 13
      %p132 = por %p130, %p131
      %p133 = scmp.ne.s32.totalorder %s125, %s128
      %p134 = scmp.eq.s32.totalorder %s12, 0
      %p135 = por %p133, %p134
      %p136 = scmp.ne.s32.totalorder %s125, %s128
      %p137 = scmp.eq.s32.totalorder %s17, 13
      %p138 = por %p136, %p137
      %p139 = scmp.ne.s32.totalorder %s128, %s129
      %p140 = scmp.eq.s32.totalorder %s17, 0
      %p141 = por %p139, %p140
      %p142 = scmp.ne.s32.totalorder %s128, %s129
      %p143 = scmp.eq.s32.totalorder %s18, 13
      %p144 = por %p142, %p143
      %p146 = scmp.ne.s32.totalorder %s129, %s145
      %p147 = scmp.eq.s32.totalorder %s18, 0
      %p148 = por %p146, %p147
      %p149 = scmp.le.s32.totalorder 1, %s12
      %p150 = scmp.lt.s32.totalorder %s12, 15
      %p151 = pnand %p149, %p150
      %p152 = pneg %p151
      // Predicated region
      $region9: #{stem_conv_bn.1} parent=5 // pred_check
        _
      $region10: #{stem_conv_bn.1} parent=5 // pred_check_branch
        %154 = sbr.rel (%p151) target = $region12
      $region11: #{stem_conv_bn.1} parent=5 // pred_region
        %s155 = ssub.s32 %s12, 1
        // Predicated region
        $region13: #{stem_conv_bn.1} parent=11 // pred_check
          %p156 = pneg %p87
        $region14: #{stem_conv_bn.1} parent=11 // pred_check_branch
          %158 = sbr.rel (%p156) target = $region16
        $region15: #{stem_conv_bn.1} parent=11 // pred_region
          %s159 = smul.u32 19, %s24
          %p160 = scmp.lt.s32.totalorder %s159, 18
          %s161 = scalar_select %p160, %s159, 18
          %p162 = scmp.lt.s32.totalorder %s23, 0
          %s163 = scalar_select %p162, %s23, 0
          %s164 = sadd.s32 %s163, %s161
          %s165 = smul.addr %s164, 4
          %s166 = scalar_lea.vmem %s1, %s165
          %s167 = smul.u32 19, %s24
        $region16: #{stem_conv_bn.1} parent=11 // pred_fallthru
          _
        // Predicated region
        $region17: #{stem_conv_bn.1} parent=11 // pred_check
          %p168 = pneg %p113
        $region18: #{stem_conv_bn.1} parent=11 // pred_check_branch
          %170 = sbr.rel (%p168) target = $region20
        $region19: #{stem_conv_bn.1} parent=11 // pred_region
          %p171 = scmp.lt.s32.totalorder %s23, 0
          %s172 = scalar_select %p171, %s23, 0
          %s173 = scalar_lea.vmem %s2, %s172
        $region20: #{stem_conv_bn.1} parent=11 // pred_fallthru
          _
      $region12: #{stem_conv_bn.1} parent=5 // pred_fallthru
        _
      %p174 = scmp.lt.s32.totalorder %s12, 14
      // Predicated region
      $region21: #{stem_conv_bn.1} parent=5 // pred_check
        %p175 = pneg %p174
      $region22: #{stem_conv_bn.1} parent=5 // pred_check_branch
        %177 = sbr.rel (%p175) target = $region24
      $region23: #{stem_conv_bn.1} parent=5 // pred_region
        // Predicated region
        $region25: #{stem_conv_bn.1} parent=23 // pred_check
          %p178 = pneg %p53
        $region26: #{stem_conv_bn.1} parent=23 // pred_check_branch
          %180 = sbr.rel (%p178) target = $region28
        $region27: #{stem_conv_bn.1} parent=23 // pred_region
          %s181 = smul.u32 224, %s19
          %s182 = smul.u32 2, %s21
          %p183 = scmp.lt.s32.totalorder %s181, 3135
          %s184 = scalar_select %p183, %s181, 3135
          %p185 = scmp.lt.s32.totalorder %s182, 1
          %s186 = scalar_select %p185, %s182, 1
          %s187 = smul.addr %s184, 2
          %s188 = sadd.s32 %s186, %s187
          %s189 = smul.addr %s188, 4
          %s190 = scalar_lea.vmem %s0, %s189
          %s191 = smul.u32 224, %s19
          %s192 = smul.u32 2, %s21
        $region28: #{stem_conv_bn.1} parent=23 // pred_fallthru
          _
      $region24: #{stem_conv_bn.1} parent=5 // pred_fallthru
        _
      %p193 = scmp.le.s32.totalorder 1, %s12
      %p194 = scmp.lt.s32.totalorder %s12, 15
      %p195 = pnand %p193, %p194
      %p196 = pneg %p195
      // Predicated region
      $region29: #{stem_conv_bn.1} parent=5 // pred_check
        _
      $region30: #{stem_conv_bn.1} parent=5 // pred_check_branch
        %198 = sbr.rel (%p195) target = $region32
      $region31: #{stem_conv_bn.1} parent=5 // pred_region
        %s199 = ssub.s32 %s12, 1
        %s200 = smul.u32 224, %s22
        %s201 = smul.u32 2, %s24
        %p202 = scmp.lt.s32.totalorder %s200, 3135
        %s203 = scalar_select %p202, %s200, 3135
        %p204 = scmp.lt.s32.totalorder %s201, 1
        %s205 = scalar_select %p204, %s201, 1
        %s206 = smul.addr %s203, 2
        %s207 = sadd.s32 %s205, %s206
        %s208 = smul.addr %s207, 4
        %s209 = scalar_lea.vmem %s0, %s208
        %p210 = pneg %p59
        %p211 = pneg %p56
        %s212 = smul.u32 19, %s24
        %p213 = scmp.lt.s32.totalorder %s212, 18
        %s214 = scalar_select %p213, %s212, 18
        %p215 = scmp.lt.s32.totalorder %s23, 0
        %s216 = scalar_select %p215, %s23, 0
        %s217 = sadd.s32 %s216, %s214
        %s218 = smul.addr %s217, 4
        %s219 = scalar_lea.vmem %s1, %s218
        %p220 = pneg %p87
        %p221 = pneg %p84
        %p222 = scmp.lt.s32.totalorder %s23, 0
        %s223 = scalar_select %p222, %s23, 0
        %s224 = scalar_lea.vmem %s2, %s223
        %p225 = pneg %p113
        %p226 = pneg %p110
        %p227 = pneg %p141
        %p228 = pneg %p138
        %s229 = sand.u32 %s128, 1
        %s230 = scalar_lea.sflag [#allocation4], %s229
        %s231 = sand.u32 %s128, 1
        %s232 = smul.addr %s231, 896
        %s233 = scalar_lea.vmem [#allocation3], %s232
        %s234 = smul.u32 224, %s22
        %s235 = smul.u32 2, %s24
        %p236 = scmp.lt.s32.totalorder %s234, 3135
        %s237 = scalar_select %p236, %s234, 3135
        %p238 = scmp.lt.s32.totalorder %s235, 1
        %s239 = scalar_select %p238, %s235, 1
        %s240 = smul.addr %s237, 2
        %s241 = sadd.s32 %s239, %s240
        %s242 = smul.addr %s241, 4
        %s243 = scalar_lea.vmem %s0, %s242
        %s244 = smul.u32 224, %s22
        %s245 = smul.u32 2, %s24
        %s246 = smul.u32 19, %s24
        %p247 = scmp.lt.s32.totalorder %s246, 18
        %s248 = scalar_select %p247, %s246, 18
        %p249 = scmp.lt.s32.totalorder %s23, 0
        %s250 = scalar_select %p249, %s23, 0
        %s251 = sadd.s32 %s250, %s248
        %s252 = smul.addr %s251, 4
        %s253 = scalar_lea.vmem %s1, %s252
        %s254 = smul.u32 19, %s24
        %p255 = scmp.lt.s32.totalorder %s23, 0
        %s256 = scalar_select %p255, %s23, 0
        %s257 = scalar_lea.vmem %s2, %s256
        %s258 = smul.u32 224, %s22
        %p260 = scmp.eq.s32.totalorder %s24, 0
        // Predicated region
        $region33: #{stem_conv_bn.1} parent=31 // pred_check
          %p261 = pneg %p260
        $region34: #{stem_conv_bn.1} parent=31 // pred_check_branch
          %263 = sbr.rel (%p261) target = $region36
        $region35: #{stem_conv_bn.1} parent=31 // pred_region
          %264 = vst [vmem:[#allocation2] sm:$0xff] 0.0
          %265 = vst [vmem:[#allocation2 + $0x8] sm:$0xff] 0.0
          %266 = vst [vmem:[#allocation2 + $0x10] sm:$0xff] 0.0
          %267 = vst [vmem:[#allocation2 + $0x18] sm:$0xff] 0.0
          %268 = vst [vmem:[#allocation2 + $0x20] sm:$0xff] 0.0
          %269 = vst [vmem:[#allocation2 + $0x28] sm:$0xff] 0.0
          %270 = vst [vmem:[#allocation2 + $0x30] sm:$0xff] 0.0
          %271 = vst [vmem:[#allocation2 + $0x38] sm:$0xff] 0.0
          %272 = vst [vmem:[#allocation2 + $0x40] sm:$0xff] 0.0
          %273 = vst [vmem:[#allocation2 + $0x48] sm:$0xff] 0.0
          %274 = vst [vmem:[#allocation2 + $0x50] sm:$0xff] 0.0
          %275 = vst [vmem:[#allocation2 + $0x58] sm:$0xff] 0.0
          %276 = vst [vmem:[#allocation2 + $0x60] sm:$0xff] 0.0
          %277 = vst [vmem:[#allocation2 + $0x68] sm:$0xff] 0.0
          %278 = vst [vmem:[#allocation2 + $0x70] sm:$0xff] 0.0
          %279 = vst [vmem:[#allocation2 + $0x78] sm:$0xff] 0.0
          %280 = vst [vmem:[#allocation2 + $0x80] sm:$0xff] 0.0
          %281 = vst [vmem:[#allocation2 + $0x88] sm:$0xff] 0.0
          %282 = vst [vmem:[#allocation2 + $0x90] sm:$0xff] 0.0
          %283 = vst [vmem:[#allocation2 + $0x98] sm:$0xff] 0.0
          %284 = vst [vmem:[#allocation2 + $0xa0] sm:$0xff] 0.0
          %285 = vst [vmem:[#allocation2 + $0xa8] sm:$0xff] 0.0
          %286 = vst [vmem:[#allocation2 + $0xb0] sm:$0xff] 0.0
          %287 = vst [vmem:[#allocation2 + $0xb8] sm:$0xff] 0.0
          %288 = vst [vmem:[#allocation2 + $0xc0] sm:$0xff] 0.0
          %289 = vst [vmem:[#allocation2 + $0xc8] sm:$0xff] 0.0
          %290 = vst [vmem:[#allocation2 + $0xd0] sm:$0xff] 0.0
          %291 = vst [vmem:[#allocation2 + $0xd8] sm:$0xff] 0.0
          %292 = vst [vmem:[#allocation2 + $0xe0] sm:$0xff] 0.0
          %293 = vst [vmem:[#allocation2 + $0xe8] sm:$0xff] 0.0
          %294 = vst [vmem:[#allocation2 + $0xf0] sm:$0xff] 0.0
          %295 = vst [vmem:[#allocation2 + $0xf8] sm:$0xff] 0.0
          %296 = vst [vmem:[#allocation2 + $0x100] sm:$0xff] 0.0
          %297 = vst [vmem:[#allocation2 + $0x108] sm:$0xff] 0.0
          %298 = vst [vmem:[#allocation2 + $0x110] sm:$0xff] 0.0
          %299 = vst [vmem:[#allocation2 + $0x118] sm:$0xff] 0.0
          %300 = vst [vmem:[#allocation2 + $0x120] sm:$0xff] 0.0
          %301 = vst [vmem:[#allocation2 + $0x128] sm:$0xff] 0.0
          %302 = vst [vmem:[#allocation2 + $0x130] sm:$0xff] 0.0
          %303 = vst [vmem:[#allocation2 + $0x138] sm:$0xff] 0.0
          %304 = vst [vmem:[#allocation2 + $0x140] sm:$0xff] 0.0
          %305 = vst [vmem:[#allocation2 + $0x148] sm:$0xff] 0.0
          %306 = vst [vmem:[#allocation2 + $0x150] sm:$0xff] 0.0
          %307 = vst [vmem:[#allocation2 + $0x158] sm:$0xff] 0.0
          %308 = vst [vmem:[#allocation2 + $0x160] sm:$0xff] 0.0
          %309 = vst [vmem:[#allocation2 + $0x168] sm:$0xff] 0.0
          %310 = vst [vmem:[#allocation2 + $0x170] sm:$0xff] 0.0
          %311 = vst [vmem:[#allocation2 + $0x178] sm:$0xff] 0.0
          %312 = vst [vmem:[#allocation2 + $0x180] sm:$0xff] 0.0
          %313 = vst [vmem:[#allocation2 + $0x188] sm:$0xff] 0.0
          %314 = vst [vmem:[#allocation2 + $0x190] sm:$0xff] 0.0
          %315 = vst [vmem:[#allocation2 + $0x198] sm:$0xff] 0.0
          %316 = vst [vmem:[#allocation2 + $0x1a0] sm:$0xff] 0.0
          %317 = vst [vmem:[#allocation2 + $0x1a8] sm:$0xff] 0.0
          %318 = vst [vmem:[#allocation2 + $0x1b0] sm:$0xff] 0.0
          %319 = vst [vmem:[#allocation2 + $0x1b8] sm:$0xff] 0.0
          %320 = vst [vmem:[#allocation2 + $0x1c0] sm:$0xff] 0.0
          %321 = vst [vmem:[#allocation2 + $0x1c8] sm:$0xff] 0.0
          %322 = vst [vmem:[#allocation2 + $0x1d0] sm:$0xff] 0.0
          %323 = vst [vmem:[#allocation2 + $0x1d8] sm:$0xff] 0.0
          %324 = vst [vmem:[#allocation2 + $0x1e0] sm:$0xff] 0.0
          %325 = vst [vmem:[#allocation2 + $0x1e8] sm:$0xff] 0.0
          %326 = vst [vmem:[#allocation2 + $0x1f0] sm:$0xff] 0.0
          %327 = vst [vmem:[#allocation2 + $0x1f8] sm:$0xff] 0.0
          %328 = vst [vmem:[#allocation2 + $0x200] sm:$0xff] 0.0
          %329 = vst [vmem:[#allocation2 + $0x208] sm:$0xff] 0.0
          %330 = vst [vmem:[#allocation2 + $0x210] sm:$0xff] 0.0
          %331 = vst [vmem:[#allocation2 + $0x218] sm:$0xff] 0.0
          %332 = vst [vmem:[#allocation2 + $0x220] sm:$0xff] 0.0
          %333 = vst [vmem:[#allocation2 + $0x228] sm:$0xff] 0.0
          %334 = vst [vmem:[#allocation2 + $0x230] sm:$0xff] 0.0
          %335 = vst [vmem:[#allocation2 + $0x238] sm:$0xff] 0.0
          %336 = vst [vmem:[#allocation2 + $0x240] sm:$0xff] 0.0
          %337 = vst [vmem:[#allocation2 + $0x248] sm:$0xff] 0.0
          %338 = vst [vmem:[#allocation2 + $0x250] sm:$0xff] 0.0
          %339 = vst [vmem:[#allocation2 + $0x258] sm:$0xff] 0.0
          %340 = vst [vmem:[#allocation2 + $0x260] sm:$0xff] 0.0
          %341 = vst [vmem:[#allocation2 + $0x268] sm:$0xff] 0.0
          %342 = vst [vmem:[#allocation2 + $0x270] sm:$0xff] 0.0
          %343 = vst [vmem:[#allocation2 + $0x278] sm:$0xff] 0.0
          %344 = vst [vmem:[#allocation2 + $0x280] sm:$0xff] 0.0
          %345 = vst [vmem:[#allocation2 + $0x288] sm:$0xff] 0.0
          %346 = vst [vmem:[#allocation2 + $0x290] sm:$0xff] 0.0
          %347 = vst [vmem:[#allocation2 + $0x298] sm:$0xff] 0.0
          %348 = vst [vmem:[#allocation2 + $0x2a0] sm:$0xff] 0.0
          %349 = vst [vmem:[#allocation2 + $0x2a8] sm:$0xff] 0.0
          %350 = vst [vmem:[#allocation2 + $0x2b0] sm:$0xff] 0.0
          %351 = vst [vmem:[#allocation2 + $0x2b8] sm:$0xff] 0.0
          %352 = vst [vmem:[#allocation2 + $0x2c0] sm:$0xff] 0.0
          %353 = vst [vmem:[#allocation2 + $0x2c8] sm:$0xff] 0.0
          %354 = vst [vmem:[#allocation2 + $0x2d0] sm:$0xff] 0.0
          %355 = vst [vmem:[#allocation2 + $0x2d8] sm:$0xff] 0.0
          %356 = vst [vmem:[#allocation2 + $0x2e0] sm:$0xff] 0.0
          %357 = vst [vmem:[#allocation2 + $0x2e8] sm:$0xff] 0.0
          %358 = vst [vmem:[#allocation2 + $0x2f0] sm:$0xff] 0.0
          %359 = vst [vmem:[#allocation2 + $0x2f8] sm:$0xff] 0.0
          %360 = vst [vmem:[#allocation2 + $0x300] sm:$0xff] 0.0
          %361 = vst [vmem:[#allocation2 + $0x308] sm:$0xff] 0.0
          %362 = vst [vmem:[#allocation2 + $0x310] sm:$0xff] 0.0
          %363 = vst [vmem:[#allocation2 + $0x318] sm:$0xff] 0.0
          %364 = vst [vmem:[#allocation2 + $0x320] sm:$0xff] 0.0
          %365 = vst [vmem:[#allocation2 + $0x328] sm:$0xff] 0.0
          %366 = vst [vmem:[#allocation2 + $0x330] sm:$0xff] 0.0
          %367 = vst [vmem:[#allocation2 + $0x338] sm:$0xff] 0.0
          %368 = vst [vmem:[#allocation2 + $0x340] sm:$0xff] 0.0
          %369 = vst [vmem:[#allocation2 + $0x348] sm:$0xff] 0.0
          %370 = vst [vmem:[#allocation2 + $0x350] sm:$0xff] 0.0
          %371 = vst [vmem:[#allocation2 + $0x358] sm:$0xff] 0.0
          %372 = vst [vmem:[#allocation2 + $0x360] sm:$0xff] 0.0
          %373 = vst [vmem:[#allocation2 + $0x368] sm:$0xff] 0.0
          %374 = vst [vmem:[#allocation2 + $0x370] sm:$0xff] 0.0
          %375 = vst [vmem:[#allocation2 + $0x378] sm:$0xff] 0.0
          %376 = vst [vmem:[#allocation2 + $0x380] sm:$0xff] 0.0
          %377 = vst [vmem:[#allocation2 + $0x388] sm:$0xff] 0.0
          %378 = vst [vmem:[#allocation2 + $0x390] sm:$0xff] 0.0
          %379 = vst [vmem:[#allocation2 + $0x398] sm:$0xff] 0.0
          %380 = vst [vmem:[#allocation2 + $0x3a0] sm:$0xff] 0.0
          %381 = vst [vmem:[#allocation2 + $0x3a8] sm:$0xff] 0.0
          %382 = vst [vmem:[#allocation2 + $0x3b0] sm:$0xff] 0.0
          %383 = vst [vmem:[#allocation2 + $0x3b8] sm:$0xff] 0.0
          %384 = vst [vmem:[#allocation2 + $0x3c0] sm:$0xff] 0.0
          %385 = vst [vmem:[#allocation2 + $0x3c8] sm:$0xff] 0.0
          %386 = vst [vmem:[#allocation2 + $0x3d0] sm:$0xff] 0.0
          %387 = vst [vmem:[#allocation2 + $0x3d8] sm:$0xff] 0.0
          %388 = vst [vmem:[#allocation2 + $0x3e0] sm:$0xff] 0.0
          %389 = vst [vmem:[#allocation2 + $0x3e8] sm:$0xff] 0.0
          %390 = vst [vmem:[#allocation2 + $0x3f0] sm:$0xff] 0.0
          %391 = vst [vmem:[#allocation2 + $0x3f8] sm:$0xff] 0.0
          %392 = vst [vmem:[#allocation2 + $0x400] sm:$0xff] 0.0
          %393 = vst [vmem:[#allocation2 + $0x408] sm:$0xff] 0.0
          %394 = vst [vmem:[#allocation2 + $0x410] sm:$0xff] 0.0
          %395 = vst [vmem:[#allocation2 + $0x418] sm:$0xff] 0.0
          %396 = vst [vmem:[#allocation2 + $0x420] sm:$0xff] 0.0
          %397 = vst [vmem:[#allocation2 + $0x428] sm:$0xff] 0.0
          %398 = vst [vmem:[#allocation2 + $0x430] sm:$0xff] 0.0
          %399 = vst [vmem:[#allocation2 + $0x438] sm:$0xff] 0.0
          %400 = vst [vmem:[#allocation2 + $0x440] sm:$0xff] 0.0
          %401 = vst [vmem:[#allocation2 + $0x448] sm:$0xff] 0.0
          %402 = vst [vmem:[#allocation2 + $0x450] sm:$0xff] 0.0
          %403 = vst [vmem:[#allocation2 + $0x458] sm:$0xff] 0.0
          %404 = vst [vmem:[#allocation2 + $0x460] sm:$0xff] 0.0
          %405 = vst [vmem:[#allocation2 + $0x468] sm:$0xff] 0.0
          %406 = vst [vmem:[#allocation2 + $0x470] sm:$0xff] 0.0
          %407 = vst [vmem:[#allocation2 + $0x478] sm:$0xff] 0.0
          %408 = vst [vmem:[#allocation2 + $0x480] sm:$0xff] 0.0
          %409 = vst [vmem:[#allocation2 + $0x488] sm:$0xff] 0.0
          %410 = vst [vmem:[#allocation2 + $0x490] sm:$0xff] 0.0
          %411 = vst [vmem:[#allocation2 + $0x498] sm:$0xff] 0.0
          %412 = vst [vmem:[#allocation2 + $0x4a0] sm:$0xff] 0.0
          %413 = vst [vmem:[#allocation2 + $0x4a8] sm:$0xff] 0.0
          %414 = vst [vmem:[#allocation2 + $0x4b0] sm:$0xff] 0.0
          %415 = vst [vmem:[#allocation2 + $0x4b8] sm:$0xff] 0.0
          %416 = vst [vmem:[#allocation2 + $0x4c0] sm:$0xff] 0.0
          %417 = vst [vmem:[#allocation2 + $0x4c8] sm:$0xff] 0.0
          %418 = vst [vmem:[#allocation2 + $0x4d0] sm:$0xff] 0.0
          %419 = vst [vmem:[#allocation2 + $0x4d8] sm:$0xff] 0.0
          %420 = vst [vmem:[#allocation2 + $0x4e0] sm:$0xff] 0.0
          %421 = vst [vmem:[#allocation2 + $0x4e8] sm:$0xff] 0.0
          %422 = vst [vmem:[#allocation2 + $0x4f0] sm:$0xff] 0.0
          %423 = vst [vmem:[#allocation2 + $0x4f8] sm:$0xff] 0.0
          %424 = vst [vmem:[#allocation2 + $0x500] sm:$0xff] 0.0
          %425 = vst [vmem:[#allocation2 + $0x508] sm:$0xff] 0.0
          %426 = vst [vmem:[#allocation2 + $0x510] sm:$0xff] 0.0
          %427 = vst [vmem:[#allocation2 + $0x518] sm:$0xff] 0.0
          %428 = vst [vmem:[#allocation2 + $0x520] sm:$0xff] 0.0
          %429 = vst [vmem:[#allocation2 + $0x528] sm:$0xff] 0.0
          %430 = vst [vmem:[#allocation2 + $0x530] sm:$0xff] 0.0
          %431 = vst [vmem:[#allocation2 + $0x538] sm:$0xff] 0.0
          %432 = vst [vmem:[#allocation2 + $0x540] sm:$0xff] 0.0
          %433 = vst [vmem:[#allocation2 + $0x548] sm:$0xff] 0.0
          %434 = vst [vmem:[#allocation2 + $0x550] sm:$0xff] 0.0
          %435 = vst [vmem:[#allocation2 + $0x558] sm:$0xff] 0.0
          %436 = vst [vmem:[#allocation2 + $0x560] sm:$0xff] 0.0
          %437 = vst [vmem:[#allocation2 + $0x568] sm:$0xff] 0.0
          %438 = vst [vmem:[#allocation2 + $0x570] sm:$0xff] 0.0
          %439 = vst [vmem:[#allocation2 + $0x578] sm:$0xff] 0.0
          %440 = vst [vmem:[#allocation2 + $0x580] sm:$0xff] 0.0
          %441 = vst [vmem:[#allocation2 + $0x588] sm:$0xff] 0.0
          %442 = vst [vmem:[#allocation2 + $0x590] sm:$0xff] 0.0
          %443 = vst [vmem:[#allocation2 + $0x598] sm:$0xff] 0.0
          %444 = vst [vmem:[#allocation2 + $0x5a0] sm:$0xff] 0.0
          %445 = vst [vmem:[#allocation2 + $0x5a8] sm:$0xff] 0.0
          %446 = vst [vmem:[#allocation2 + $0x5b0] sm:$0xff] 0.0
          %447 = vst [vmem:[#allocation2 + $0x5b8] sm:$0xff] 0.0
          %448 = vst [vmem:[#allocation2 + $0x5c0] sm:$0xff] 0.0
          %449 = vst [vmem:[#allocation2 + $0x5c8] sm:$0xff] 0.0
          %450 = vst [vmem:[#allocation2 + $0x5d0] sm:$0xff] 0.0
          %451 = vst [vmem:[#allocation2 + $0x5d8] sm:$0xff] 0.0
          %452 = vst [vmem:[#allocation2 + $0x5e0] sm:$0xff] 0.0
          %453 = vst [vmem:[#allocation2 + $0x5e8] sm:$0xff] 0.0
          %454 = vst [vmem:[#allocation2 + $0x5f0] sm:$0xff] 0.0
          %455 = vst [vmem:[#allocation2 + $0x5f8] sm:$0xff] 0.0
          %456 = vst [vmem:[#allocation2 + $0x600] sm:$0xff] 0.0
          %457 = vst [vmem:[#allocation2 + $0x608] sm:$0xff] 0.0
          %458 = vst [vmem:[#allocation2 + $0x610] sm:$0xff] 0.0
          %459 = vst [vmem:[#allocation2 + $0x618] sm:$0xff] 0.0
          %460 = vst [vmem:[#allocation2 + $0x620] sm:$0xff] 0.0
          %461 = vst [vmem:[#allocation2 + $0x628] sm:$0xff] 0.0
          %462 = vst [vmem:[#allocation2 + $0x630] sm:$0xff] 0.0
          %463 = vst [vmem:[#allocation2 + $0x638] sm:$0xff] 0.0
          %464 = vst [vmem:[#allocation2 + $0x640] sm:$0xff] 0.0
          %465 = vst [vmem:[#allocation2 + $0x648] sm:$0xff] 0.0
          %466 = vst [vmem:[#allocation2 + $0x650] sm:$0xff] 0.0
          %467 = vst [vmem:[#allocation2 + $0x658] sm:$0xff] 0.0
          %468 = vst [vmem:[#allocation2 + $0x660] sm:$0xff] 0.0
          %469 = vst [vmem:[#allocation2 + $0x668] sm:$0xff] 0.0
          %470 = vst [vmem:[#allocation2 + $0x670] sm:$0xff] 0.0
          %471 = vst [vmem:[#allocation2 + $0x678] sm:$0xff] 0.0
          %472 = vst [vmem:[#allocation2 + $0x680] sm:$0xff] 0.0
          %473 = vst [vmem:[#allocation2 + $0x688] sm:$0xff] 0.0
          %474 = vst [vmem:[#allocation2 + $0x690] sm:$0xff] 0.0
          %475 = vst [vmem:[#allocation2 + $0x698] sm:$0xff] 0.0
          %476 = vst [vmem:[#allocation2 + $0x6a0] sm:$0xff] 0.0
          %477 = vst [vmem:[#allocation2 + $0x6a8] sm:$0xff] 0.0
          %478 = vst [vmem:[#allocation2 + $0x6b0] sm:$0xff] 0.0
          %479 = vst [vmem:[#allocation2 + $0x6b8] sm:$0xff] 0.0
          %480 = vst [vmem:[#allocation2 + $0x6c0] sm:$0xff] 0.0
          %481 = vst [vmem:[#allocation2 + $0x6c8] sm:$0xff] 0.0
          %482 = vst [vmem:[#allocation2 + $0x6d0] sm:$0xff] 0.0
          %483 = vst [vmem:[#allocation2 + $0x6d8] sm:$0xff] 0.0
          %484 = vst [vmem:[#allocation2 + $0x6e0] sm:$0xff] 0.0
          %485 = vst [vmem:[#allocation2 + $0x6e8] sm:$0xff] 0.0
          %486 = vst [vmem:[#allocation2 + $0x6f0] sm:$0xff] 0.0
          %487 = vst [vmem:[#allocation2 + $0x6f8] sm:$0xff] 0.0
        $region36: #{stem_conv_bn.1} parent=31 // pred_fallthru
          _
        %v488 = vld [vmem:[#allocation2] sm:$0xff]
        %v489 = vld [vmem:[#allocation2 + $0x8] sm:$0xff]
        %v490 = vld [vmem:[#allocation2 + $0x10] sm:$0xff]
        %v491 = vld [vmem:[#allocation2 + $0x18] sm:$0xff]
        %v492 = vld [vmem:[#allocation2 + $0x20] sm:$0xff]
        %v493 = vld [vmem:[#allocation2 + $0x28] sm:$0xff]
        %v494 = vld [vmem:[#allocation2 + $0x30] sm:$0xff]
        %v495 = vld [vmem:[#allocation2 + $0x38] sm:$0xff]
        %v496 = vld [vmem:[#allocation2 + $0x40] sm:$0xff]
        %v497 = vld [vmem:[#allocation2 + $0x48] sm:$0xff]
        %v498 = vld [vmem:[#allocation2 + $0x50] sm:$0xff]
        %v499 = vld [vmem:[#allocation2 + $0x58] sm:$0xff]
        %v500 = vld [vmem:[#allocation2 + $0x60] sm:$0xff]
        %v501 = vld [vmem:[#allocation2 + $0x68] sm:$0xff]
        %v502 = vld [vmem:[#allocation2 + $0x70] sm:$0xff]
        %v503 = vld [vmem:[#allocation2 + $0x78] sm:$0xff]
        %v504 = vld [vmem:[#allocation2 + $0x80] sm:$0xff]
        %v505 = vld [vmem:[#allocation2 + $0x88] sm:$0xff]
        %v506 = vld [vmem:[#allocation2 + $0x90] sm:$0xff]
        %v507 = vld [vmem:[#allocation2 + $0x98] sm:$0xff]
        %v508 = vld [vmem:[#allocation2 + $0xa0] sm:$0xff]
        %v509 = vld [vmem:[#allocation2 + $0xa8] sm:$0xff]
        %v510 = vld [vmem:[#allocation2 + $0xb0] sm:$0xff]
        %v511 = vld [vmem:[#allocation2 + $0xb8] sm:$0xff]
        %v512 = vld [vmem:[#allocation2 + $0xc0] sm:$0xff]
        %v513 = vld [vmem:[#allocation2 + $0xc8] sm:$0xff]
        %v514 = vld [vmem:[#allocation2 + $0xd0] sm:$0xff]
        %v515 = vld [vmem:[#allocation2 + $0xd8] sm:$0xff]
        %v516 = vld [vmem:[#allocation2 + $0xe0] sm:$0xff]
        %v517 = vld [vmem:[#allocation2 + $0xe8] sm:$0xff]
        %v518 = vld [vmem:[#allocation2 + $0xf0] sm:$0xff]
        %v519 = vld [vmem:[#allocation2 + $0xf8] sm:$0xff]
        %v520 = vld [vmem:[#allocation2 + $0x100] sm:$0xff]
        %v521 = vld [vmem:[#allocation2 + $0x108] sm:$0xff]
        %v522 = vld [vmem:[#allocation2 + $0x110] sm:$0xff]
        %v523 = vld [vmem:[#allocation2 + $0x118] sm:$0xff]
        %v524 = vld [vmem:[#allocation2 + $0x120] sm:$0xff]
        %v525 = vld [vmem:[#allocation2 + $0x128] sm:$0xff]
        %v526 = vld [vmem:[#allocation2 + $0x130] sm:$0xff]
        %v527 = vld [vmem:[#allocation2 + $0x138] sm:$0xff]
        %v528 = vld [vmem:[#allocation2 + $0x140] sm:$0xff]
        %v529 = vld [vmem:[#allocation2 + $0x148] sm:$0xff]
        %v530 = vld [vmem:[#allocation2 + $0x150] sm:$0xff]
        %v531 = vld [vmem:[#allocation2 + $0x158] sm:$0xff]
        %v532 = vld [vmem:[#allocation2 + $0x160] sm:$0xff]
        %v533 = vld [vmem:[#allocation2 + $0x168] sm:$0xff]
        %v534 = vld [vmem:[#allocation2 + $0x170] sm:$0xff]
        %v535 = vld [vmem:[#allocation2 + $0x178] sm:$0xff]
        %v536 = vld [vmem:[#allocation2 + $0x180] sm:$0xff]
        %v537 = vld [vmem:[#allocation2 + $0x188] sm:$0xff]
        %v538 = vld [vmem:[#allocation2 + $0x190] sm:$0xff]
        %v539 = vld [vmem:[#allocation2 + $0x198] sm:$0xff]
        %v540 = vld [vmem:[#allocation2 + $0x1a0] sm:$0xff]
        %v541 = vld [vmem:[#allocation2 + $0x1a8] sm:$0xff]
        %v542 = vld [vmem:[#allocation2 + $0x1b0] sm:$0xff]
        %v543 = vld [vmem:[#allocation2 + $0x1b8] sm:$0xff]
        %v544 = vld [vmem:[#allocation2 + $0x1c0] sm:$0xff]
        %v545 = vld [vmem:[#allocation2 + $0x1c8] sm:$0xff]
        %v546 = vld [vmem:[#allocation2 + $0x1d0] sm:$0xff]
        %v547 = vld [vmem:[#allocation2 + $0x1d8] sm:$0xff]
        %v548 = vld [vmem:[#allocation2 + $0x1e0] sm:$0xff]
        %v549 = vld [vmem:[#allocation2 + $0x1e8] sm:$0xff]
        %v550 = vld [vmem:[#allocation2 + $0x1f0] sm:$0xff]
        %v551 = vld [vmem:[#allocation2 + $0x1f8] sm:$0xff]
        %v552 = vld [vmem:[#allocation2 + $0x200] sm:$0xff]
        %v553 = vld [vmem:[#allocation2 + $0x208] sm:$0xff]
        %v554 = vld [vmem:[#allocation2 + $0x210] sm:$0xff]
        %v555 = vld [vmem:[#allocation2 + $0x218] sm:$0xff]
        %v556 = vld [vmem:[#allocation2 + $0x220] sm:$0xff]
        %v557 = vld [vmem:[#allocation2 + $0x228] sm:$0xff]
        %v558 = vld [vmem:[#allocation2 + $0x230] sm:$0xff]
        %v559 = vld [vmem:[#allocation2 + $0x238] sm:$0xff]
        %v560 = vld [vmem:[#allocation2 + $0x240] sm:$0xff]
        %v561 = vld [vmem:[#allocation2 + $0x248] sm:$0xff]
        %v562 = vld [vmem:[#allocation2 + $0x250] sm:$0xff]
        %v563 = vld [vmem:[#allocation2 + $0x258] sm:$0xff]
        %v564 = vld [vmem:[#allocation2 + $0x260] sm:$0xff]
        %v565 = vld [vmem:[#allocation2 + $0x268] sm:$0xff]
        %v566 = vld [vmem:[#allocation2 + $0x270] sm:$0xff]
        %v567 = vld [vmem:[#allocation2 + $0x278] sm:$0xff]
        %v568 = vld [vmem:[#allocation2 + $0x280] sm:$0xff]
        %v569 = vld [vmem:[#allocation2 + $0x288] sm:$0xff]
        %v570 = vld [vmem:[#allocation2 + $0x290] sm:$0xff]
        %v571 = vld [vmem:[#allocation2 + $0x298] sm:$0xff]
        %v572 = vld [vmem:[#allocation2 + $0x2a0] sm:$0xff]
        %v573 = vld [vmem:[#allocation2 + $0x2a8] sm:$0xff]
        %v574 = vld [vmem:[#allocation2 + $0x2b0] sm:$0xff]
        %v575 = vld [vmem:[#allocation2 + $0x2b8] sm:$0xff]
        %v576 = vld [vmem:[#allocation2 + $0x2c0] sm:$0xff]
        %v577 = vld [vmem:[#allocation2 + $0x2c8] sm:$0xff]
        %v578 = vld [vmem:[#allocation2 + $0x2d0] sm:$0xff]
        %v579 = vld [vmem:[#allocation2 + $0x2d8] sm:$0xff]
        %v580 = vld [vmem:[#allocation2 + $0x2e0] sm:$0xff]
        %v581 = vld [vmem:[#allocation2 + $0x2e8] sm:$0xff]
        %v582 = vld [vmem:[#allocation2 + $0x2f0] sm:$0xff]
        %v583 = vld [vmem:[#allocation2 + $0x2f8] sm:$0xff]
        %v584 = vld [vmem:[#allocation2 + $0x300] sm:$0xff]
        %v585 = vld [vmem:[#allocation2 + $0x308] sm:$0xff]
        %v586 = vld [vmem:[#allocation2 + $0x310] sm:$0xff]
        %v587 = vld [vmem:[#allocation2 + $0x318] sm:$0xff]
        %v588 = vld [vmem:[#allocation2 + $0x320] sm:$0xff]
        %v589 = vld [vmem:[#allocation2 + $0x328] sm:$0xff]
        %v590 = vld [vmem:[#allocation2 + $0x330] sm:$0xff]
        %v591 = vld [vmem:[#allocation2 + $0x338] sm:$0xff]
        %v592 = vld [vmem:[#allocation2 + $0x340] sm:$0xff]
        %v593 = vld [vmem:[#allocation2 + $0x348] sm:$0xff]
        %v594 = vld [vmem:[#allocation2 + $0x350] sm:$0xff]
        %v595 = vld [vmem:[#allocation2 + $0x358] sm:$0xff]
        %v596 = vld [vmem:[#allocation2 + $0x360] sm:$0xff]
        %v597 = vld [vmem:[#allocation2 + $0x368] sm:$0xff]
        %v598 = vld [vmem:[#allocation2 + $0x370] sm:$0xff]
        %v599 = vld [vmem:[#allocation2 + $0x378] sm:$0xff]
        %v600 = vld [vmem:[#allocation2 + $0x380] sm:$0xff]
        %v601 = vld [vmem:[#allocation2 + $0x388] sm:$0xff]
        %v602 = vld [vmem:[#allocation2 + $0x390] sm:$0xff]
        %v603 = vld [vmem:[#allocation2 + $0x398] sm:$0xff]
        %v604 = vld [vmem:[#allocation2 + $0x3a0] sm:$0xff]
        %v605 = vld [vmem:[#allocation2 + $0x3a8] sm:$0xff]
        %v606 = vld [vmem:[#allocation2 + $0x3b0] sm:$0xff]
        %v607 = vld [vmem:[#allocation2 + $0x3b8] sm:$0xff]
        %v608 = vld [vmem:[#allocation2 + $0x3c0] sm:$0xff]
        %v609 = vld [vmem:[#allocation2 + $0x3c8] sm:$0xff]
        %v610 = vld [vmem:[#allocation2 + $0x3d0] sm:$0xff]
        %v611 = vld [vmem:[#allocation2 + $0x3d8] sm:$0xff]
        %v612 = vld [vmem:[#allocation2 + $0x3e0] sm:$0xff]
        %v613 = vld [vmem:[#allocation2 + $0x3e8] sm:$0xff]
        %v614 = vld [vmem:[#allocation2 + $0x3f0] sm:$0xff]
        %v615 = vld [vmem:[#allocation2 + $0x3f8] sm:$0xff]
        %v616 = vld [vmem:[#allocation2 + $0x400] sm:$0xff]
        %v617 = vld [vmem:[#allocation2 + $0x408] sm:$0xff]
        %v618 = vld [vmem:[#allocation2 + $0x410] sm:$0xff]
        %v619 = vld [vmem:[#allocation2 + $0x418] sm:$0xff]
        %v620 = vld [vmem:[#allocation2 + $0x420] sm:$0xff]
        %v621 = vld [vmem:[#allocation2 + $0x428] sm:$0xff]
        %v622 = vld [vmem:[#allocation2 + $0x430] sm:$0xff]
        %v623 = vld [vmem:[#allocation2 + $0x438] sm:$0xff]
        %v624 = vld [vmem:[#allocation2 + $0x440] sm:$0xff]
        %v625 = vld [vmem:[#allocation2 + $0x448] sm:$0xff]
        %v626 = vld [vmem:[#allocation2 + $0x450] sm:$0xff]
        %v627 = vld [vmem:[#allocation2 + $0x458] sm:$0xff]
        %v628 = vld [vmem:[#allocation2 + $0x460] sm:$0xff]
        %v629 = vld [vmem:[#allocation2 + $0x468] sm:$0xff]
        %v630 = vld [vmem:[#allocation2 + $0x470] sm:$0xff]
        %v631 = vld [vmem:[#allocation2 + $0x478] sm:$0xff]
        %v632 = vld [vmem:[#allocation2 + $0x480] sm:$0xff]
        %v633 = vld [vmem:[#allocation2 + $0x488] sm:$0xff]
        %v634 = vld [vmem:[#allocation2 + $0x490] sm:$0xff]
        %v635 = vld [vmem:[#allocation2 + $0x498] sm:$0xff]
        %v636 = vld [vmem:[#allocation2 + $0x4a0] sm:$0xff]
        %v637 = vld [vmem:[#allocation2 + $0x4a8] sm:$0xff]
        %v638 = vld [vmem:[#allocation2 + $0x4b0] sm:$0xff]
        %v639 = vld [vmem:[#allocation2 + $0x4b8] sm:$0xff]
        %v640 = vld [vmem:[#allocation2 + $0x4c0] sm:$0xff]
        %v641 = vld [vmem:[#allocation2 + $0x4c8] sm:$0xff]
        %v642 = vld [vmem:[#allocation2 + $0x4d0] sm:$0xff]
        %v643 = vld [vmem:[#allocation2 + $0x4d8] sm:$0xff]
        %v644 = vld [vmem:[#allocation2 + $0x4e0] sm:$0xff]
        %v645 = vld [vmem:[#allocation2 + $0x4e8] sm:$0xff]
        %v646 = vld [vmem:[#allocation2 + $0x4f0] sm:$0xff]
        %v647 = vld [vmem:[#allocation2 + $0x4f8] sm:$0xff]
        %v648 = vld [vmem:[#allocation2 + $0x500] sm:$0xff]
        %v649 = vld [vmem:[#allocation2 + $0x508] sm:$0xff]
        %v650 = vld [vmem:[#allocation2 + $0x510] sm:$0xff]
        %v651 = vld [vmem:[#allocation2 + $0x518] sm:$0xff]
        %v652 = vld [vmem:[#allocation2 + $0x520] sm:$0xff]
        %v653 = vld [vmem:[#allocation2 + $0x528] sm:$0xff]
        %v654 = vld [vmem:[#allocation2 + $0x530] sm:$0xff]
        %v655 = vld [vmem:[#allocation2 + $0x538] sm:$0xff]
        %v656 = vld [vmem:[#allocation2 + $0x540] sm:$0xff]
        %v657 = vld [vmem:[#allocation2 + $0x548] sm:$0xff]
        %v658 = vld [vmem:[#allocation2 + $0x550] sm:$0xff]
        %v659 = vld [vmem:[#allocation2 + $0x558] sm:$0xff]
        %v660 = vld [vmem:[#allocation2 + $0x560] sm:$0xff]
        %v661 = vld [vmem:[#allocation2 + $0x568] sm:$0xff]
        %v662 = vld [vmem:[#allocation2 + $0x570] sm:$0xff]
        %v663 = vld [vmem:[#allocation2 + $0x578] sm:$0xff]
        %v664 = vld [vmem:[#allocation2 + $0x580] sm:$0xff]
        %v665 = vld [vmem:[#allocation2 + $0x588] sm:$0xff]
        %v666 = vld [vmem:[#allocation2 + $0x590] sm:$0xff]
        %v667 = vld [vmem:[#allocation2 + $0x598] sm:$0xff]
        %v668 = vld [vmem:[#allocation2 + $0x5a0] sm:$0xff]
        %v669 = vld [vmem:[#allocation2 + $0x5a8] sm:$0xff]
        %v670 = vld [vmem:[#allocation2 + $0x5b0] sm:$0xff]
        %v671 = vld [vmem:[#allocation2 + $0x5b8] sm:$0xff]
        %v672 = vld [vmem:[#allocation2 + $0x5c0] sm:$0xff]
        %v673 = vld [vmem:[#allocation2 + $0x5c8] sm:$0xff]
        %v674 = vld [vmem:[#allocation2 + $0x5d0] sm:$0xff]
        %v675 = vld [vmem:[#allocation2 + $0x5d8] sm:$0xff]
        %v676 = vld [vmem:[#allocation2 + $0x5e0] sm:$0xff]
        %v677 = vld [vmem:[#allocation2 + $0x5e8] sm:$0xff]
        %v678 = vld [vmem:[#allocation2 + $0x5f0] sm:$0xff]
        %v679 = vld [vmem:[#allocation2 + $0x5f8] sm:$0xff]
        %v680 = vld [vmem:[#allocation2 + $0x600] sm:$0xff]
        %v681 = vld [vmem:[#allocation2 + $0x608] sm:$0xff]
        %v682 = vld [vmem:[#allocation2 + $0x610] sm:$0xff]
        %v683 = vld [vmem:[#allocation2 + $0x618] sm:$0xff]
        %v684 = vld [vmem:[#allocation2 + $0x620] sm:$0xff]
        %v685 = vld [vmem:[#allocation2 + $0x628] sm:$0xff]
        %v686 = vld [vmem:[#allocation2 + $0x630] sm:$0xff]
        %v687 = vld [vmem:[#allocation2 + $0x638] sm:$0xff]
        %v688 = vld [vmem:[#allocation2 + $0x640] sm:$0xff]
        %v689 = vld [vmem:[#allocation2 + $0x648] sm:$0xff]
        %v690 = vld [vmem:[#allocation2 + $0x650] sm:$0xff]
        %v691 = vld [vmem:[#allocation2 + $0x658] sm:$0xff]
        %v692 = vld [vmem:[#allocation2 + $0x660] sm:$0xff]
        %v693 = vld [vmem:[#allocation2 + $0x668] sm:$0xff]
        %v694 = vld [vmem:[#allocation2 + $0x670] sm:$0xff]
        %v695 = vld [vmem:[#allocation2 + $0x678] sm:$0xff]
        %v696 = vld [vmem:[#allocation2 + $0x680] sm:$0xff]
        %v697 = vld [vmem:[#allocation2 + $0x688] sm:$0xff]
        %v698 = vld [vmem:[#allocation2 + $0x690] sm:$0xff]
        %v699 = vld [vmem:[#allocation2 + $0x698] sm:$0xff]
        %v700 = vld [vmem:[#allocation2 + $0x6a0] sm:$0xff]
        %v701 = vld [vmem:[#allocation2 + $0x6a8] sm:$0xff]
        %v702 = vld [vmem:[#allocation2 + $0x6b0] sm:$0xff]
        %v703 = vld [vmem:[#allocation2 + $0x6b8] sm:$0xff]
        %v704 = vld [vmem:[#allocation2 + $0x6c0] sm:$0xff]
        %v705 = vld [vmem:[#allocation2 + $0x6c8] sm:$0xff]
        %v706 = vld [vmem:[#allocation2 + $0x6d0] sm:$0xff]
        %v707 = vld [vmem:[#allocation2 + $0x6d8] sm:$0xff]
        %v708 = vld [vmem:[#allocation2 + $0x6e0] sm:$0xff]
        %v709 = vld [vmem:[#allocation2 + $0x6e8] sm:$0xff]
        %v710 = vld [vmem:[#allocation2 + $0x6f0] sm:$0xff]
        %v711 = vld [vmem:[#allocation2 + $0x6f8] sm:$0xff]
        %v712 = vld [vmem:[%s243] sm:$0xff]
        %v713 = vld [vmem:[%s243 + $0x8] sm:$0xff]
        %v714 = vld [vmem:[%s243 + $0x10] sm:$0xff]
        %v715 = vld [vmem:[%s243 + $0x18] sm:$0xff]
        %v716 = vld [vmem:[%s243 + $0x20] sm:$0xff]
        %v717 = vld [vmem:[%s243 + $0x28] sm:$0xff]
        %v718 = vld [vmem:[%s243 + $0x30] sm:$0xff]
        %v719 = vld [vmem:[%s243 + $0x38] sm:$0xff]
        %v720 = vld [vmem:[%s243 + $0x40] sm:$0xff]
        %v721 = vld [vmem:[%s243 + $0x48] sm:$0xff]
        %v722 = vld [vmem:[%s243 + $0x50] sm:$0xff]
        %v723 = vld [vmem:[%s243 + $0x58] sm:$0xff]
        %v724 = vld [vmem:[%s243 + $0x60] sm:$0xff]
        %v725 = vld [vmem:[%s243 + $0x68] sm:$0xff]
        %v726 = vld [vmem:[%s243 + $0x70] sm:$0xff]
        %v727 = vld [vmem:[%s243 + $0x78] sm:$0xff]
        %v728 = vld [vmem:[%s243 + $0x80] sm:$0xff]
        %v729 = vld [vmem:[%s243 + $0x88] sm:$0xff]
        %v730 = vld [vmem:[%s243 + $0x90] sm:$0xff]
        %v731 = vld [vmem:[%s243 + $0x98] sm:$0xff]
        %v732 = vld [vmem:[%s243 + $0xa0] sm:$0xff]
        %v733 = vld [vmem:[%s243 + $0xa8] sm:$0xff]
        %v734 = vld [vmem:[%s243 + $0xb0] sm:$0xff]
        %v735 = vld [vmem:[%s243 + $0xb8] sm:$0xff]
        %v736 = vld [vmem:[%s243 + $0xc0] sm:$0xff]
        %v737 = vld [vmem:[%s243 + $0xc8] sm:$0xff]
        %v738 = vld [vmem:[%s243 + $0xd0] sm:$0xff]
        %v739 = vld [vmem:[%s243 + $0xd8] sm:$0xff]
        %v740 = vld [vmem:[%s243 + $0xe0] sm:$0xff]
        %v741 = vld [vmem:[%s243 + $0xe8] sm:$0xff]
        %v742 = vld [vmem:[%s243 + $0xf0] sm:$0xff]
        %v743 = vld [vmem:[%s243 + $0xf8] sm:$0xff]
        %v744 = vld [vmem:[%s243 + $0x100] sm:$0xff]
        %v745 = vld [vmem:[%s243 + $0x108] sm:$0xff]
        %v746 = vld [vmem:[%s243 + $0x110] sm:$0xff]
        %v747 = vld [vmem:[%s243 + $0x118] sm:$0xff]
        %v748 = vld [vmem:[%s243 + $0x120] sm:$0xff]
        %v749 = vld [vmem:[%s243 + $0x128] sm:$0xff]
        %v750 = vld [vmem:[%s243 + $0x130] sm:$0xff]
        %v751 = vld [vmem:[%s243 + $0x138] sm:$0xff]
        %v752 = vld [vmem:[%s243 + $0x140] sm:$0xff]
        %v753 = vld [vmem:[%s243 + $0x148] sm:$0xff]
        %v754 = vld [vmem:[%s243 + $0x150] sm:$0xff]
        %v755 = vld [vmem:[%s243 + $0x158] sm:$0xff]
        %v756 = vld [vmem:[%s243 + $0x160] sm:$0xff]
        %v757 = vld [vmem:[%s243 + $0x168] sm:$0xff]
        %v758 = vld [vmem:[%s243 + $0x170] sm:$0xff]
        %v759 = vld [vmem:[%s243 + $0x178] sm:$0xff]
        %v760 = vld [vmem:[%s243 + $0x180] sm:$0xff]
        %v761 = vld [vmem:[%s243 + $0x188] sm:$0xff]
        %v762 = vld [vmem:[%s243 + $0x190] sm:$0xff]
        %v763 = vld [vmem:[%s243 + $0x198] sm:$0xff]
        %v764 = vld [vmem:[%s243 + $0x1a0] sm:$0xff]
        %v765 = vld [vmem:[%s243 + $0x1a8] sm:$0xff]
        %v766 = vld [vmem:[%s243 + $0x1b0] sm:$0xff]
        %v767 = vld [vmem:[%s243 + $0x1b8] sm:$0xff]
        %v768 = vld [vmem:[%s243 + $0x1c0] sm:$0xff]
        %v769 = vld [vmem:[%s243 + $0x1c8] sm:$0xff]
        %v770 = vld [vmem:[%s243 + $0x1d0] sm:$0xff]
        %v771 = vld [vmem:[%s243 + $0x1d8] sm:$0xff]
        %v772 = vld [vmem:[%s243 + $0x1e0] sm:$0xff]
        %v773 = vld [vmem:[%s243 + $0x1e8] sm:$0xff]
        %v774 = vld [vmem:[%s243 + $0x1f0] sm:$0xff]
        %v775 = vld [vmem:[%s243 + $0x1f8] sm:$0xff]
        %v776 = vld [vmem:[%s243 + $0x200] sm:$0xff]
        %v777 = vld [vmem:[%s243 + $0x208] sm:$0xff]
        %v778 = vld [vmem:[%s243 + $0x210] sm:$0xff]
        %v779 = vld [vmem:[%s243 + $0x218] sm:$0xff]
        %v780 = vld [vmem:[%s243 + $0x220] sm:$0xff]
        %v781 = vld [vmem:[%s243 + $0x228] sm:$0xff]
        %v782 = vld [vmem:[%s243 + $0x230] sm:$0xff]
        %v783 = vld [vmem:[%s243 + $0x238] sm:$0xff]
        %v784 = vld [vmem:[%s243 + $0x240] sm:$0xff]
        %v785 = vld [vmem:[%s243 + $0x248] sm:$0xff]
        %v786 = vld [vmem:[%s243 + $0x250] sm:$0xff]
        %v787 = vld [vmem:[%s243 + $0x258] sm:$0xff]
        %v788 = vld [vmem:[%s243 + $0x260] sm:$0xff]
        %v789 = vld [vmem:[%s243 + $0x268] sm:$0xff]
        %v790 = vld [vmem:[%s243 + $0x270] sm:$0xff]
        %v791 = vld [vmem:[%s243 + $0x278] sm:$0xff]
        %v792 = vld [vmem:[%s243 + $0x280] sm:$0xff]
        %v793 = vld [vmem:[%s243 + $0x288] sm:$0xff]
        %v794 = vld [vmem:[%s243 + $0x290] sm:$0xff]
        %v795 = vld [vmem:[%s243 + $0x298] sm:$0xff]
        %v796 = vld [vmem:[%s243 + $0x2a0] sm:$0xff]
        %v797 = vld [vmem:[%s243 + $0x2a8] sm:$0xff]
        %v798 = vld [vmem:[%s243 + $0x2b0] sm:$0xff]
        %v799 = vld [vmem:[%s243 + $0x2b8] sm:$0xff]
        %v800 = vld [vmem:[%s243 + $0x2c0] sm:$0xff]
        %v801 = vld [vmem:[%s243 + $0x2c8] sm:$0xff]
        %v802 = vld [vmem:[%s243 + $0x2d0] sm:$0xff]
        %v803 = vld [vmem:[%s243 + $0x2d8] sm:$0xff]
        %v804 = vld [vmem:[%s243 + $0x2e0] sm:$0xff]
        %v805 = vld [vmem:[%s243 + $0x2e8] sm:$0xff]
        %v806 = vld [vmem:[%s243 + $0x2f0] sm:$0xff]
        %v807 = vld [vmem:[%s243 + $0x2f8] sm:$0xff]
        %v808 = vld [vmem:[%s243 + $0x300] sm:$0xff]
        %v809 = vld [vmem:[%s243 + $0x308] sm:$0xff]
        %v810 = vld [vmem:[%s243 + $0x310] sm:$0xff]
        %v811 = vld [vmem:[%s243 + $0x318] sm:$0xff]
        %v812 = vld [vmem:[%s243 + $0x320] sm:$0xff]
        %v813 = vld [vmem:[%s243 + $0x328] sm:$0xff]
        %v814 = vld [vmem:[%s243 + $0x330] sm:$0xff]
        %v815 = vld [vmem:[%s243 + $0x338] sm:$0xff]
        %v816 = vld [vmem:[%s243 + $0x340] sm:$0xff]
        %v817 = vld [vmem:[%s243 + $0x348] sm:$0xff]
        %v818 = vld [vmem:[%s243 + $0x350] sm:$0xff]
        %v819 = vld [vmem:[%s243 + $0x358] sm:$0xff]
        %v820 = vld [vmem:[%s243 + $0x360] sm:$0xff]
        %v821 = vld [vmem:[%s243 + $0x368] sm:$0xff]
        %v822 = vld [vmem:[%s243 + $0x370] sm:$0xff]
        %v823 = vld [vmem:[%s243 + $0x378] sm:$0xff]
        %v824 = vld [vmem:[%s243 + $0x380] sm:$0xff]
        %v825 = vld [vmem:[%s243 + $0x388] sm:$0xff]
        %v826 = vld [vmem:[%s243 + $0x390] sm:$0xff]
        %v827 = vld [vmem:[%s243 + $0x398] sm:$0xff]
        %v828 = vld [vmem:[%s243 + $0x3a0] sm:$0xff]
        %v829 = vld [vmem:[%s243 + $0x3a8] sm:$0xff]
        %v830 = vld [vmem:[%s243 + $0x3b0] sm:$0xff]
        %v831 = vld [vmem:[%s243 + $0x3b8] sm:$0xff]
        %v832 = vld [vmem:[%s243 + $0x3c0] sm:$0xff]
        %v833 = vld [vmem:[%s243 + $0x3c8] sm:$0xff]
        %v834 = vld [vmem:[%s243 + $0x3d0] sm:$0xff]
        %v835 = vld [vmem:[%s243 + $0x3d8] sm:$0xff]
        %v836 = vld [vmem:[%s243 + $0x3e0] sm:$0xff]
        %v837 = vld [vmem:[%s243 + $0x3e8] sm:$0xff]
        %v838 = vld [vmem:[%s243 + $0x3f0] sm:$0xff]
        %v839 = vld [vmem:[%s243 + $0x3f8] sm:$0xff]
        %v840 = vld [vmem:[%s243 + $0x400] sm:$0xff]
        %v841 = vld [vmem:[%s243 + $0x408] sm:$0xff]
        %v842 = vld [vmem:[%s243 + $0x410] sm:$0xff]
        %v843 = vld [vmem:[%s243 + $0x418] sm:$0xff]
        %v844 = vld [vmem:[%s243 + $0x420] sm:$0xff]
        %v845 = vld [vmem:[%s243 + $0x428] sm:$0xff]
        %v846 = vld [vmem:[%s243 + $0x430] sm:$0xff]
        %v847 = vld [vmem:[%s243 + $0x438] sm:$0xff]
        %v848 = vld [vmem:[%s243 + $0x440] sm:$0xff]
        %v849 = vld [vmem:[%s243 + $0x448] sm:$0xff]
        %v850 = vld [vmem:[%s243 + $0x450] sm:$0xff]
        %v851 = vld [vmem:[%s243 + $0x458] sm:$0xff]
        %v852 = vld [vmem:[%s243 + $0x460] sm:$0xff]
        %v853 = vld [vmem:[%s243 + $0x468] sm:$0xff]
        %v854 = vld [vmem:[%s243 + $0x470] sm:$0xff]
        %v855 = vld [vmem:[%s243 + $0x478] sm:$0xff]
        %v856 = vld [vmem:[%s243 + $0x480] sm:$0xff]
        %v857 = vld [vmem:[%s243 + $0x488] sm:$0xff]
        %v858 = vld [vmem:[%s243 + $0x490] sm:$0xff]
        %v859 = vld [vmem:[%s243 + $0x498] sm:$0xff]
        %v860 = vld [vmem:[%s243 + $0x4a0] sm:$0xff]
        %v861 = vld [vmem:[%s243 + $0x4a8] sm:$0xff]
        %v862 = vld [vmem:[%s243 + $0x4b0] sm:$0xff]
        %v863 = vld [vmem:[%s243 + $0x4b8] sm:$0xff]
        %v864 = vld [vmem:[%s243 + $0x4c0] sm:$0xff]
        %v865 = vld [vmem:[%s243 + $0x4c8] sm:$0xff]
        %v866 = vld [vmem:[%s243 + $0x4d0] sm:$0xff]
        %v867 = vld [vmem:[%s243 + $0x4d8] sm:$0xff]
        %v868 = vld [vmem:[%s243 + $0x4e0] sm:$0xff]
        %v869 = vld [vmem:[%s243 + $0x4e8] sm:$0xff]
        %v870 = vld [vmem:[%s243 + $0x4f0] sm:$0xff]
        %v871 = vld [vmem:[%s243 + $0x4f8] sm:$0xff]
        %v872 = vld [vmem:[%s243 + $0x500] sm:$0xff]
        %v873 = vld [vmem:[%s243 + $0x508] sm:$0xff]
        %v874 = vld [vmem:[%s243 + $0x510] sm:$0xff]
        %v875 = vld [vmem:[%s243 + $0x518] sm:$0xff]
        %v876 = vld [vmem:[%s243 + $0x520] sm:$0xff]
        %v877 = vld [vmem:[%s243 + $0x528] sm:$0xff]
        %v878 = vld [vmem:[%s243 + $0x530] sm:$0xff]
        %v879 = vld [vmem:[%s243 + $0x538] sm:$0xff]
        %v880 = vld [vmem:[%s243 + $0x540] sm:$0xff]
        %v881 = vld [vmem:[%s243 + $0x548] sm:$0xff]
        %v882 = vld [vmem:[%s243 + $0x550] sm:$0xff]
        %v883 = vld [vmem:[%s243 + $0x558] sm:$0xff]
        %v884 = vld [vmem:[%s243 + $0x560] sm:$0xff]
        %v885 = vld [vmem:[%s243 + $0x568] sm:$0xff]
        %v886 = vld [vmem:[%s243 + $0x570] sm:$0xff]
        %v887 = vld [vmem:[%s243 + $0x578] sm:$0xff]
        %v888 = vld [vmem:[%s243 + $0x580] sm:$0xff]
        %v889 = vld [vmem:[%s243 + $0x588] sm:$0xff]
        %v890 = vld [vmem:[%s243 + $0x590] sm:$0xff]
        %v891 = vld [vmem:[%s243 + $0x598] sm:$0xff]
        %v892 = vld [vmem:[%s243 + $0x5a0] sm:$0xff]
        %v893 = vld [vmem:[%s243 + $0x5a8] sm:$0xff]
        %v894 = vld [vmem:[%s243 + $0x5b0] sm:$0xff]
        %v895 = vld [vmem:[%s243 + $0x5b8] sm:$0xff]
        %v896 = vld [vmem:[%s243 + $0x5c0] sm:$0xff]
        %v897 = vld [vmem:[%s243 + $0x5c8] sm:$0xff]
        %v898 = vld [vmem:[%s243 + $0x5d0] sm:$0xff]
        %v899 = vld [vmem:[%s243 + $0x5d8] sm:$0xff]
        %v900 = vld [vmem:[%s243 + $0x5e0] sm:$0xff]
        %v901 = vld [vmem:[%s243 + $0x5e8] sm:$0xff]
        %v902 = vld [vmem:[%s243 + $0x5f0] sm:$0xff]
        %v903 = vld [vmem:[%s243 + $0x5f8] sm:$0xff]
        %v904 = vld [vmem:[%s243 + $0x600] sm:$0xff]
        %v905 = vld [vmem:[%s243 + $0x608] sm:$0xff]
        %v906 = vld [vmem:[%s243 + $0x610] sm:$0xff]
        %v907 = vld [vmem:[%s243 + $0x618] sm:$0xff]
        %v908 = vld [vmem:[%s243 + $0x620] sm:$0xff]
        %v909 = vld [vmem:[%s243 + $0x628] sm:$0xff]
        %v910 = vld [vmem:[%s243 + $0x630] sm:$0xff]
        %v911 = vld [vmem:[%s243 + $0x638] sm:$0xff]
        %v912 = vld [vmem:[%s243 + $0x640] sm:$0xff]
        %v913 = vld [vmem:[%s243 + $0x648] sm:$0xff]
        %v914 = vld [vmem:[%s243 + $0x650] sm:$0xff]
        %v915 = vld [vmem:[%s243 + $0x658] sm:$0xff]
        %v916 = vld [vmem:[%s243 + $0x660] sm:$0xff]
        %v917 = vld [vmem:[%s243 + $0x668] sm:$0xff]
        %v918 = vld [vmem:[%s243 + $0x670] sm:$0xff]
        %v919 = vld [vmem:[%s243 + $0x678] sm:$0xff]
        %v920 = vld [vmem:[%s243 + $0x680] sm:$0xff]
        %v921 = vld [vmem:[%s243 + $0x688] sm:$0xff]
        %v922 = vld [vmem:[%s243 + $0x690] sm:$0xff]
        %v923 = vld [vmem:[%s243 + $0x698] sm:$0xff]
        %v924 = vld [vmem:[%s243 + $0x6a0] sm:$0xff]
        %v925 = vld [vmem:[%s243 + $0x6a8] sm:$0xff]
        %v926 = vld [vmem:[%s243 + $0x6b0] sm:$0xff]
        %v927 = vld [vmem:[%s243 + $0x6b8] sm:$0xff]
        %v928 = vld [vmem:[%s243 + $0x6c0] sm:$0xff]
        %v929 = vld [vmem:[%s243 + $0x6c8] sm:$0xff]
        %v930 = vld [vmem:[%s243 + $0x6d0] sm:$0xff]
        %v931 = vld [vmem:[%s243 + $0x6d8] sm:$0xff]
        %v932 = vld [vmem:[%s243 + $0x6e0] sm:$0xff]
        %v933 = vld [vmem:[%s243 + $0x6e8] sm:$0xff]
        %v934 = vld [vmem:[%s243 + $0x6f0] sm:$0xff]
        %v935 = vld [vmem:[%s243 + $0x6f8] sm:$0xff]
        %v936 = vld [vmem:[%s253] sm:$0xf]
        %v937 = vld [vmem:[%s253 + $0x4] sm:$0xf]
        %v938 = vld [vmem:[%s253 + $0x8] sm:$0xf]
        %v939 = vld [vmem:[%s253 + $0xc] sm:$0xf]
        %v940 = vld [vmem:[%s253 + $0x10] sm:$0xf]
        %v941 = vld [vmem:[%s253 + $0x14] sm:$0xf]
        %v942 = vld [vmem:[%s253 + $0x18] sm:$0xf]
        %v943 = vld [vmem:[%s253 + $0x1c] sm:$0xf]
        %v944 = vld [vmem:[%s253 + $0x20] sm:$0xf]
        %v945 = vld [vmem:[%s253 + $0x24] sm:$0xf]
        %v946 = vld [vmem:[%s253 + $0x28] sm:$0xf]
        %v947 = vld [vmem:[%s253 + $0x2c] sm:$0xf]
        %v948 = vld [vmem:[%s253 + $0x30] sm:$0xf]
        %v949 = vld [vmem:[%s253 + $0x34] sm:$0xf]
        %v950 = vld [vmem:[%s253 + $0x38] sm:$0xf]
        %v951 = vld [vmem:[%s253 + $0x3c] sm:$0xf]
        %v952 = vld [vmem:[%s253 + $0x40] sm:$0xf]
        %v953 = vld [vmem:[%s253 + $0x44] sm:$0xf]
        %v954 = vld [vmem:[%s253 + $0x48] sm:$0x3]
        %v1179 = vunpack.c.l.b16 %v712
        %v1180 = vunpack.c.h.b16 %v712
        %v1181 = vunpack.c.l.b16 %v713
        %v1182 = vunpack.c.h.b16 %v713
        %v1183 = vunpack.c.l.b16 %v714
        %v1184 = vunpack.c.h.b16 %v714
        %v1185 = vunpack.c.l.b16 %v715
        %v1186 = vunpack.c.h.b16 %v715
        %v1187 = vunpack.c.l.b16 %v716
        %v1188 = vunpack.c.h.b16 %v716
        %v1189 = vunpack.c.l.b16 %v717
        %v1190 = vunpack.c.h.b16 %v717
        %v1191 = vunpack.c.l.b16 %v718
        %v1192 = vunpack.c.h.b16 %v718
        %v1193 = vunpack.c.l.b16 %v719
        %v1194 = vunpack.c.h.b16 %v719
        %v1195 = vunpack.c.l.b16 %v720
        %v1196 = vunpack.c.h.b16 %v720
        %v1197 = vunpack.c.l.b16 %v721
        %v1198 = vunpack.c.h.b16 %v721
        %v1199 = vunpack.c.l.b16 %v722
        %v1200 = vunpack.c.h.b16 %v722
        %v1201 = vunpack.c.l.b16 %v723
        %v1202 = vunpack.c.h.b16 %v723
        %v1203 = vunpack.c.l.b16 %v724
        %v1204 = vunpack.c.h.b16 %v724
        %v1205 = vunpack.c.l.b16 %v725
        %v1206 = vunpack.c.h.b16 %v725
        %v1207 = vunpack.c.l.b16 %v726
        %v1208 = vunpack.c.h.b16 %v726
        %v1209 = vunpack.c.l.b16 %v727
        %v1210 = vunpack.c.h.b16 %v727
        %v1211 = vunpack.c.l.b16 %v728
        %v1212 = vunpack.c.h.b16 %v728
        %v1213 = vunpack.c.l.b16 %v729
        %v1214 = vunpack.c.h.b16 %v729
        %v1215 = vunpack.c.l.b16 %v730
        %v1216 = vunpack.c.h.b16 %v730
        %v1217 = vunpack.c.l.b16 %v731
        %v1218 = vunpack.c.h.b16 %v731
        %v1219 = vunpack.c.l.b16 %v732
        %v1220 = vunpack.c.h.b16 %v732
        %v1221 = vunpack.c.l.b16 %v733
        %v1222 = vunpack.c.h.b16 %v733
        %v1223 = vunpack.c.l.b16 %v734
        %v1224 = vunpack.c.h.b16 %v734
        %v1225 = vunpack.c.l.b16 %v735
        %v1226 = vunpack.c.h.b16 %v735
        %v1227 = vunpack.c.l.b16 %v736
        %v1228 = vunpack.c.h.b16 %v736
        %v1229 = vunpack.c.l.b16 %v737
        %v1230 = vunpack.c.h.b16 %v737
        %v1231 = vunpack.c.l.b16 %v738
        %v1232 = vunpack.c.h.b16 %v738
        %v1233 = vunpack.c.l.b16 %v739
        %v1234 = vunpack.c.h.b16 %v739
        %v1235 = vunpack.c.l.b16 %v740
        %v1236 = vunpack.c.h.b16 %v740
        %v1237 = vunpack.c.l.b16 %v741
        %v1238 = vunpack.c.h.b16 %v741
        %v1239 = vunpack.c.l.b16 %v742
        %v1240 = vunpack.c.h.b16 %v742
        %v1241 = vunpack.c.l.b16 %v743
        %v1242 = vunpack.c.h.b16 %v743
        %v1243 = vunpack.c.l.b16 %v744
        %v1244 = vunpack.c.h.b16 %v744
        %v1245 = vunpack.c.l.b16 %v745
        %v1246 = vunpack.c.h.b16 %v745
        %v1247 = vunpack.c.l.b16 %v746
        %v1248 = vunpack.c.h.b16 %v746
        %v1249 = vunpack.c.l.b16 %v747
        %v1250 = vunpack.c.h.b16 %v747
        %v1251 = vunpack.c.l.b16 %v748
        %v1252 = vunpack.c.h.b16 %v748
        %v1253 = vunpack.c.l.b16 %v749
        %v1254 = vunpack.c.h.b16 %v749
        %v1255 = vunpack.c.l.b16 %v750
        %v1256 = vunpack.c.h.b16 %v750
        %v1257 = vunpack.c.l.b16 %v751
        %v1258 = vunpack.c.h.b16 %v751
        %v1259 = vunpack.c.l.b16 %v752
        %v1260 = vunpack.c.h.b16 %v752
        %v1261 = vunpack.c.l.b16 %v753
        %v1262 = vunpack.c.h.b16 %v753
        %v1263 = vunpack.c.l.b16 %v754
        %v1264 = vunpack.c.h.b16 %v754
        %v1265 = vunpack.c.l.b16 %v755
        %v1266 = vunpack.c.h.b16 %v755
        %v1267 = vunpack.c.l.b16 %v756
        %v1268 = vunpack.c.h.b16 %v756
        %v1269 = vunpack.c.l.b16 %v757
        %v1270 = vunpack.c.h.b16 %v757
        %v1271 = vunpack.c.l.b16 %v758
        %v1272 = vunpack.c.h.b16 %v758
        %v1273 = vunpack.c.l.b16 %v759
        %v1274 = vunpack.c.h.b16 %v759
        %v1275 = vunpack.c.l.b16 %v760
        %v1276 = vunpack.c.h.b16 %v760
        %v1277 = vunpack.c.l.b16 %v761
        %v1278 = vunpack.c.h.b16 %v761
        %v1279 = vunpack.c.l.b16 %v762
        %v1280 = vunpack.c.h.b16 %v762
        %v1281 = vunpack.c.l.b16 %v763
        %v1282 = vunpack.c.h.b16 %v763
        %v1283 = vunpack.c.l.b16 %v764
        %v1284 = vunpack.c.h.b16 %v764
        %v1285 = vunpack.c.l.b16 %v765
        %v1286 = vunpack.c.h.b16 %v765
        %v1287 = vunpack.c.l.b16 %v766
        %v1288 = vunpack.c.h.b16 %v766
        %v1289 = vunpack.c.l.b16 %v767
        %v1290 = vunpack.c.h.b16 %v767
        %v1291 = vunpack.c.l.b16 %v768
        %v1292 = vunpack.c.h.b16 %v768
        %v1293 = vunpack.c.l.b16 %v769
        %v1294 = vunpack.c.h.b16 %v769
        %v1295 = vunpack.c.l.b16 %v770
        %v1296 = vunpack.c.h.b16 %v770
        %v1297 = vunpack.c.l.b16 %v771
        %v1298 = vunpack.c.h.b16 %v771
        %v1299 = vunpack.c.l.b16 %v772
        %v1300 = vunpack.c.h.b16 %v772
        %v1301 = vunpack.c.l.b16 %v773
        %v1302 = vunpack.c.h.b16 %v773
        %v1303 = vunpack.c.l.b16 %v774
        %v1304 = vunpack.c.h.b16 %v774
        %v1305 = vunpack.c.l.b16 %v775
        %v1306 = vunpack.c.h.b16 %v775
        %v1307 = vunpack.c.l.b16 %v776
        %v1308 = vunpack.c.h.b16 %v776
        %v1309 = vunpack.c.l.b16 %v777
        %v1310 = vunpack.c.h.b16 %v777
        %v1311 = vunpack.c.l.b16 %v778
        %v1312 = vunpack.c.h.b16 %v778
        %v1313 = vunpack.c.l.b16 %v779
        %v1314 = vunpack.c.h.b16 %v779
        %v1315 = vunpack.c.l.b16 %v780
        %v1316 = vunpack.c.h.b16 %v780
        %v1317 = vunpack.c.l.b16 %v781
        %v1318 = vunpack.c.h.b16 %v781
        %v1319 = vunpack.c.l.b16 %v782
        %v1320 = vunpack.c.h.b16 %v782
        %v1321 = vunpack.c.l.b16 %v783
        %v1322 = vunpack.c.h.b16 %v783
        %v1323 = vunpack.c.l.b16 %v784
        %v1324 = vunpack.c.h.b16 %v784
        %v1325 = vunpack.c.l.b16 %v785
        %v1326 = vunpack.c.h.b16 %v785
        %v1327 = vunpack.c.l.b16 %v786
        %v1328 = vunpack.c.h.b16 %v786
        %v1329 = vunpack.c.l.b16 %v787
        %v1330 = vunpack.c.h.b16 %v787
        %v1331 = vunpack.c.l.b16 %v788
        %v1332 = vunpack.c.h.b16 %v788
        %v1333 = vunpack.c.l.b16 %v789
        %v1334 = vunpack.c.h.b16 %v789
        %v1335 = vunpack.c.l.b16 %v790
        %v1336 = vunpack.c.h.b16 %v790
        %v1337 = vunpack.c.l.b16 %v791
        %v1338 = vunpack.c.h.b16 %v791
        %v1339 = vunpack.c.l.b16 %v792
        %v1340 = vunpack.c.h.b16 %v792
        %v1341 = vunpack.c.l.b16 %v793
        %v1342 = vunpack.c.h.b16 %v793
        %v1343 = vunpack.c.l.b16 %v794
        %v1344 = vunpack.c.h.b16 %v794
        %v1345 = vunpack.c.l.b16 %v795
        %v1346 = vunpack.c.h.b16 %v795
        %v1347 = vunpack.c.l.b16 %v796
        %v1348 = vunpack.c.h.b16 %v796
        %v1349 = vunpack.c.l.b16 %v797
        %v1350 = vunpack.c.h.b16 %v797
        %v1351 = vunpack.c.l.b16 %v798
        %v1352 = vunpack.c.h.b16 %v798
        %v1353 = vunpack.c.l.b16 %v799
        %v1354 = vunpack.c.h.b16 %v799
        %v1355 = vunpack.c.l.b16 %v800
        %v1356 = vunpack.c.h.b16 %v800
        %v1357 = vunpack.c.l.b16 %v801
        %v1358 = vunpack.c.h.b16 %v801
        %v1359 = vunpack.c.l.b16 %v802
        %v1360 = vunpack.c.h.b16 %v802
        %v1361 = vunpack.c.l.b16 %v803
        %v1362 = vunpack.c.h.b16 %v803
        %v1363 = vunpack.c.l.b16 %v804
        %v1364 = vunpack.c.h.b16 %v804
        %v1365 = vunpack.c.l.b16 %v805
        %v1366 = vunpack.c.h.b16 %v805
        %v1367 = vunpack.c.l.b16 %v806
        %v1368 = vunpack.c.h.b16 %v806
        %v1369 = vunpack.c.l.b16 %v807
        %v1370 = vunpack.c.h.b16 %v807
        %v1371 = vunpack.c.l.b16 %v808
        %v1372 = vunpack.c.h.b16 %v808
        %v1373 = vunpack.c.l.b16 %v809
        %v1374 = vunpack.c.h.b16 %v809
        %v1375 = vunpack.c.l.b16 %v810
        %v1376 = vunpack.c.h.b16 %v810
        %v1377 = vunpack.c.l.b16 %v811
        %v1378 = vunpack.c.h.b16 %v811
        %v1379 = vunpack.c.l.b16 %v812
        %v1380 = vunpack.c.h.b16 %v812
        %v1381 = vunpack.c.l.b16 %v813
        %v1382 = vunpack.c.h.b16 %v813
        %v1383 = vunpack.c.l.b16 %v814
        %v1384 = vunpack.c.h.b16 %v814
        %v1385 = vunpack.c.l.b16 %v815
        %v1386 = vunpack.c.h.b16 %v815
        %v1387 = vunpack.c.l.b16 %v816
        %v1388 = vunpack.c.h.b16 %v816
        %v1389 = vunpack.c.l.b16 %v817
        %v1390 = vunpack.c.h.b16 %v817
        %v1391 = vunpack.c.l.b16 %v818
        %v1392 = vunpack.c.h.b16 %v818
        %v1393 = vunpack.c.l.b16 %v819
        %v1394 = vunpack.c.h.b16 %v819
        %v1395 = vunpack.c.l.b16 %v820
        %v1396 = vunpack.c.h.b16 %v820
        %v1397 = vunpack.c.l.b16 %v821
        %v1398 = vunpack.c.h.b16 %v821
        %v1399 = vunpack.c.l.b16 %v822
        %v1400 = vunpack.c.h.b16 %v822
        %v1401 = vunpack.c.l.b16 %v823
        %v1402 = vunpack.c.h.b16 %v823
        %v1403 = vunpack.c.l.b16 %v824
        %v1404 = vunpack.c.h.b16 %v824
        %v1405 = vunpack.c.l.b16 %v825
        %v1406 = vunpack.c.h.b16 %v825
        %v1407 = vunpack.c.l.b16 %v826
        %v1408 = vunpack.c.h.b16 %v826
        %v1409 = vunpack.c.l.b16 %v827
        %v1410 = vunpack.c.h.b16 %v827
        %v1411 = vunpack.c.l.b16 %v828
        %v1412 = vunpack.c.h.b16 %v828
        %v1413 = vunpack.c.l.b16 %v829
        %v1414 = vunpack.c.h.b16 %v829
        %v1415 = vunpack.c.l.b16 %v830
        %v1416 = vunpack.c.h.b16 %v830
        %v1417 = vunpack.c.l.b16 %v831
        %v1418 = vunpack.c.h.b16 %v831
        %v1419 = vunpack.c.l.b16 %v832
        %v1420 = vunpack.c.h.b16 %v832
        %v1421 = vunpack.c.l.b16 %v833
        %v1422 = vunpack.c.h.b16 %v833
        %v1423 = vunpack.c.l.b16 %v834
        %v1424 = vunpack.c.h.b16 %v834
        %v1425 = vunpack.c.l.b16 %v835
        %v1426 = vunpack.c.h.b16 %v835
        %v1427 = vunpack.c.l.b16 %v836
        %v1428 = vunpack.c.h.b16 %v836
        %v1429 = vunpack.c.l.b16 %v837
        %v1430 = vunpack.c.h.b16 %v837
        %v1431 = vunpack.c.l.b16 %v838
        %v1432 = vunpack.c.h.b16 %v838
        %v1433 = vunpack.c.l.b16 %v839
        %v1434 = vunpack.c.h.b16 %v839
        %v1435 = vunpack.c.l.b16 %v840
        %v1436 = vunpack.c.h.b16 %v840
        %v1437 = vunpack.c.l.b16 %v841
        %v1438 = vunpack.c.h.b16 %v841
        %v1439 = vunpack.c.l.b16 %v842
        %v1440 = vunpack.c.h.b16 %v842
        %v1441 = vunpack.c.l.b16 %v843
        %v1442 = vunpack.c.h.b16 %v843
        %v1443 = vunpack.c.l.b16 %v844
        %v1444 = vunpack.c.h.b16 %v844
        %v1445 = vunpack.c.l.b16 %v845
        %v1446 = vunpack.c.h.b16 %v845
        %v1447 = vunpack.c.l.b16 %v846
        %v1448 = vunpack.c.h.b16 %v846
        %v1449 = vunpack.c.l.b16 %v847
        %v1450 = vunpack.c.h.b16 %v847
        %v1451 = vunpack.c.l.b16 %v848
        %v1452 = vunpack.c.h.b16 %v848
        %v1453 = vunpack.c.l.b16 %v849
        %v1454 = vunpack.c.h.b16 %v849
        %v1455 = vunpack.c.l.b16 %v850
        %v1456 = vunpack.c.h.b16 %v850
        %v1457 = vunpack.c.l.b16 %v851
        %v1458 = vunpack.c.h.b16 %v851
        %v1459 = vunpack.c.l.b16 %v852
        %v1460 = vunpack.c.h.b16 %v852
        %v1461 = vunpack.c.l.b16 %v853
        %v1462 = vunpack.c.h.b16 %v853
        %v1463 = vunpack.c.l.b16 %v854
        %v1464 = vunpack.c.h.b16 %v854
        %v1465 = vunpack.c.l.b16 %v855
        %v1466 = vunpack.c.h.b16 %v855
        %v1467 = vunpack.c.l.b16 %v856
        %v1468 = vunpack.c.h.b16 %v856
        %v1469 = vunpack.c.l.b16 %v857
        %v1470 = vunpack.c.h.b16 %v857
        %v1471 = vunpack.c.l.b16 %v858
        %v1472 = vunpack.c.h.b16 %v858
        %v1473 = vunpack.c.l.b16 %v859
        %v1474 = vunpack.c.h.b16 %v859
        %v1475 = vunpack.c.l.b16 %v860
        %v1476 = vunpack.c.h.b16 %v860
        %v1477 = vunpack.c.l.b16 %v861
        %v1478 = vunpack.c.h.b16 %v861
        %v1479 = vunpack.c.l.b16 %v862
        %v1480 = vunpack.c.h.b16 %v862
        %v1481 = vunpack.c.l.b16 %v863
        %v1482 = vunpack.c.h.b16 %v863
        %v1483 = vunpack.c.l.b16 %v864
        %v1484 = vunpack.c.h.b16 %v864
        %v1485 = vunpack.c.l.b16 %v865
        %v1486 = vunpack.c.h.b16 %v865
        %v1487 = vunpack.c.l.b16 %v866
        %v1488 = vunpack.c.h.b16 %v866
        %v1489 = vunpack.c.l.b16 %v867
        %v1490 = vunpack.c.h.b16 %v867
        %v1491 = vunpack.c.l.b16 %v868
        %v1492 = vunpack.c.h.b16 %v868
        %v1493 = vunpack.c.l.b16 %v869
        %v1494 = vunpack.c.h.b16 %v869
        %v1495 = vunpack.c.l.b16 %v870
        %v1496 = vunpack.c.h.b16 %v870
        %v1497 = vunpack.c.l.b16 %v871
        %v1498 = vunpack.c.h.b16 %v871
        %v1499 = vunpack.c.l.b16 %v872
        %v1500 = vunpack.c.h.b16 %v872
        %v1501 = vunpack.c.l.b16 %v873
        %v1502 = vunpack.c.h.b16 %v873
        %v1503 = vunpack.c.l.b16 %v874
        %v1504 = vunpack.c.h.b16 %v874
        %v1505 = vunpack.c.l.b16 %v875
        %v1506 = vunpack.c.h.b16 %v875
        %v1507 = vunpack.c.l.b16 %v876
        %v1508 = vunpack.c.h.b16 %v876
        %v1509 = vunpack.c.l.b16 %v877
        %v1510 = vunpack.c.h.b16 %v877
        %v1511 = vunpack.c.l.b16 %v878
        %v1512 = vunpack.c.h.b16 %v878
        %v1513 = vunpack.c.l.b16 %v879
        %v1514 = vunpack.c.h.b16 %v879
        %v1515 = vunpack.c.l.b16 %v880
        %v1516 = vunpack.c.h.b16 %v880
        %v1517 = vunpack.c.l.b16 %v881
        %v1518 = vunpack.c.h.b16 %v881
        %v1519 = vunpack.c.l.b16 %v882
        %v1520 = vunpack.c.h.b16 %v882
        %v1521 = vunpack.c.l.b16 %v883
        %v1522 = vunpack.c.h.b16 %v883
        %v1523 = vunpack.c.l.b16 %v884
        %v1524 = vunpack.c.h.b16 %v884
        %v1525 = vunpack.c.l.b16 %v885
        %v1526 = vunpack.c.h.b16 %v885
        %v1527 = vunpack.c.l.b16 %v886
        %v1528 = vunpack.c.h.b16 %v886
        %v1529 = vunpack.c.l.b16 %v887
        %v1530 = vunpack.c.h.b16 %v887
        %v1531 = vunpack.c.l.b16 %v888
        %v1532 = vunpack.c.h.b16 %v888
        %v1533 = vunpack.c.l.b16 %v889
        %v1534 = vunpack.c.h.b16 %v889
        %v1535 = vunpack.c.l.b16 %v890
        %v1536 = vunpack.c.h.b16 %v890
        %v1537 = vunpack.c.l.b16 %v891
        %v1538 = vunpack.c.h.b16 %v891
        %v1539 = vunpack.c.l.b16 %v892
        %v1540 = vunpack.c.h.b16 %v892
        %v1541 = vunpack.c.l.b16 %v893
        %v1542 = vunpack.c.h.b16 %v893
        %v1543 = vunpack.c.l.b16 %v894
        %v1544 = vunpack.c.h.b16 %v894
        %v1545 = vunpack.c.l.b16 %v895
        %v1546 = vunpack.c.h.b16 %v895
        %v1547 = vunpack.c.l.b16 %v896
        %v1548 = vunpack.c.h.b16 %v896
        %v1549 = vunpack.c.l.b16 %v897
        %v1550 = vunpack.c.h.b16 %v897
        %v1551 = vunpack.c.l.b16 %v898
        %v1552 = vunpack.c.h.b16 %v898
        %v1553 = vunpack.c.l.b16 %v899
        %v1554 = vunpack.c.h.b16 %v899
        %v1555 = vunpack.c.l.b16 %v900
        %v1556 = vunpack.c.h.b16 %v900
        %v1557 = vunpack.c.l.b16 %v901
        %v1558 = vunpack.c.h.b16 %v901
        %v1559 = vunpack.c.l.b16 %v902
        %v1560 = vunpack.c.h.b16 %v902
        %v1561 = vunpack.c.l.b16 %v903
        %v1562 = vunpack.c.h.b16 %v903
        %v1563 = vunpack.c.l.b16 %v904
        %v1564 = vunpack.c.h.b16 %v904
        %v1565 = vunpack.c.l.b16 %v905
        %v1566 = vunpack.c.h.b16 %v905
        %v1567 = vunpack.c.l.b16 %v906
        %v1568 = vunpack.c.h.b16 %v906
        %v1569 = vunpack.c.l.b16 %v907
        %v1570 = vunpack.c.h.b16 %v907
        %v1571 = vunpack.c.l.b16 %v908
        %v1572 = vunpack.c.h.b16 %v908
        %v1573 = vunpack.c.l.b16 %v909
        %v1574 = vunpack.c.h.b16 %v909
        %v1575 = vunpack.c.l.b16 %v910
        %v1576 = vunpack.c.h.b16 %v910
        %v1577 = vunpack.c.l.b16 %v911
        %v1578 = vunpack.c.h.b16 %v911
        %v1579 = vunpack.c.l.b16 %v912
        %v1580 = vunpack.c.h.b16 %v912
        %v1581 = vunpack.c.l.b16 %v913
        %v1582 = vunpack.c.h.b16 %v913
        %v1583 = vunpack.c.l.b16 %v914
        %v1584 = vunpack.c.h.b16 %v914
        %v1585 = vunpack.c.l.b16 %v915
        %v1586 = vunpack.c.h.b16 %v915
        %v1587 = vunpack.c.l.b16 %v916
        %v1588 = vunpack.c.h.b16 %v916
        %v1589 = vunpack.c.l.b16 %v917
        %v1590 = vunpack.c.h.b16 %v917
        %v1591 = vunpack.c.l.b16 %v918
        %v1592 = vunpack.c.h.b16 %v918
        %v1593 = vunpack.c.l.b16 %v919
        %v1594 = vunpack.c.h.b16 %v919
        %v1595 = vunpack.c.l.b16 %v920
        %v1596 = vunpack.c.h.b16 %v920
        %v1597 = vunpack.c.l.b16 %v921
        %v1598 = vunpack.c.h.b16 %v921
        %v1599 = vunpack.c.l.b16 %v922
        %v1600 = vunpack.c.h.b16 %v922
        %v1601 = vunpack.c.l.b16 %v923
        %v1602 = vunpack.c.h.b16 %v923
        %v1603 = vunpack.c.l.b16 %v924
        %v1604 = vunpack.c.h.b16 %v924
        %v1605 = vunpack.c.l.b16 %v925
        %v1606 = vunpack.c.h.b16 %v925
        %v1607 = vunpack.c.l.b16 %v926
        %v1608 = vunpack.c.h.b16 %v926
        %v1609 = vunpack.c.l.b16 %v927
        %v1610 = vunpack.c.h.b16 %v927
        %v1611 = vunpack.c.l.b16 %v928
        %v1612 = vunpack.c.h.b16 %v928
        %v1613 = vunpack.c.l.b16 %v929
        %v1614 = vunpack.c.h.b16 %v929
        %v1615 = vunpack.c.l.b16 %v930
        %v1616 = vunpack.c.h.b16 %v930
        %v1617 = vunpack.c.l.b16 %v931
        %v1618 = vunpack.c.h.b16 %v931
        %v1619 = vunpack.c.l.b16 %v932
        %v1620 = vunpack.c.h.b16 %v932
        %v1621 = vunpack.c.l.b16 %v933
        %v1622 = vunpack.c.h.b16 %v933
        %v1623 = vunpack.c.l.b16 %v934
        %v1624 = vunpack.c.h.b16 %v934
        %v1625 = vunpack.c.l.b16 %v935
        %v1626 = vunpack.c.h.b16 %v935
        %v1627 = vpack.c.b16 %v1181, %v1179
        %v1628 = vpack.c.b16 %v1182, %v1180
        %v1629 = vpack.c.b16 %v1185, %v1183
        %v1630 = vpack.c.b16 %v1186, %v1184
        %v1631 = vpack.c.b16 %v1189, %v1187
        %v1632 = vpack.c.b16 %v1190, %v1188
        %v1633 = vpack.c.b16 %v1193, %v1191
        %v1634 = vpack.c.b16 %v1194, %v1192
        %v1635 = vpack.c.b16 %v1197, %v1195
        %v1636 = vpack.c.b16 %v1198, %v1196
        %v1637 = vpack.c.b16 %v1201, %v1199
        %v1638 = vpack.c.b16 %v1202, %v1200
        %v1639 = vpack.c.b16 %v1205, %v1203
        %v1640 = vpack.c.b16 %v1206, %v1204
        %v1641 = vpack.c.b16 %v1209, %v1207
        %v1642 = vpack.c.b16 %v1210, %v1208
        %v1643 = vpack.c.b16 %v1213, %v1211
        %v1644 = vpack.c.b16 %v1214, %v1212
        %v1645 = vpack.c.b16 %v1217, %v1215
        %v1646 = vpack.c.b16 %v1218, %v1216
        %v1647 = vpack.c.b16 %v1221, %v1219
        %v1648 = vpack.c.b16 %v1222, %v1220
        %v1649 = vpack.c.b16 %v1225, %v1223
        %v1650 = vpack.c.b16 %v1226, %v1224
        %v1651 = vpack.c.b16 %v1229, %v1227
        %v1652 = vpack.c.b16 %v1230, %v1228
        %v1653 = vpack.c.b16 %v1233, %v1231
        %v1654 = vpack.c.b16 %v1234, %v1232
        %v1655 = vpack.c.b16 %v1237, %v1235
        %v1656 = vpack.c.b16 %v1238, %v1236
        %v1657 = vpack.c.b16 %v1241, %v1239
        %v1658 = vpack.c.b16 %v1242, %v1240
        %v1659 = vpack.c.b16 %v1245, %v1243
        %v1660 = vpack.c.b16 %v1246, %v1244
        %v1661 = vpack.c.b16 %v1249, %v1247
        %v1662 = vpack.c.b16 %v1250, %v1248
        %v1663 = vpack.c.b16 %v1253, %v1251
        %v1664 = vpack.c.b16 %v1254, %v1252
        %v1665 = vpack.c.b16 %v1257, %v1255
        %v1666 = vpack.c.b16 %v1258, %v1256
        %v1667 = vpack.c.b16 %v1261, %v1259
        %v1668 = vpack.c.b16 %v1262, %v1260
        %v1669 = vpack.c.b16 %v1265, %v1263
        %v1670 = vpack.c.b16 %v1266, %v1264
        %v1671 = vpack.c.b16 %v1269, %v1267
        %v1672 = vpack.c.b16 %v1270, %v1268
        %v1673 = vpack.c.b16 %v1273, %v1271
        %v1674 = vpack.c.b16 %v1274, %v1272
        %v1675 = vpack.c.b16 %v1277, %v1275
        %v1676 = vpack.c.b16 %v1278, %v1276
        %v1677 = vpack.c.b16 %v1281, %v1279
        %v1678 = vpack.c.b16 %v1282, %v1280
        %v1679 = vpack.c.b16 %v1285, %v1283
        %v1680 = vpack.c.b16 %v1286, %v1284
        %v1681 = vpack.c.b16 %v1289, %v1287
        %v1682 = vpack.c.b16 %v1290, %v1288
        %v1683 = vpack.c.b16 %v1293, %v1291
        %v1684 = vpack.c.b16 %v1294, %v1292
        %v1685 = vpack.c.b16 %v1297, %v1295
        %v1686 = vpack.c.b16 %v1298, %v1296
        %v1687 = vpack.c.b16 %v1301, %v1299
        %v1688 = vpack.c.b16 %v1302, %v1300
        %v1689 = vpack.c.b16 %v1305, %v1303
        %v1690 = vpack.c.b16 %v1306, %v1304
        %v1691 = vpack.c.b16 %v1309, %v1307
        %v1692 = vpack.c.b16 %v1310, %v1308
        %v1693 = vpack.c.b16 %v1313, %v1311
        %v1694 = vpack.c.b16 %v1314, %v1312
        %v1695 = vpack.c.b16 %v1317, %v1315
        %v1696 = vpack.c.b16 %v1318, %v1316
        %v1697 = vpack.c.b16 %v1321, %v1319
        %v1698 = vpack.c.b16 %v1322, %v1320
        %v1699 = vpack.c.b16 %v1325, %v1323
        %v1700 = vpack.c.b16 %v1326, %v1324
        %v1701 = vpack.c.b16 %v1329, %v1327
        %v1702 = vpack.c.b16 %v1330, %v1328
        %v1703 = vpack.c.b16 %v1333, %v1331
        %v1704 = vpack.c.b16 %v1334, %v1332
        %v1705 = vpack.c.b16 %v1337, %v1335
        %v1706 = vpack.c.b16 %v1338, %v1336
        %v1707 = vpack.c.b16 %v1341, %v1339
        %v1708 = vpack.c.b16 %v1342, %v1340
        %v1709 = vpack.c.b16 %v1345, %v1343
        %v1710 = vpack.c.b16 %v1346, %v1344
        %v1711 = vpack.c.b16 %v1349, %v1347
        %v1712 = vpack.c.b16 %v1350, %v1348
        %v1713 = vpack.c.b16 %v1353, %v1351
        %v1714 = vpack.c.b16 %v1354, %v1352
        %v1715 = vpack.c.b16 %v1357, %v1355
        %v1716 = vpack.c.b16 %v1358, %v1356
        %v1717 = vpack.c.b16 %v1361, %v1359
        %v1718 = vpack.c.b16 %v1362, %v1360
        %v1719 = vpack.c.b16 %v1365, %v1363
        %v1720 = vpack.c.b16 %v1366, %v1364
        %v1721 = vpack.c.b16 %v1369, %v1367
        %v1722 = vpack.c.b16 %v1370, %v1368
        %v1723 = vpack.c.b16 %v1373, %v1371
        %v1724 = vpack.c.b16 %v1374, %v1372
        %v1725 = vpack.c.b16 %v1377, %v1375
        %v1726 = vpack.c.b16 %v1378, %v1376
        %v1727 = vpack.c.b16 %v1381, %v1379
        %v1728 = vpack.c.b16 %v1382, %v1380
        %v1729 = vpack.c.b16 %v1385, %v1383
        %v1730 = vpack.c.b16 %v1386, %v1384
        %v1731 = vpack.c.b16 %v1389, %v1387
        %v1732 = vpack.c.b16 %v1390, %v1388
        %v1733 = vpack.c.b16 %v1393, %v1391
        %v1734 = vpack.c.b16 %v1394, %v1392
        %v1735 = vpack.c.b16 %v1397, %v1395
        %v1736 = vpack.c.b16 %v1398, %v1396
        %v1737 = vpack.c.b16 %v1401, %v1399
        %v1738 = vpack.c.b16 %v1402, %v1400
        %v1739 = vpack.c.b16 %v1405, %v1403
        %v1740 = vpack.c.b16 %v1406, %v1404
        %v1741 = vpack.c.b16 %v1409, %v1407
        %v1742 = vpack.c.b16 %v1410, %v1408
        %v1743 = vpack.c.b16 %v1413, %v1411
        %v1744 = vpack.c.b16 %v1414, %v1412
        %v1745 = vpack.c.b16 %v1417, %v1415
        %v1746 = vpack.c.b16 %v1418, %v1416
        %v1747 = vpack.c.b16 %v1421, %v1419
        %v1748 = vpack.c.b16 %v1422, %v1420
        %v1749 = vpack.c.b16 %v1425, %v1423
        %v1750 = vpack.c.b16 %v1426, %v1424
        %v1751 = vpack.c.b16 %v1429, %v1427
        %v1752 = vpack.c.b16 %v1430, %v1428
        %v1753 = vpack.c.b16 %v1433, %v1431
        %v1754 = vpack.c.b16 %v1434, %v1432
        %v1755 = vpack.c.b16 %v1437, %v1435
        %v1756 = vpack.c.b16 %v1438, %v1436
        %v1757 = vpack.c.b16 %v1441, %v1439
        %v1758 = vpack.c.b16 %v1442, %v1440
        %v1759 = vpack.c.b16 %v1445, %v1443
        %v1760 = vpack.c.b16 %v1446, %v1444
        %v1761 = vpack.c.b16 %v1449, %v1447
        %v1762 = vpack.c.b16 %v1450, %v1448
        %v1763 = vpack.c.b16 %v1453, %v1451
        %v1764 = vpack.c.b16 %v1454, %v1452
        %v1765 = vpack.c.b16 %v1457, %v1455
        %v1766 = vpack.c.b16 %v1458, %v1456
        %v1767 = vpack.c.b16 %v1461, %v1459
        %v1768 = vpack.c.b16 %v1462, %v1460
        %v1769 = vpack.c.b16 %v1465, %v1463
        %v1770 = vpack.c.b16 %v1466, %v1464
        %v1771 = vpack.c.b16 %v1469, %v1467
        %v1772 = vpack.c.b16 %v1470, %v1468
        %v1773 = vpack.c.b16 %v1473, %v1471
        %v1774 = vpack.c.b16 %v1474, %v1472
        %v1775 = vpack.c.b16 %v1477, %v1475
        %v1776 = vpack.c.b16 %v1478, %v1476
        %v1777 = vpack.c.b16 %v1481, %v1479
        %v1778 = vpack.c.b16 %v1482, %v1480
        %v1779 = vpack.c.b16 %v1485, %v1483
        %v1780 = vpack.c.b16 %v1486, %v1484
        %v1781 = vpack.c.b16 %v1489, %v1487
        %v1782 = vpack.c.b16 %v1490, %v1488
        %v1783 = vpack.c.b16 %v1493, %v1491
        %v1784 = vpack.c.b16 %v1494, %v1492
        %v1785 = vpack.c.b16 %v1497, %v1495
        %v1786 = vpack.c.b16 %v1498, %v1496
        %v1787 = vpack.c.b16 %v1501, %v1499
        %v1788 = vpack.c.b16 %v1502, %v1500
        %v1789 = vpack.c.b16 %v1505, %v1503
        %v1790 = vpack.c.b16 %v1506, %v1504
        %v1791 = vpack.c.b16 %v1509, %v1507
        %v1792 = vpack.c.b16 %v1510, %v1508
        %v1793 = vpack.c.b16 %v1513, %v1511
        %v1794 = vpack.c.b16 %v1514, %v1512
        %v1795 = vpack.c.b16 %v1517, %v1515
        %v1796 = vpack.c.b16 %v1518, %v1516
        %v1797 = vpack.c.b16 %v1521, %v1519
        %v1798 = vpack.c.b16 %v1522, %v1520
        %v1799 = vpack.c.b16 %v1525, %v1523
        %v1800 = vpack.c.b16 %v1526, %v1524
        %v1801 = vpack.c.b16 %v1529, %v1527
        %v1802 = vpack.c.b16 %v1530, %v1528
        %v1803 = vpack.c.b16 %v1533, %v1531
        %v1804 = vpack.c.b16 %v1534, %v1532
        %v1805 = vpack.c.b16 %v1537, %v1535
        %v1806 = vpack.c.b16 %v1538, %v1536
        %v1807 = vpack.c.b16 %v1541, %v1539
        %v1808 = vpack.c.b16 %v1542, %v1540
        %v1809 = vpack.c.b16 %v1545, %v1543
        %v1810 = vpack.c.b16 %v1546, %v1544
        %v1811 = vpack.c.b16 %v1549, %v1547
        %v1812 = vpack.c.b16 %v1550, %v1548
        %v1813 = vpack.c.b16 %v1553, %v1551
        %v1814 = vpack.c.b16 %v1554, %v1552
        %v1815 = vpack.c.b16 %v1557, %v1555
        %v1816 = vpack.c.b16 %v1558, %v1556
        %v1817 = vpack.c.b16 %v1561, %v1559
        %v1818 = vpack.c.b16 %v1562, %v1560
        %v1819 = vpack.c.b16 %v1565, %v1563
        %v1820 = vpack.c.b16 %v1566, %v1564
        %v1821 = vpack.c.b16 %v1569, %v1567
        %v1822 = vpack.c.b16 %v1570, %v1568
        %v1823 = vpack.c.b16 %v1573, %v1571
        %v1824 = vpack.c.b16 %v1574, %v1572
        %v1825 = vpack.c.b16 %v1577, %v1575
        %v1826 = vpack.c.b16 %v1578, %v1576
        %v1827 = vpack.c.b16 %v1581, %v1579
        %v1828 = vpack.c.b16 %v1582, %v1580
        %v1829 = vpack.c.b16 %v1585, %v1583
        %v1830 = vpack.c.b16 %v1586, %v1584
        %v1831 = vpack.c.b16 %v1589, %v1587
        %v1832 = vpack.c.b16 %v1590, %v1588
        %v1833 = vpack.c.b16 %v1593, %v1591
        %v1834 = vpack.c.b16 %v1594, %v1592
        %v1835 = vpack.c.b16 %v1597, %v1595
        %v1836 = vpack.c.b16 %v1598, %v1596
        %v1837 = vpack.c.b16 %v1601, %v1599
        %v1838 = vpack.c.b16 %v1602, %v1600
        %v1839 = vpack.c.b16 %v1605, %v1603
        %v1840 = vpack.c.b16 %v1606, %v1604
        %v1841 = vpack.c.b16 %v1609, %v1607
        %v1842 = vpack.c.b16 %v1610, %v1608
        %v1843 = vpack.c.b16 %v1613, %v1611
        %v1844 = vpack.c.b16 %v1614, %v1612
        %v1845 = vpack.c.b16 %v1617, %v1615
        %v1846 = vpack.c.b16 %v1618, %v1616
        %v1847 = vpack.c.b16 %v1621, %v1619
        %v1848 = vpack.c.b16 %v1622, %v1620
        %v1849 = vpack.c.b16 %v1625, %v1623
        %v1850 = vpack.c.b16 %v1626, %v1624
        %v1982 = vunpack.c.l.b16 %v936
        %v1983 = vunpack.c.l.b16 %v937
        %v1984 = vunpack.c.l.b16 %v938
        %v1985 = vunpack.c.l.b16 %v939
        %v1986 = vunpack.c.l.b16 %v940
        %v1987 = vunpack.c.l.b16 %v941
        %v1988 = vunpack.c.l.b16 %v942
        %v1989 = vunpack.c.l.b16 %v943
        %v1990 = vunpack.c.l.b16 %v944
        %v1991 = vunpack.c.l.b16 %v945
        %v1992 = vunpack.c.l.b16 %v946
        %v1993 = vunpack.c.l.b16 %v947
        %v1994 = vunpack.c.l.b16 %v948
        %v1995 = vunpack.c.l.b16 %v949
        %v1996 = vunpack.c.l.b16 %v950
        %v1997 = vunpack.c.l.b16 %v951
        %v1998 = vunpack.c.l.b16 %v952
        %v1999 = vunpack.c.l.b16 %v953
        %v2000 = vunpack.c.l.b16 %v954
        %v2001 = vpack.c.b16 %v1983, %v1982
        %v2002 = vpack.c.b16 %v1985, %v1984
        %v2003 = vpack.c.b16 %v1987, %v1986
        %v2004 = vpack.c.b16 %v1989, %v1988
        %v2005 = vpack.c.b16 %v1991, %v1990
        %v2006 = vpack.c.b16 %v1993, %v1992
        %v2007 = vpack.c.b16 %v1995, %v1994
        %v2008 = vpack.c.b16 %v1997, %v1996
        %v2009 = vpack.c.b16 %v1999, %v1998
        %v2010 = vpack.c.b16 %v2000, %v2000
        %vm2020 = vcmask 154624
        %v2022 = vsel %vm2020, %v1628, 0
        %v2025 = vsel %vm2020, %v1630, 0
        %v2028 = vsel %vm2020, %v1632, 0
        %v2031 = vsel %vm2020, %v1634, 0
        %v2034 = vsel %vm2020, %v1636, 0
        %v2037 = vsel %vm2020, %v1638, 0
        %v2040 = vsel %vm2020, %v1640, 0
        %v2043 = vsel %vm2020, %v1642, 0
        %v2046 = vsel %vm2020, %v1644, 0
        %v2049 = vsel %vm2020, %v1646, 0
        %v2052 = vsel %vm2020, %v1648, 0
        %v2055 = vsel %vm2020, %v1650, 0
        %v2058 = vsel %vm2020, %v1652, 0
        %v2061 = vsel %vm2020, %v1654, 0
        %v2064 = vsel %vm2020, %v1656, 0
        %v2067 = vsel %vm2020, %v1658, 0
        %v2070 = vsel %vm2020, %v1660, 0
        %v2073 = vsel %vm2020, %v1662, 0
        %v2076 = vsel %vm2020, %v1664, 0
        %v2079 = vsel %vm2020, %v1666, 0
        %v2082 = vsel %vm2020, %v1668, 0
        %v2085 = vsel %vm2020, %v1670, 0
        %v2088 = vsel %vm2020, %v1672, 0
        %v2091 = vsel %vm2020, %v1674, 0
        %v2094 = vsel %vm2020, %v1676, 0
        %v2097 = vsel %vm2020, %v1678, 0
        %v2100 = vsel %vm2020, %v1680, 0
        %v2103 = vsel %vm2020, %v1682, 0
        %v2106 = vsel %vm2020, %v1684, 0
        %v2109 = vsel %vm2020, %v1686, 0
        %v2112 = vsel %vm2020, %v1688, 0
        %v2115 = vsel %vm2020, %v1690, 0
        %v2118 = vsel %vm2020, %v1692, 0
        %v2121 = vsel %vm2020, %v1694, 0
        %v2124 = vsel %vm2020, %v1696, 0
        %v2127 = vsel %vm2020, %v1698, 0
        %v2130 = vsel %vm2020, %v1700, 0
        %v2133 = vsel %vm2020, %v1702, 0
        %v2136 = vsel %vm2020, %v1704, 0
        %v2139 = vsel %vm2020, %v1706, 0
        %v2142 = vsel %vm2020, %v1708, 0
        %v2145 = vsel %vm2020, %v1710, 0
        %v2148 = vsel %vm2020, %v1712, 0
        %v2151 = vsel %vm2020, %v1714, 0
        %v2154 = vsel %vm2020, %v1716, 0
        %v2157 = vsel %vm2020, %v1718, 0
        %v2160 = vsel %vm2020, %v1720, 0
        %v2163 = vsel %vm2020, %v1722, 0
        %v2166 = vsel %vm2020, %v1724, 0
        %v2169 = vsel %vm2020, %v1726, 0
        %v2172 = vsel %vm2020, %v1728, 0
        %v2175 = vsel %vm2020, %v1730, 0
        %v2178 = vsel %vm2020, %v1732, 0
        %v2181 = vsel %vm2020, %v1734, 0
        %v2184 = vsel %vm2020, %v1736, 0
        %v2187 = vsel %vm2020, %v1738, 0
        %v2190 = vsel %vm2020, %v1740, 0
        %v2193 = vsel %vm2020, %v1742, 0
        %v2196 = vsel %vm2020, %v1744, 0
        %v2199 = vsel %vm2020, %v1746, 0
        %v2202 = vsel %vm2020, %v1748, 0
        %v2205 = vsel %vm2020, %v1750, 0
        %v2208 = vsel %vm2020, %v1752, 0
        %v2211 = vsel %vm2020, %v1754, 0
        %v2214 = vsel %vm2020, %v1756, 0
        %v2217 = vsel %vm2020, %v1758, 0
        %v2220 = vsel %vm2020, %v1760, 0
        %v2223 = vsel %vm2020, %v1762, 0
        %v2226 = vsel %vm2020, %v1764, 0
        %v2229 = vsel %vm2020, %v1766, 0
        %v2232 = vsel %vm2020, %v1768, 0
        %v2235 = vsel %vm2020, %v1770, 0
        %v2238 = vsel %vm2020, %v1772, 0
        %v2241 = vsel %vm2020, %v1774, 0
        %v2244 = vsel %vm2020, %v1776, 0
        %v2247 = vsel %vm2020, %v1778, 0
        %v2250 = vsel %vm2020, %v1780, 0
        %v2253 = vsel %vm2020, %v1782, 0
        %v2256 = vsel %vm2020, %v1784, 0
        %v2259 = vsel %vm2020, %v1786, 0
        %v2262 = vsel %vm2020, %v1788, 0
        %v2265 = vsel %vm2020, %v1790, 0
        %v2268 = vsel %vm2020, %v1792, 0
        %v2271 = vsel %vm2020, %v1794, 0
        %v2274 = vsel %vm2020, %v1796, 0
        %v2277 = vsel %vm2020, %v1798, 0
        %v2280 = vsel %vm2020, %v1800, 0
        %v2283 = vsel %vm2020, %v1802, 0
        %v2286 = vsel %vm2020, %v1804, 0
        %v2289 = vsel %vm2020, %v1806, 0
        %v2292 = vsel %vm2020, %v1808, 0
        %v2295 = vsel %vm2020, %v1810, 0
        %v2298 = vsel %vm2020, %v1812, 0
        %v2301 = vsel %vm2020, %v1814, 0
        %v2304 = vsel %vm2020, %v1816, 0
        %v2307 = vsel %vm2020, %v1818, 0
        %v2310 = vsel %vm2020, %v1820, 0
        %v2313 = vsel %vm2020, %v1822, 0
        %v2316 = vsel %vm2020, %v1824, 0
        %v2319 = vsel %vm2020, %v1826, 0
        %v2322 = vsel %vm2020, %v1828, 0
        %v2325 = vsel %vm2020, %v1830, 0
        %v2328 = vsel %vm2020, %v1832, 0
        %v2331 = vsel %vm2020, %v1834, 0
        %v2334 = vsel %vm2020, %v1836, 0
        %v2337 = vsel %vm2020, %v1838, 0
        %v2340 = vsel %vm2020, %v1840, 0
        %v2343 = vsel %vm2020, %v1842, 0
        %v2346 = vsel %vm2020, %v1844, 0
        %v2349 = vsel %vm2020, %v1846, 0
        %v2352 = vsel %vm2020, %v1848, 0
        %v2355 = vsel %vm2020, %v1850, 0
        %vm2357 = vcmask 1040384
        %vm2358 = vcmask 1041408
        %v2359 = vsel %vm2357, 4294967295, 65535
        %v2360 = vsel %vm2358, %v2359, 0
        %v2362 = vand.u32 %v2010, %v2360
        %2364 = vmatprep.subr.bf16.mxu0 0
        %2365 = vmatpush1.bf16.msra.mxu0 %v2001
        %2366 = vmatprep.subr.bf16.mxu0 0
        %2367 = vmatpush1.bf16.msra.mxu0 %v2002
        %2368 = vmatprep.subr.bf16.mxu0 0
        %2369 = vmatpush1.bf16.msra.mxu0 %v2003
        %2370 = vmatprep.subr.bf16.mxu0 0
        %2371 = vmatpush1.bf16.msra.mxu0 %v2004
        %2372 = vmatprep.subr.bf16.mxu0 0
        %2373 = vmatpush1.bf16.msra.mxu0 %v2005
        %2374 = vmatprep.subr.bf16.mxu0 0
        %2375 = vmatpush1.bf16.msra.mxu0 %v2006
        %2376 = vmatprep.subr.bf16.mxu0 0
        %2377 = vmatpush1.bf16.msra.mxu0 %v2007
        %2378 = vmatprep.subr.bf16.mxu0 0
        %2379 = vmatpush1.bf16.msra.mxu0 %v2008
        %2380 = vmatprep.subr.bf16.mxu0 0
        %2381 = vmatpush1.bf16.msra.mxu0 %v2009
        %2382 = vmatprep.subr.bf16.mxu0 0
        %2383 = vmatpush1.bf16.msra.mxu0 %v2362
        %2384 = vmatprep.subr.bf16.mxu0 0
        %2385 = vmatpush1.bf16.msra.mxu0 0
        %2386 = vmatprep.subr.bf16.mxu0 0
        %2387 = vmatpush1.bf16.msra.mxu0 0
        %2388 = vmatprep.subr.bf16.mxu0 0
        %2389 = vmatpush1.bf16.msra.mxu0 0
        %2390 = vmatprep.subr.bf16.mxu0 0
        %2391 = vmatpush1.bf16.msra.mxu0 0
        %2392 = vmatprep.subr.bf16.mxu0 0
        %2393 = vmatpush1.bf16.msra.mxu0 0
        %2394 = vmatprep.subr.bf16.mxu0 0
        %2395 = vmatpush1.bf16.msra.mxu0 0
        %2396 = vmatprep.mubr.bf16.mxu0 %v2022
        %2397 = vmatmul.mubr.bf16.gmra.mrb[0].mxu0 %v1627
        %v2398 = vpop.f32.mrb[0].mxu0
        %v2399 = vadd.f32 0.0, %v2398
        %v2400 = vpop.f32.mrb[0].mxu0
        %v2401 = vpop.f32.mrb[0].mxu0
        %v2402 = vadd.f32 0.0, %v2401
        %v2403 = vpop.f32.mrb[0].mxu0
        %2404 = vmatprep.mubr.bf16.mxu0 %v2025
        %2405 = vmatmul.mubr.bf16.gmra.mrb[0].mxu0 %v1629
        %v2406 = vpop.f32.mrb[0].mxu0
        %v2407 = vadd.f32 0.0, %v2406
        %v2408 = vpop.f32.mrb[0].mxu0
        %v2409 = vpop.f32.mrb[0].mxu0
        %v2410 = vadd.f32 0.0, %v2409
        %v2411 = vpop.f32.mrb[0].mxu0
        %2412 = vmatprep.mubr.bf16.mxu0 %v2028
        %2413 = vmatmul.mubr.bf16.gmra.mrb[0].mxu0 %v1631
        %v2414 = vpop.f32.mrb[0].mxu0
        %v2415 = vadd.f32 0.0, %v2414
        %v2416 = vpop.f32.mrb[0].mxu0
        %v2417 = vpop.f32.mrb[0].mxu0
        %v2418 = vadd.f32 0.0, %v2417
        %v2419 = vpop.f32.mrb[0].mxu0
        %2420 = vmatprep.mubr.bf16.mxu0 %v2031
        %2421 = vmatmul.mubr.bf16.gmra.mrb[0].mxu0 %v1633
        %v2422 = vpop.f32.mrb[0].mxu0
        %v2423 = vadd.f32 0.0, %v2422
        %v2424 = vpop.f32.mrb[0].mxu0
        %v2425 = vpop.f32.mrb[0].mxu0
        %v2426 = vadd.f32 0.0, %v2425
        %v2427 = vpop.f32.mrb[0].mxu0
        %2428 = vmatprep.mubr.bf16.mxu0 %v2034
        %2429 = vmatmul.mubr.bf16.gmra.mrb[0].mxu0 %v1635
        %v2430 = vpop.f32.mrb[0].mxu0
        %v2431 = vadd.f32 0.0, %v2430
        %v2432 = vpop.f32.mrb[0].mxu0
        %v2433 = vpop.f32.mrb[0].mxu0
        %v2434 = vadd.f32 0.0, %v2433
        %v2435 = vpop.f32.mrb[0].mxu0
        %2436 = vmatprep.mubr.bf16.mxu0 %v2037
        %2437 = vmatmul.mubr.bf16.gmra.mrb[0].mxu0 %v1637
        %v2438 = vpop.f32.mrb[0].mxu0
        %v2439 = vadd.f32 0.0, %v2438
        %v2440 = vpop.f32.mrb[0].mxu0
        %v2441 = vpop.f32.mrb[0].mxu0
        %v2442 = vadd.f32 0.0, %v2441
        %v2443 = vpop.f32.mrb[0].mxu0
        %2444 = vmatprep.mubr.bf16.mxu0 %v2040
        %2445 = vmatmul.mubr.bf16.gmra.mrb[0].mxu0 %v1639
        %v2446 = vpop.f32.mrb[0].mxu0
        %v2447 = vadd.f32 0.0, %v2446
        %v2448 = vpop.f32.mrb[0].mxu0
        %v2449 = vpop.f32.mrb[0].mxu0
        %v2450 = vadd.f32 0.0, %v2449
        %v2451 = vpop.f32.mrb[0].mxu0
        %2452 = vmatprep.mubr.bf16.mxu0 %v2043
        %2453 = vmatmul.mubr.bf16.gmra.mrb[0].mxu0 %v1641
        %v2454 = vpop.f32.mrb[0].mxu0
        %v2455 = vadd.f32 0.0, %v2454
        %v2456 = vpop.f32.mrb[0].mxu0
        %v2457 = vpop.f32.mrb[0].mxu0
        %v2458 = vadd.f32 0.0, %v2457
        %v2459 = vpop.f32.mrb[0].mxu0
        %2460 = vmatprep.mubr.bf16.mxu0 %v2046
        %2461 = vmatmul.mubr.bf16.gmra.mrb[0].mxu0 %v1643
        %v2462 = vpop.f32.mrb[0].mxu0
        %v2463 = vadd.f32 0.0, %v2462
        %v2464 = vpop.f32.mrb[0].mxu0
        %v2465 = vpop.f32.mrb[0].mxu0
        %v2466 = vadd.f32 0.0, %v2465
        %v2467 = vpop.f32.mrb[0].mxu0
        %2468 = vmatprep.mubr.bf16.mxu0 %v2049
        %2469 = vmatmul.mubr.bf16.gmra.mrb[0].mxu0 %v1645
        %v2470 = vpop.f32.mrb[0].mxu0
        %v2471 = vadd.f32 0.0, %v2470
        %v2472 = vpop.f32.mrb[0].mxu0
        %v2473 = vpop.f32.mrb[0].mxu0
        %v2474 = vadd.f32 0.0, %v2473
        %v2475 = vpop.f32.mrb[0].mxu0
        %2476 = vmatprep.mubr.bf16.mxu0 %v2052
        %2477 = vmatmul.mubr.bf16.gmra.mrb[0].mxu0 %v1647
        %v2478 = vpop.f32.mrb[0].mxu0
        %v2479 = vadd.f32 0.0, %v2478
        %v2480 = vpop.f32.mrb[0].mxu0
        %v2481 = vpop.f32.mrb[0].mxu0
        %v2482 = vadd.f32 0.0, %v2481
        %v2483 = vpop.f32.mrb[0].mxu0
        %2484 = vmatprep.mubr.bf16.mxu0 %v2055
        %2485 = vmatmul.mubr.bf16.gmra.mrb[0].mxu0 %v1649
        %v2486 = vpop.f32.mrb[0].mxu0
        %v2487 = vadd.f32 0.0, %v2486
        %v2488 = vpop.f32.mrb[0].mxu0
        %v2489 = vpop.f32.mrb[0].mxu0
        %v2490 = vadd.f32 0.0, %v2489
        %v2491 = vpop.f32.mrb[0].mxu0
        %2492 = vmatprep.mubr.bf16.mxu0 %v2058
        %2493 = vmatmul.mubr.bf16.gmra.mrb[0].mxu0 %v1651
        %v2494 = vpop.f32.mrb[0].mxu0
        %v2495 = vadd.f32 0.0, %v2494
        %v2496 = vpop.f32.mrb[0].mxu0
        %v2497 = vpop.f32.mrb[0].mxu0
        %v2498 = vadd.f32 0.0, %v2497
        %v2499 = vpop.f32.mrb[0].mxu0
        %2500 = vmatprep.mubr.bf16.mxu0 %v2061
        %2501 = vmatmul.mubr.bf16.gmra.mrb[0].mxu0 %v1653
        %v2502 = vpop.f32.mrb[0].mxu0
        %v2503 = vadd.f32 0.0, %v2502
        %v2504 = vpop.f32.mrb[0].mxu0
        %v2505 = vpop.f32.mrb[0].mxu0
        %v2506 = vadd.f32 0.0, %v2505
        %v2507 = vpop.f32.mrb[0].mxu0
        %2508 = vmatprep.mubr.bf16.mxu0 %v2064
        %2509 = vmatmul.mubr.bf16.gmra.mrb[0].mxu0 %v1655
        %v2510 = vpop.f32.mrb[0].mxu0
        %v2511 = vadd.f32 0.0, %v2510
        %v2512 = vpop.f32.mrb[0].mxu0
        %v2513 = vpop.f32.mrb[0].mxu0
        %v2514 = vadd.f32 0.0, %v2513
        %v2515 = vpop.f32.mrb[0].mxu0
        %2516 = vmatprep.mubr.bf16.mxu0 %v2067
        %2517 = vmatmul.mubr.bf16.gmra.mrb[0].mxu0 %v1657
        %v2518 = vpop.f32.mrb[0].mxu0
        %v2519 = vadd.f32 0.0, %v2518
        %v2520 = vpop.f32.mrb[0].mxu0
        %v2521 = vpop.f32.mrb[0].mxu0
        %v2522 = vadd.f32 0.0, %v2521
        %v2523 = vpop.f32.mrb[0].mxu0
        %2524 = vmatprep.mubr.bf16.mxu0 %v2070
        %2525 = vmatmul.mubr.bf16.gmra.mrb[0].mxu0 %v1659
        %v2526 = vpop.f32.mrb[0].mxu0
        %v2527 = vadd.f32 0.0, %v2526
        %v2528 = vpop.f32.mrb[0].mxu0
        %v2529 = vpop.f32.mrb[0].mxu0
        %v2530 = vadd.f32 0.0, %v2529
        %v2531 = vpop.f32.mrb[0].mxu0
        %2532 = vmatprep.mubr.bf16.mxu0 %v2073
        %2533 = vmatmul.mubr.bf16.gmra.mrb[0].mxu0 %v1661
        %v2534 = vpop.f32.mrb[0].mxu0
        %v2535 = vadd.f32 0.0, %v2534
        %v2536 = vpop.f32.mrb[0].mxu0
        %v2537 = vpop.f32.mrb[0].mxu0
        %v2538 = vadd.f32 0.0, %v2537
        %v2539 = vpop.f32.mrb[0].mxu0
        %2540 = vmatprep.mubr.bf16.mxu0 %v2076
        %2541 = vmatmul.mubr.bf16.gmra.mrb[0].mxu0 %v1663
        %v2542 = vpop.f32.mrb[0].mxu0
        %v2543 = vadd.f32 0.0, %v2542
        %v2544 = vpop.f32.mrb[0].mxu0
        %v2545 = vpop.f32.mrb[0].mxu0
        %v2546 = vadd.f32 0.0, %v2545
        %v2547 = vpop.f32.mrb[0].mxu0
        %2548 = vmatprep.mubr.bf16.mxu0 %v2079
        %2549 = vmatmul.mubr.bf16.gmra.mrb[0].mxu0 %v1665
        %v2550 = vpop.f32.mrb[0].mxu0
        %v2551 = vadd.f32 0.0, %v2550
        %v2552 = vpop.f32.mrb[0].mxu0
        %v2553 = vpop.f32.mrb[0].mxu0
        %v2554 = vadd.f32 0.0, %v2553
        %v2555 = vpop.f32.mrb[0].mxu0
        %2556 = vmatprep.mubr.bf16.mxu0 %v2082
        %2557 = vmatmul.mubr.bf16.gmra.mrb[0].mxu0 %v1667
        %v2558 = vpop.f32.mrb[0].mxu0
        %v2559 = vadd.f32 0.0, %v2558
        %v2560 = vpop.f32.mrb[0].mxu0
        %v2561 = vpop.f32.mrb[0].mxu0
        %v2562 = vadd.f32 0.0, %v2561
        %v2563 = vpop.f32.mrb[0].mxu0
        %2564 = vmatprep.mubr.bf16.mxu0 %v2085
        %2565 = vmatmul.mubr.bf16.gmra.mrb[0].mxu0 %v1669
        %v2566 = vpop.f32.mrb[0].mxu0
        %v2567 = vadd.f32 0.0, %v2566
        %v2568 = vpop.f32.mrb[0].mxu0
        %v2569 = vpop.f32.mrb[0].mxu0
        %v2570 = vadd.f32 0.0, %v2569
        %v2571 = vpop.f32.mrb[0].mxu0
        %2572 = vmatprep.mubr.bf16.mxu0 %v2088
        %2573 = vmatmul.mubr.bf16.gmra.mrb[0].mxu0 %v1671
        %v2574 = vpop.f32.mrb[0].mxu0
        %v2575 = vadd.f32 0.0, %v2574
        %v2576 = vpop.f32.mrb[0].mxu0
        %v2577 = vpop.f32.mrb[0].mxu0
        %v2578 = vadd.f32 0.0, %v2577
        %v2579 = vpop.f32.mrb[0].mxu0
        %2580 = vmatprep.mubr.bf16.mxu0 %v2091
        %2581 = vmatmul.mubr.bf16.gmra.mrb[0].mxu0 %v1673
        %v2582 = vpop.f32.mrb[0].mxu0
        %v2583 = vadd.f32 0.0, %v2582
        %v2584 = vpop.f32.mrb[0].mxu0
        %v2585 = vpop.f32.mrb[0].mxu0
        %v2586 = vadd.f32 0.0, %v2585
        %v2587 = vpop.f32.mrb[0].mxu0
        %2588 = vmatprep.mubr.bf16.mxu0 %v2094
        %2589 = vmatmul.mubr.bf16.gmra.mrb[0].mxu0 %v1675
        %v2590 = vpop.f32.mrb[0].mxu0
        %v2591 = vadd.f32 0.0, %v2590
        %v2592 = vpop.f32.mrb[0].mxu0
        %v2593 = vpop.f32.mrb[0].mxu0
        %v2594 = vadd.f32 0.0, %v2593
        %v2595 = vpop.f32.mrb[0].mxu0
        %2596 = vmatprep.mubr.bf16.mxu0 %v2097
        %2597 = vmatmul.mubr.bf16.gmra.mrb[0].mxu0 %v1677
        %v2598 = vpop.f32.mrb[0].mxu0
        %v2599 = vadd.f32 0.0, %v2598
        %v2600 = vpop.f32.mrb[0].mxu0
        %v2601 = vpop.f32.mrb[0].mxu0
        %v2602 = vadd.f32 0.0, %v2601
        %v2603 = vpop.f32.mrb[0].mxu0
        %2604 = vmatprep.mubr.bf16.mxu0 %v2100
        %2605 = vmatmul.mubr.bf16.gmra.mrb[0].mxu0 %v1679
        %v2606 = vpop.f32.mrb[0].mxu0
        %v2607 = vadd.f32 0.0, %v2606
        %v2608 = vpop.f32.mrb[0].mxu0
        %v2609 = vpop.f32.mrb[0].mxu0
        %v2610 = vadd.f32 0.0, %v2609
        %v2611 = vpop.f32.mrb[0].mxu0
        %2612 = vmatprep.mubr.bf16.mxu0 %v2103
        %2613 = vmatmul.mubr.bf16.gmra.mrb[0].mxu0 %v1681
        %v2614 = vpop.f32.mrb[0].mxu0
        %v2615 = vadd.f32 0.0, %v2614
        %v2616 = vpop.f32.mrb[0].mxu0
        %v2617 = vpop.f32.mrb[0].mxu0
        %v2618 = vadd.f32 0.0, %v2617
        %v2619 = vpop.f32.mrb[0].mxu0
        %2620 = vmatprep.mubr.bf16.mxu0 %v2106
        %2621 = vmatmul.mubr.bf16.gmra.mrb[0].mxu0 %v1683
        %v2622 = vpop.f32.mrb[0].mxu0
        %v2623 = vadd.f32 0.0, %v2622
        %v2624 = vpop.f32.mrb[0].mxu0
        %v2625 = vpop.f32.mrb[0].mxu0
        %v2626 = vadd.f32 0.0, %v2625
        %v2627 = vpop.f32.mrb[0].mxu0
        %2628 = vmatprep.mubr.bf16.mxu0 %v2109
        %2629 = vmatmul.mubr.bf16.gmra.mrb[0].mxu0 %v1685
        %v2630 = vpop.f32.mrb[0].mxu0
        %v2631 = vadd.f32 0.0, %v2630
        %v2632 = vpop.f32.mrb[0].mxu0
        %v2633 = vpop.f32.mrb[0].mxu0
        %v2634 = vadd.f32 0.0, %v2633
        %v2635 = vpop.f32.mrb[0].mxu0
        %2636 = vmatprep.mubr.bf16.mxu0 %v2112
        %2637 = vmatmul.mubr.bf16.gmra.mrb[0].mxu0 %v1687
        %v2638 = vpop.f32.mrb[0].mxu0
        %v2639 = vadd.f32 0.0, %v2638
        %v2640 = vpop.f32.mrb[0].mxu0
        %v2641 = vpop.f32.mrb[0].mxu0
        %v2642 = vadd.f32 0.0, %v2641
        %v2643 = vpop.f32.mrb[0].mxu0
        %2644 = vmatprep.mubr.bf16.mxu0 %v2115
        %2645 = vmatmul.mubr.bf16.gmra.mrb[0].mxu0 %v1689
        %v2646 = vpop.f32.mrb[0].mxu0
        %v2647 = vadd.f32 0.0, %v2646
        %v2648 = vpop.f32.mrb[0].mxu0
        %v2649 = vpop.f32.mrb[0].mxu0
        %v2650 = vadd.f32 0.0, %v2649
        %v2651 = vpop.f32.mrb[0].mxu0
        %2652 = vmatprep.mubr.bf16.mxu0 %v2118
        %2653 = vmatmul.mubr.bf16.gmra.mrb[0].mxu0 %v1691
        %v2654 = vpop.f32.mrb[0].mxu0
        %v2655 = vadd.f32 0.0, %v2654
        %v2656 = vpop.f32.mrb[0].mxu0
        %v2657 = vpop.f32.mrb[0].mxu0
        %v2658 = vadd.f32 0.0, %v2657
        %v2659 = vpop.f32.mrb[0].mxu0
        %2660 = vmatprep.mubr.bf16.mxu0 %v2121
        %2661 = vmatmul.mubr.bf16.gmra.mrb[0].mxu0 %v1693
        %v2662 = vpop.f32.mrb[0].mxu0
        %v2663 = vadd.f32 0.0, %v2662
        %v2664 = vpop.f32.mrb[0].mxu0
        %v2665 = vpop.f32.mrb[0].mxu0
        %v2666 = vadd.f32 0.0, %v2665
        %v2667 = vpop.f32.mrb[0].mxu0
        %2668 = vmatprep.mubr.bf16.mxu0 %v2124
        %2669 = vmatmul.mubr.bf16.gmra.mrb[0].mxu0 %v1695
        %v2670 = vpop.f32.mrb[0].mxu0
        %v2671 = vadd.f32 0.0, %v2670
        %v2672 = vpop.f32.mrb[0].mxu0
        %v2673 = vpop.f32.mrb[0].mxu0
        %v2674 = vadd.f32 0.0, %v2673
        %v2675 = vpop.f32.mrb[0].mxu0
        %2676 = vmatprep.mubr.bf16.mxu0 %v2127
        %2677 = vmatmul.mubr.bf16.gmra.mrb[0].mxu0 %v1697
        %v2678 = vpop.f32.mrb[0].mxu0
        %v2679 = vadd.f32 0.0, %v2678
        %v2680 = vpop.f32.mrb[0].mxu0
        %v2681 = vpop.f32.mrb[0].mxu0
        %v2682 = vadd.f32 0.0, %v2681
        %v2683 = vpop.f32.mrb[0].mxu0
        %2684 = vmatprep.mubr.bf16.mxu0 %v2130
        %2685 = vmatmul.mubr.bf16.gmra.mrb[0].mxu0 %v1699
        %v2686 = vpop.f32.mrb[0].mxu0
        %v2687 = vadd.f32 0.0, %v2686
        %v2688 = vpop.f32.mrb[0].mxu0
        %v2689 = vpop.f32.mrb[0].mxu0
        %v2690 = vadd.f32 0.0, %v2689
        %v2691 = vpop.f32.mrb[0].mxu0
        %2692 = vmatprep.mubr.bf16.mxu0 %v2133
        %2693 = vmatmul.mubr.bf16.gmra.mrb[0].mxu0 %v1701
        %v2694 = vpop.f32.mrb[0].mxu0
        %v2695 = vadd.f32 0.0, %v2694
        %v2696 = vpop.f32.mrb[0].mxu0
        %v2697 = vpop.f32.mrb[0].mxu0
        %v2698 = vadd.f32 0.0, %v2697
        %v2699 = vpop.f32.mrb[0].mxu0
        %2700 = vmatprep.mubr.bf16.mxu0 %v2136
        %2701 = vmatmul.mubr.bf16.gmra.mrb[0].mxu0 %v1703
        %v2702 = vpop.f32.mrb[0].mxu0
        %v2703 = vadd.f32 0.0, %v2702
        %v2704 = vpop.f32.mrb[0].mxu0
        %v2705 = vpop.f32.mrb[0].mxu0
        %v2706 = vadd.f32 0.0, %v2705
        %v2707 = vpop.f32.mrb[0].mxu0
        %2708 = vmatprep.mubr.bf16.mxu0 %v2139
        %2709 = vmatmul.mubr.bf16.gmra.mrb[0].mxu0 %v1705
        %v2710 = vpop.f32.mrb[0].mxu0
        %v2711 = vadd.f32 0.0, %v2710
        %v2712 = vpop.f32.mrb[0].mxu0
        %v2713 = vpop.f32.mrb[0].mxu0
        %v2714 = vadd.f32 0.0, %v2713
        %v2715 = vpop.f32.mrb[0].mxu0
        %2716 = vmatprep.mubr.bf16.mxu0 %v2142
        %2717 = vmatmul.mubr.bf16.gmra.mrb[0].mxu0 %v1707
        %v2718 = vpop.f32.mrb[0].mxu0
        %v2719 = vadd.f32 0.0, %v2718
        %v2720 = vpop.f32.mrb[0].mxu0
        %v2721 = vpop.f32.mrb[0].mxu0
        %v2722 = vadd.f32 0.0, %v2721
        %v2723 = vpop.f32.mrb[0].mxu0
        %2724 = vmatprep.mubr.bf16.mxu0 %v2145
        %2725 = vmatmul.mubr.bf16.gmra.mrb[0].mxu0 %v1709
        %v2726 = vpop.f32.mrb[0].mxu0
        %v2727 = vadd.f32 0.0, %v2726
        %v2728 = vpop.f32.mrb[0].mxu0
        %v2729 = vpop.f32.mrb[0].mxu0
        %v2730 = vadd.f32 0.0, %v2729
        %v2731 = vpop.f32.mrb[0].mxu0
        %2732 = vmatprep.mubr.bf16.mxu0 %v2148
        %2733 = vmatmul.mubr.bf16.gmra.mrb[0].mxu0 %v1711
        %v2734 = vpop.f32.mrb[0].mxu0
        %v2735 = vadd.f32 0.0, %v2734
        %v2736 = vpop.f32.mrb[0].mxu0
        %v2737 = vpop.f32.mrb[0].mxu0
        %v2738 = vadd.f32 0.0, %v2737
        %v2739 = vpop.f32.mrb[0].mxu0
        %2740 = vmatprep.mubr.bf16.mxu0 %v2151
        %2741 = vmatmul.mubr.bf16.gmra.mrb[0].mxu0 %v1713
        %v2742 = vpop.f32.mrb[0].mxu0
        %v2743 = vadd.f32 0.0, %v2742
        %v2744 = vpop.f32.mrb[0].mxu0
        %v2745 = vpop.f32.mrb[0].mxu0
        %v2746 = vadd.f32 0.0, %v2745
        %v2747 = vpop.f32.mrb[0].mxu0
        %2748 = vmatprep.mubr.bf16.mxu0 %v2154
        %2749 = vmatmul.mubr.bf16.gmra.mrb[0].mxu0 %v1715
        %v2750 = vpop.f32.mrb[0].mxu0
        %v2751 = vadd.f32 0.0, %v2750
        %v2752 = vpop.f32.mrb[0].mxu0
        %v2753 = vpop.f32.mrb[0].mxu0
        %v2754 = vadd.f32 0.0, %v2753
        %v2755 = vpop.f32.mrb[0].mxu0
        %2756 = vmatprep.mubr.bf16.mxu0 %v2157
        %2757 = vmatmul.mubr.bf16.gmra.mrb[0].mxu0 %v1717
        %v2758 = vpop.f32.mrb[0].mxu0
        %v2759 = vadd.f32 0.0, %v2758
        %v2760 = vpop.f32.mrb[0].mxu0
        %v2761 = vpop.f32.mrb[0].mxu0
        %v2762 = vadd.f32 0.0, %v2761
        %v2763 = vpop.f32.mrb[0].mxu0
        %2764 = vmatprep.mubr.bf16.mxu0 %v2160
        %2765 = vmatmul.mubr.bf16.gmra.mrb[0].mxu0 %v1719
        %v2766 = vpop.f32.mrb[0].mxu0
        %v2767 = vadd.f32 0.0, %v2766
        %v2768 = vpop.f32.mrb[0].mxu0
        %v2769 = vpop.f32.mrb[0].mxu0
        %v2770 = vadd.f32 0.0, %v2769
        %v2771 = vpop.f32.mrb[0].mxu0
        %2772 = vmatprep.mubr.bf16.mxu0 %v2163
        %2773 = vmatmul.mubr.bf16.gmra.mrb[0].mxu0 %v1721
        %v2774 = vpop.f32.mrb[0].mxu0
        %v2775 = vadd.f32 0.0, %v2774
        %v2776 = vpop.f32.mrb[0].mxu0
        %v2777 = vpop.f32.mrb[0].mxu0
        %v2778 = vadd.f32 0.0, %v2777
        %v2779 = vpop.f32.mrb[0].mxu0
        %2780 = vmatprep.mubr.bf16.mxu0 %v2166
        %2781 = vmatmul.mubr.bf16.gmra.mrb[0].mxu0 %v1723
        %v2782 = vpop.f32.mrb[0].mxu0
        %v2783 = vadd.f32 0.0, %v2782
        %v2784 = vpop.f32.mrb[0].mxu0
        %v2785 = vpop.f32.mrb[0].mxu0
        %v2786 = vadd.f32 0.0, %v2785
        %v2787 = vpop.f32.mrb[0].mxu0
        %2788 = vmatprep.mubr.bf16.mxu0 %v2169
        %2789 = vmatmul.mubr.bf16.gmra.mrb[0].mxu0 %v1725
        %v2790 = vpop.f32.mrb[0].mxu0
        %v2791 = vadd.f32 0.0, %v2790
        %v2792 = vpop.f32.mrb[0].mxu0
        %v2793 = vpop.f32.mrb[0].mxu0
        %v2794 = vadd.f32 0.0, %v2793
        %v2795 = vpop.f32.mrb[0].mxu0
        %2796 = vmatprep.mubr.bf16.mxu0 %v2172
        %2797 = vmatmul.mubr.bf16.gmra.mrb[0].mxu0 %v1727
        %v2798 = vpop.f32.mrb[0].mxu0
        %v2799 = vadd.f32 0.0, %v2798
        %v2800 = vpop.f32.mrb[0].mxu0
        %v2801 = vpop.f32.mrb[0].mxu0
        %v2802 = vadd.f32 0.0, %v2801
        %v2803 = vpop.f32.mrb[0].mxu0
        %2804 = vmatprep.mubr.bf16.mxu0 %v2175
        %2805 = vmatmul.mubr.bf16.gmra.mrb[0].mxu0 %v1729
        %v2806 = vpop.f32.mrb[0].mxu0
        %v2807 = vadd.f32 0.0, %v2806
        %v2808 = vpop.f32.mrb[0].mxu0
        %v2809 = vpop.f32.mrb[0].mxu0
        %v2810 = vadd.f32 0.0, %v2809
        %v2811 = vpop.f32.mrb[0].mxu0
        %2812 = vmatprep.mubr.bf16.mxu0 %v2178
        %2813 = vmatmul.mubr.bf16.gmra.mrb[0].mxu0 %v1731
        %v2814 = vpop.f32.mrb[0].mxu0
        %v2815 = vadd.f32 0.0, %v2814
        %v2816 = vpop.f32.mrb[0].mxu0
        %v2817 = vpop.f32.mrb[0].mxu0
        %v2818 = vadd.f32 0.0, %v2817
        %v2819 = vpop.f32.mrb[0].mxu0
        %2820 = vmatprep.mubr.bf16.mxu0 %v2181
        %2821 = vmatmul.mubr.bf16.gmra.mrb[0].mxu0 %v1733
        %v2822 = vpop.f32.mrb[0].mxu0
        %v2823 = vadd.f32 0.0, %v2822
        %v2824 = vpop.f32.mrb[0].mxu0
        %v2825 = vpop.f32.mrb[0].mxu0
        %v2826 = vadd.f32 0.0, %v2825
        %v2827 = vpop.f32.mrb[0].mxu0
        %2828 = vmatprep.mubr.bf16.mxu0 %v2184
        %2829 = vmatmul.mubr.bf16.gmra.mrb[0].mxu0 %v1735
        %v2830 = vpop.f32.mrb[0].mxu0
        %v2831 = vadd.f32 0.0, %v2830
        %v2832 = vpop.f32.mrb[0].mxu0
        %v2833 = vpop.f32.mrb[0].mxu0
        %v2834 = vadd.f32 0.0, %v2833
        %v2835 = vpop.f32.mrb[0].mxu0
        %2836 = vmatprep.mubr.bf16.mxu0 %v2187
        %2837 = vmatmul.mubr.bf16.gmra.mrb[0].mxu0 %v1737
        %v2838 = vpop.f32.mrb[0].mxu0
        %v2839 = vadd.f32 0.0, %v2838
        %v2840 = vpop.f32.mrb[0].mxu0
        %v2841 = vpop.f32.mrb[0].mxu0
        %v2842 = vadd.f32 0.0, %v2841
        %v2843 = vpop.f32.mrb[0].mxu0
        %2844 = vmatprep.mubr.bf16.mxu0 %v2190
        %2845 = vmatmul.mubr.bf16.gmra.mrb[0].mxu0 %v1739
        %v2846 = vpop.f32.mrb[0].mxu0
        %v2847 = vadd.f32 0.0, %v2846
        %v2848 = vpop.f32.mrb[0].mxu0
        %v2849 = vpop.f32.mrb[0].mxu0
        %v2850 = vadd.f32 0.0, %v2849
        %v2851 = vpop.f32.mrb[0].mxu0
        %2852 = vmatprep.mubr.bf16.mxu0 %v2193
        %2853 = vmatmul.mubr.bf16.gmra.mrb[0].mxu0 %v1741
        %v2854 = vpop.f32.mrb[0].mxu0
        %v2855 = vadd.f32 0.0, %v2854
        %v2856 = vpop.f32.mrb[0].mxu0
        %v2857 = vpop.f32.mrb[0].mxu0
        %v2858 = vadd.f32 0.0, %v2857
        %v2859 = vpop.f32.mrb[0].mxu0
        %2860 = vmatprep.mubr.bf16.mxu0 %v2196
        %2861 = vmatmul.mubr.bf16.gmra.mrb[0].mxu0 %v1743
        %v2862 = vpop.f32.mrb[0].mxu0
        %v2863 = vadd.f32 0.0, %v2862
        %v2864 = vpop.f32.mrb[0].mxu0
        %v2865 = vpop.f32.mrb[0].mxu0
        %v2866 = vadd.f32 0.0, %v2865
        %v2867 = vpop.f32.mrb[0].mxu0
        %2868 = vmatprep.mubr.bf16.mxu0 %v2199
        %2869 = vmatmul.mubr.bf16.gmra.mrb[0].mxu0 %v1745
        %v2870 = vpop.f32.mrb[0].mxu0
        %v2871 = vadd.f32 0.0, %v2870
        %v2872 = vpop.f32.mrb[0].mxu0
        %v2873 = vpop.f32.mrb[0].mxu0
        %v2874 = vadd.f32 0.0, %v2873
        %v2875 = vpop.f32.mrb[0].mxu0
        %2876 = vmatprep.mubr.bf16.mxu0 %v2202
        %2877 = vmatmul.mubr.bf16.gmra.mrb[0].mxu0 %v1747
        %v2878 = vpop.f32.mrb[0].mxu0
        %v2879 = vadd.f32 0.0, %v2878
        %v2880 = vpop.f32.mrb[0].mxu0
        %v2881 = vpop.f32.mrb[0].mxu0
        %v2882 = vadd.f32 0.0, %v2881
        %v2883 = vpop.f32.mrb[0].mxu0
        %2884 = vmatprep.mubr.bf16.mxu0 %v2205
        %2885 = vmatmul.mubr.bf16.gmra.mrb[0].mxu0 %v1749
        %v2886 = vpop.f32.mrb[0].mxu0
        %v2887 = vadd.f32 0.0, %v2886
        %v2888 = vpop.f32.mrb[0].mxu0
        %v2889 = vpop.f32.mrb[0].mxu0
        %v2890 = vadd.f32 0.0, %v2889
        %v2891 = vpop.f32.mrb[0].mxu0
        %2892 = vmatprep.mubr.bf16.mxu0 %v2208
        %2893 = vmatmul.mubr.bf16.gmra.mrb[0].mxu0 %v1751
        %v2894 = vpop.f32.mrb[0].mxu0
        %v2895 = vadd.f32 0.0, %v2894
        %v2896 = vpop.f32.mrb[0].mxu0
        %v2897 = vpop.f32.mrb[0].mxu0
        %v2898 = vadd.f32 0.0, %v2897
        %v2899 = vpop.f32.mrb[0].mxu0
        %2900 = vmatprep.mubr.bf16.mxu0 %v2211
        %2901 = vmatmul.mubr.bf16.gmra.mrb[0].mxu0 %v1753
        %v2902 = vpop.f32.mrb[0].mxu0
        %v2903 = vadd.f32 0.0, %v2902
        %v2904 = vpop.f32.mrb[0].mxu0
        %v2905 = vpop.f32.mrb[0].mxu0
        %v2906 = vadd.f32 0.0, %v2905
        %v2907 = vpop.f32.mrb[0].mxu0
        %2908 = vmatprep.mubr.bf16.mxu0 %v2214
        %2909 = vmatmul.mubr.bf16.gmra.mrb[0].mxu0 %v1755
        %v2910 = vpop.f32.mrb[0].mxu0
        %v2911 = vadd.f32 0.0, %v2910
        %v2912 = vpop.f32.mrb[0].mxu0
        %v2913 = vpop.f32.mrb[0].mxu0
        %v2914 = vadd.f32 0.0, %v2913
        %v2915 = vpop.f32.mrb[0].mxu0
        %2916 = vmatprep.mubr.bf16.mxu0 %v2217
        %2917 = vmatmul.mubr.bf16.gmra.mrb[0].mxu0 %v1757
        %v2918 = vpop.f32.mrb[0].mxu0
        %v2919 = vadd.f32 0.0, %v2918
        %v2920 = vpop.f32.mrb[0].mxu0
        %v2921 = vpop.f32.mrb[0].mxu0
        %v2922 = vadd.f32 0.0, %v2921
        %v2923 = vpop.f32.mrb[0].mxu0
        %2924 = vmatprep.mubr.bf16.mxu0 %v2220
        %2925 = vmatmul.mubr.bf16.gmra.mrb[0].mxu0 %v1759
        %v2926 = vpop.f32.mrb[0].mxu0
        %v2927 = vadd.f32 0.0, %v2926
        %v2928 = vpop.f32.mrb[0].mxu0
        %v2929 = vpop.f32.mrb[0].mxu0
        %v2930 = vadd.f32 0.0, %v2929
        %v2931 = vpop.f32.mrb[0].mxu0
        %2932 = vmatprep.mubr.bf16.mxu0 %v2223
        %2933 = vmatmul.mubr.bf16.gmra.mrb[0].mxu0 %v1761
        %v2934 = vpop.f32.mrb[0].mxu0
        %v2935 = vadd.f32 0.0, %v2934
        %v2936 = vpop.f32.mrb[0].mxu0
        %v2937 = vpop.f32.mrb[0].mxu0
        %v2938 = vadd.f32 0.0, %v2937
        %v2939 = vpop.f32.mrb[0].mxu0
        %2940 = vmatprep.mubr.bf16.mxu0 %v2226
        %2941 = vmatmul.mubr.bf16.gmra.mrb[0].mxu0 %v1763
        %v2942 = vpop.f32.mrb[0].mxu0
        %v2943 = vadd.f32 0.0, %v2942
        %v2944 = vpop.f32.mrb[0].mxu0
        %v2945 = vpop.f32.mrb[0].mxu0
        %v2946 = vadd.f32 0.0, %v2945
        %v2947 = vpop.f32.mrb[0].mxu0
        %2948 = vmatprep.mubr.bf16.mxu0 %v2229
        %2949 = vmatmul.mubr.bf16.gmra.mrb[0].mxu0 %v1765
        %v2950 = vpop.f32.mrb[0].mxu0
        %v2951 = vadd.f32 0.0, %v2950
        %v2952 = vpop.f32.mrb[0].mxu0
        %v2953 = vpop.f32.mrb[0].mxu0
        %v2954 = vadd.f32 0.0, %v2953
        %v2955 = vpop.f32.mrb[0].mxu0
        %2956 = vmatprep.mubr.bf16.mxu0 %v2232
        %2957 = vmatmul.mubr.bf16.gmra.mrb[0].mxu0 %v1767
        %v2958 = vpop.f32.mrb[0].mxu0
        %v2959 = vadd.f32 0.0, %v2958
        %v2960 = vpop.f32.mrb[0].mxu0
        %v2961 = vpop.f32.mrb[0].mxu0
        %v2962 = vadd.f32 0.0, %v2961
        %v2963 = vpop.f32.mrb[0].mxu0
        %2964 = vmatprep.mubr.bf16.mxu0 %v2235
        %2965 = vmatmul.mubr.bf16.gmra.mrb[0].mxu0 %v1769
        %v2966 = vpop.f32.mrb[0].mxu0
        %v2967 = vadd.f32 0.0, %v2966
        %v2968 = vpop.f32.mrb[0].mxu0
        %v2969 = vpop.f32.mrb[0].mxu0
        %v2970 = vadd.f32 0.0, %v2969
        %v2971 = vpop.f32.mrb[0].mxu0
        %2972 = vmatprep.mubr.bf16.mxu0 %v2238
        %2973 = vmatmul.mubr.bf16.gmra.mrb[0].mxu0 %v1771
        %v2974 = vpop.f32.mrb[0].mxu0
        %v2975 = vadd.f32 0.0, %v2974
        %v2976 = vpop.f32.mrb[0].mxu0
        %v2977 = vpop.f32.mrb[0].mxu0
        %v2978 = vadd.f32 0.0, %v2977
        %v2979 = vpop.f32.mrb[0].mxu0
        %2980 = vmatprep.mubr.bf16.mxu0 %v2241
        %2981 = vmatmul.mubr.bf16.gmra.mrb[0].mxu0 %v1773
        %v2982 = vpop.f32.mrb[0].mxu0
        %v2983 = vadd.f32 0.0, %v2982
        %v2984 = vpop.f32.mrb[0].mxu0
        %v2985 = vpop.f32.mrb[0].mxu0
        %v2986 = vadd.f32 0.0, %v2985
        %v2987 = vpop.f32.mrb[0].mxu0
        %2988 = vmatprep.mubr.bf16.mxu0 %v2244
        %2989 = vmatmul.mubr.bf16.gmra.mrb[0].mxu0 %v1775
        %v2990 = vpop.f32.mrb[0].mxu0
        %v2991 = vadd.f32 0.0, %v2990
        %v2992 = vpop.f32.mrb[0].mxu0
        %v2993 = vpop.f32.mrb[0].mxu0
        %v2994 = vadd.f32 0.0, %v2993
        %v2995 = vpop.f32.mrb[0].mxu0
        %2996 = vmatprep.mubr.bf16.mxu0 %v2247
        %2997 = vmatmul.mubr.bf16.gmra.mrb[0].mxu0 %v1777
        %v2998 = vpop.f32.mrb[0].mxu0
        %v2999 = vadd.f32 0.0, %v2998
        %v3000 = vpop.f32.mrb[0].mxu0
        %v3001 = vpop.f32.mrb[0].mxu0
        %v3002 = vadd.f32 0.0, %v3001
        %v3003 = vpop.f32.mrb[0].mxu0
        %3004 = vmatprep.mubr.bf16.mxu0 %v2250
        %3005 = vmatmul.mubr.bf16.gmra.mrb[0].mxu0 %v1779
        %v3006 = vpop.f32.mrb[0].mxu0
        %v3007 = vadd.f32 0.0, %v3006
        %v3008 = vpop.f32.mrb[0].mxu0
        %v3009 = vpop.f32.mrb[0].mxu0
        %v3010 = vadd.f32 0.0, %v3009
        %v3011 = vpop.f32.mrb[0].mxu0
        %3012 = vmatprep.mubr.bf16.mxu0 %v2253
        %3013 = vmatmul.mubr.bf16.gmra.mrb[0].mxu0 %v1781
        %v3014 = vpop.f32.mrb[0].mxu0
        %v3015 = vadd.f32 0.0, %v3014
        %v3016 = vpop.f32.mrb[0].mxu0
        %v3017 = vpop.f32.mrb[0].mxu0
        %v3018 = vadd.f32 0.0, %v3017
        %v3019 = vpop.f32.mrb[0].mxu0
        %3020 = vmatprep.mubr.bf16.mxu0 %v2256
        %3021 = vmatmul.mubr.bf16.gmra.mrb[0].mxu0 %v1783
        %v3022 = vpop.f32.mrb[0].mxu0
        %v3023 = vadd.f32 0.0, %v3022
        %v3024 = vpop.f32.mrb[0].mxu0
        %v3025 = vpop.f32.mrb[0].mxu0
        %v3026 = vadd.f32 0.0, %v3025
        %v3027 = vpop.f32.mrb[0].mxu0
        %3028 = vmatprep.mubr.bf16.mxu0 %v2259
        %3029 = vmatmul.mubr.bf16.gmra.mrb[0].mxu0 %v1785
        %v3030 = vpop.f32.mrb[0].mxu0
        %v3031 = vadd.f32 0.0, %v3030
        %v3032 = vpop.f32.mrb[0].mxu0
        %v3033 = vpop.f32.mrb[0].mxu0
        %v3034 = vadd.f32 0.0, %v3033
        %v3035 = vpop.f32.mrb[0].mxu0
        %3036 = vmatprep.mubr.bf16.mxu0 %v2262
        %3037 = vmatmul.mubr.bf16.gmra.mrb[0].mxu0 %v1787
        %v3038 = vpop.f32.mrb[0].mxu0
        %v3039 = vadd.f32 0.0, %v3038
        %v3040 = vpop.f32.mrb[0].mxu0
        %v3041 = vpop.f32.mrb[0].mxu0
        %v3042 = vadd.f32 0.0, %v3041
        %v3043 = vpop.f32.mrb[0].mxu0
        %3044 = vmatprep.mubr.bf16.mxu0 %v2265
        %3045 = vmatmul.mubr.bf16.gmra.mrb[0].mxu0 %v1789
        %v3046 = vpop.f32.mrb[0].mxu0
        %v3047 = vadd.f32 0.0, %v3046
        %v3048 = vpop.f32.mrb[0].mxu0
        %v3049 = vpop.f32.mrb[0].mxu0
        %v3050 = vadd.f32 0.0, %v3049
        %v3051 = vpop.f32.mrb[0].mxu0
        %3052 = vmatprep.mubr.bf16.mxu0 %v2268
        %3053 = vmatmul.mubr.bf16.gmra.mrb[0].mxu0 %v1791
        %v3054 = vpop.f32.mrb[0].mxu0
        %v3055 = vadd.f32 0.0, %v3054
        %v3056 = vpop.f32.mrb[0].mxu0
        %v3057 = vpop.f32.mrb[0].mxu0
        %v3058 = vadd.f32 0.0, %v3057
        %v3059 = vpop.f32.mrb[0].mxu0
        %3060 = vmatprep.mubr.bf16.mxu0 %v2271
        %3061 = vmatmul.mubr.bf16.gmra.mrb[0].mxu0 %v1793
        %v3062 = vpop.f32.mrb[0].mxu0
        %v3063 = vadd.f32 0.0, %v3062
        %v3064 = vpop.f32.mrb[0].mxu0
        %v3065 = vpop.f32.mrb[0].mxu0
        %v3066 = vadd.f32 0.0, %v3065
        %v3067 = vpop.f32.mrb[0].mxu0
        %3068 = vmatprep.mubr.bf16.mxu0 %v2274
        %3069 = vmatmul.mubr.bf16.gmra.mrb[0].mxu0 %v1795
        %v3070 = vpop.f32.mrb[0].mxu0
        %v3071 = vadd.f32 0.0, %v3070
        %v3072 = vpop.f32.mrb[0].mxu0
        %v3073 = vpop.f32.mrb[0].mxu0
        %v3074 = vadd.f32 0.0, %v3073
        %v3075 = vpop.f32.mrb[0].mxu0
        %3076 = vmatprep.mubr.bf16.mxu0 %v2277
        %3077 = vmatmul.mubr.bf16.gmra.mrb[0].mxu0 %v1797
        %v3078 = vpop.f32.mrb[0].mxu0
        %v3079 = vadd.f32 0.0, %v3078
        %v3080 = vpop.f32.mrb[0].mxu0
        %v3081 = vpop.f32.mrb[0].mxu0
        %v3082 = vadd.f32 0.0, %v3081
        %v3083 = vpop.f32.mrb[0].mxu0
        %3084 = vmatprep.mubr.bf16.mxu0 %v2280
        %3085 = vmatmul.mubr.bf16.gmra.mrb[0].mxu0 %v1799
        %v3086 = vpop.f32.mrb[0].mxu0
        %v3087 = vadd.f32 0.0, %v3086
        %v3088 = vpop.f32.mrb[0].mxu0
        %v3089 = vpop.f32.mrb[0].mxu0
        %v3090 = vadd.f32 0.0, %v3089
        %v3091 = vpop.f32.mrb[0].mxu0
        %3092 = vmatprep.mubr.bf16.mxu0 %v2283
        %3093 = vmatmul.mubr.bf16.gmra.mrb[0].mxu0 %v1801
        %v3094 = vpop.f32.mrb[0].mxu0
        %v3095 = vadd.f32 0.0, %v3094
        %v3096 = vpop.f32.mrb[0].mxu0
        %v3097 = vpop.f32.mrb[0].mxu0
        %v3098 = vadd.f32 0.0, %v3097
        %v3099 = vpop.f32.mrb[0].mxu0
        %3100 = vmatprep.mubr.bf16.mxu0 %v2286
        %3101 = vmatmul.mubr.bf16.gmra.mrb[0].mxu0 %v1803
        %v3102 = vpop.f32.mrb[0].mxu0
        %v3103 = vadd.f32 0.0, %v3102
        %v3104 = vpop.f32.mrb[0].mxu0
        %v3105 = vpop.f32.mrb[0].mxu0
        %v3106 = vadd.f32 0.0, %v3105
        %v3107 = vpop.f32.mrb[0].mxu0
        %3108 = vmatprep.mubr.bf16.mxu0 %v2289
        %3109 = vmatmul.mubr.bf16.gmra.mrb[0].mxu0 %v1805
        %v3110 = vpop.f32.mrb[0].mxu0
        %v3111 = vadd.f32 0.0, %v3110
        %v3112 = vpop.f32.mrb[0].mxu0
        %v3113 = vpop.f32.mrb[0].mxu0
        %v3114 = vadd.f32 0.0, %v3113
        %v3115 = vpop.f32.mrb[0].mxu0
        %3116 = vmatprep.mubr.bf16.mxu0 %v2292
        %3117 = vmatmul.mubr.bf16.gmra.mrb[0].mxu0 %v1807
        %v3118 = vpop.f32.mrb[0].mxu0
        %v3119 = vadd.f32 0.0, %v3118
        %v3120 = vpop.f32.mrb[0].mxu0
        %v3121 = vpop.f32.mrb[0].mxu0
        %v3122 = vadd.f32 0.0, %v3121
        %v3123 = vpop.f32.mrb[0].mxu0
        %3124 = vmatprep.mubr.bf16.mxu0 %v2295
        %3125 = vmatmul.mubr.bf16.gmra.mrb[0].mxu0 %v1809
        %v3126 = vpop.f32.mrb[0].mxu0
        %v3127 = vadd.f32 0.0, %v3126
        %v3128 = vpop.f32.mrb[0].mxu0
        %v3129 = vpop.f32.mrb[0].mxu0
        %v3130 = vadd.f32 0.0, %v3129
        %v3131 = vpop.f32.mrb[0].mxu0
        %3132 = vmatprep.mubr.bf16.mxu0 %v2298
        %3133 = vmatmul.mubr.bf16.gmra.mrb[0].mxu0 %v1811
        %v3134 = vpop.f32.mrb[0].mxu0
        %v3135 = vadd.f32 0.0, %v3134
        %v3136 = vpop.f32.mrb[0].mxu0
        %v3137 = vpop.f32.mrb[0].mxu0
        %v3138 = vadd.f32 0.0, %v3137
        %v3139 = vpop.f32.mrb[0].mxu0
        %3140 = vmatprep.mubr.bf16.mxu0 %v2301
        %3141 = vmatmul.mubr.bf16.gmra.mrb[0].mxu0 %v1813
        %v3142 = vpop.f32.mrb[0].mxu0
        %v3143 = vadd.f32 0.0, %v3142
        %v3144 = vpop.f32.mrb[0].mxu0
        %v3145 = vpop.f32.mrb[0].mxu0
        %v3146 = vadd.f32 0.0, %v3145
        %v3147 = vpop.f32.mrb[0].mxu0
        %3148 = vmatprep.mubr.bf16.mxu0 %v2304
        %3149 = vmatmul.mubr.bf16.gmra.mrb[0].mxu0 %v1815
        %v3150 = vpop.f32.mrb[0].mxu0
        %v3151 = vadd.f32 0.0, %v3150
        %v3152 = vpop.f32.mrb[0].mxu0
        %v3153 = vpop.f32.mrb[0].mxu0
        %v3154 = vadd.f32 0.0, %v3153
        %v3155 = vpop.f32.mrb[0].mxu0
        %3156 = vmatprep.mubr.bf16.mxu0 %v2307
        %3157 = vmatmul.mubr.bf16.gmra.mrb[0].mxu0 %v1817
        %v3158 = vpop.f32.mrb[0].mxu0
        %v3159 = vadd.f32 0.0, %v3158
        %v3160 = vpop.f32.mrb[0].mxu0
        %v3161 = vpop.f32.mrb[0].mxu0
        %v3162 = vadd.f32 0.0, %v3161
        %v3163 = vpop.f32.mrb[0].mxu0
        %3164 = vmatprep.mubr.bf16.mxu0 %v2310
        %3165 = vmatmul.mubr.bf16.gmra.mrb[0].mxu0 %v1819
        %v3166 = vpop.f32.mrb[0].mxu0
        %v3167 = vadd.f32 0.0, %v3166
        %v3168 = vpop.f32.mrb[0].mxu0
        %v3169 = vpop.f32.mrb[0].mxu0
        %v3170 = vadd.f32 0.0, %v3169
        %v3171 = vpop.f32.mrb[0].mxu0
        %3172 = vmatprep.mubr.bf16.mxu0 %v2313
        %3173 = vmatmul.mubr.bf16.gmra.mrb[0].mxu0 %v1821
        %v3174 = vpop.f32.mrb[0].mxu0
        %v3175 = vadd.f32 0.0, %v3174
        %v3176 = vpop.f32.mrb[0].mxu0
        %v3177 = vpop.f32.mrb[0].mxu0
        %v3178 = vadd.f32 0.0, %v3177
        %v3179 = vpop.f32.mrb[0].mxu0
        %3180 = vmatprep.mubr.bf16.mxu0 %v2316
        %3181 = vmatmul.mubr.bf16.gmra.mrb[0].mxu0 %v1823
        %v3182 = vpop.f32.mrb[0].mxu0
        %v3183 = vadd.f32 0.0, %v3182
        %v3184 = vpop.f32.mrb[0].mxu0
        %v3185 = vpop.f32.mrb[0].mxu0
        %v3186 = vadd.f32 0.0, %v3185
        %v3187 = vpop.f32.mrb[0].mxu0
        %3188 = vmatprep.mubr.bf16.mxu0 %v2319
        %3189 = vmatmul.mubr.bf16.gmra.mrb[0].mxu0 %v1825
        %v3190 = vpop.f32.mrb[0].mxu0
        %v3191 = vadd.f32 0.0, %v3190
        %v3192 = vpop.f32.mrb[0].mxu0
        %v3193 = vpop.f32.mrb[0].mxu0
        %v3194 = vadd.f32 0.0, %v3193
        %v3195 = vpop.f32.mrb[0].mxu0
        %3196 = vmatprep.mubr.bf16.mxu0 %v2322
        %3197 = vmatmul.mubr.bf16.gmra.mrb[0].mxu0 %v1827
        %v3198 = vpop.f32.mrb[0].mxu0
        %v3199 = vadd.f32 0.0, %v3198
        %v3200 = vpop.f32.mrb[0].mxu0
        %v3201 = vpop.f32.mrb[0].mxu0
        %v3202 = vadd.f32 0.0, %v3201
        %v3203 = vpop.f32.mrb[0].mxu0
        %3204 = vmatprep.mubr.bf16.mxu0 %v2325
        %3205 = vmatmul.mubr.bf16.gmra.mrb[0].mxu0 %v1829
        %v3206 = vpop.f32.mrb[0].mxu0
        %v3207 = vadd.f32 0.0, %v3206
        %v3208 = vpop.f32.mrb[0].mxu0
        %v3209 = vpop.f32.mrb[0].mxu0
        %v3210 = vadd.f32 0.0, %v3209
        %v3211 = vpop.f32.mrb[0].mxu0
        %3212 = vmatprep.mubr.bf16.mxu0 %v2328
        %3213 = vmatmul.mubr.bf16.gmra.mrb[0].mxu0 %v1831
        %v3214 = vpop.f32.mrb[0].mxu0
        %v3215 = vadd.f32 0.0, %v3214
        %v3216 = vpop.f32.mrb[0].mxu0
        %v3217 = vpop.f32.mrb[0].mxu0
        %v3218 = vadd.f32 0.0, %v3217
        %v3219 = vpop.f32.mrb[0].mxu0
        %3220 = vmatprep.mubr.bf16.mxu0 %v2331
        %3221 = vmatmul.mubr.bf16.gmra.mrb[0].mxu0 %v1833
        %v3222 = vpop.f32.mrb[0].mxu0
        %v3223 = vadd.f32 0.0, %v3222
        %v3224 = vpop.f32.mrb[0].mxu0
        %v3225 = vpop.f32.mrb[0].mxu0
        %v3226 = vadd.f32 0.0, %v3225
        %v3227 = vpop.f32.mrb[0].mxu0
        %3228 = vmatprep.mubr.bf16.mxu0 %v2334
        %3229 = vmatmul.mubr.bf16.gmra.mrb[0].mxu0 %v1835
        %v3230 = vpop.f32.mrb[0].mxu0
        %v3231 = vadd.f32 0.0, %v3230
        %v3232 = vpop.f32.mrb[0].mxu0
        %v3233 = vpop.f32.mrb[0].mxu0
        %v3234 = vadd.f32 0.0, %v3233
        %v3235 = vpop.f32.mrb[0].mxu0
        %3236 = vmatprep.mubr.bf16.mxu0 %v2337
        %3237 = vmatmul.mubr.bf16.gmra.mrb[0].mxu0 %v1837
        %v3238 = vpop.f32.mrb[0].mxu0
        %v3239 = vadd.f32 0.0, %v3238
        %v3240 = vpop.f32.mrb[0].mxu0
        %v3241 = vpop.f32.mrb[0].mxu0
        %v3242 = vadd.f32 0.0, %v3241
        %v3243 = vpop.f32.mrb[0].mxu0
        %3244 = vmatprep.mubr.bf16.mxu0 %v2340
        %3245 = vmatmul.mubr.bf16.gmra.mrb[0].mxu0 %v1839
        %v3246 = vpop.f32.mrb[0].mxu0
        %v3247 = vadd.f32 0.0, %v3246
        %v3248 = vpop.f32.mrb[0].mxu0
        %v3249 = vpop.f32.mrb[0].mxu0
        %v3250 = vadd.f32 0.0, %v3249
        %v3251 = vpop.f32.mrb[0].mxu0
        %3252 = vmatprep.mubr.bf16.mxu0 %v2343
        %3253 = vmatmul.mubr.bf16.gmra.mrb[0].mxu0 %v1841
        %v3254 = vpop.f32.mrb[0].mxu0
        %v3255 = vadd.f32 0.0, %v3254
        %v3256 = vpop.f32.mrb[0].mxu0
        %v3257 = vpop.f32.mrb[0].mxu0
        %v3258 = vadd.f32 0.0, %v3257
        %v3259 = vpop.f32.mrb[0].mxu0
        %3260 = vmatprep.mubr.bf16.mxu0 %v2346
        %3261 = vmatmul.mubr.bf16.gmra.mrb[0].mxu0 %v1843
        %v3262 = vpop.f32.mrb[0].mxu0
        %v3263 = vadd.f32 0.0, %v3262
        %v3264 = vpop.f32.mrb[0].mxu0
        %v3265 = vpop.f32.mrb[0].mxu0
        %v3266 = vadd.f32 0.0, %v3265
        %v3267 = vpop.f32.mrb[0].mxu0
        %3268 = vmatprep.mubr.bf16.mxu0 %v2349
        %3269 = vmatmul.mubr.bf16.gmra.mrb[0].mxu0 %v1845
        %v3270 = vpop.f32.mrb[0].mxu0
        %v3271 = vadd.f32 0.0, %v3270
        %v3272 = vpop.f32.mrb[0].mxu0
        %v3273 = vpop.f32.mrb[0].mxu0
        %v3274 = vadd.f32 0.0, %v3273
        %v3275 = vpop.f32.mrb[0].mxu0
        %3276 = vmatprep.mubr.bf16.mxu0 %v2352
        %3277 = vmatmul.mubr.bf16.gmra.mrb[0].mxu0 %v1847
        %v3278 = vpop.f32.mrb[0].mxu0
        %v3279 = vadd.f32 0.0, %v3278
        %v3280 = vpop.f32.mrb[0].mxu0
        %v3281 = vpop.f32.mrb[0].mxu0
        %v3282 = vadd.f32 0.0, %v3281
        %v3283 = vpop.f32.mrb[0].mxu0
        %3284 = vmatprep.mubr.bf16.mxu0 %v2355
        %3285 = vmatmul.mubr.bf16.gmra.mrb[0].mxu0 %v1849
        %v3286 = vpop.f32.mrb[0].mxu0
        %v3287 = vadd.f32 0.0, %v3286
        %v3288 = vpop.f32.mrb[0].mxu0
        %v3289 = vpop.f32.mrb[0].mxu0
        %v3290 = vadd.f32 0.0, %v3289
        %v3291 = vpop.f32.mrb[0].mxu0
        %3292 = vdwg.mxu0
        %v3293 = vadd.f32 %v488, %v2399
        %v3294 = vadd.f32 %v489, %v2402
        %v3295 = vadd.f32 %v490, %v2407
        %v3296 = vadd.f32 %v491, %v2410
        %v3297 = vadd.f32 %v492, %v2415
        %v3298 = vadd.f32 %v493, %v2418
        %v3299 = vadd.f32 %v494, %v2423
        %v3300 = vadd.f32 %v495, %v2426
        %v3301 = vadd.f32 %v496, %v2431
        %v3302 = vadd.f32 %v497, %v2434
        %v3303 = vadd.f32 %v498, %v2439
        %v3304 = vadd.f32 %v499, %v2442
        %v3305 = vadd.f32 %v500, %v2447
        %v3306 = vadd.f32 %v501, %v2450
        %v3307 = vadd.f32 %v502, %v2455
        %v3308 = vadd.f32 %v503, %v2458
        %v3309 = vadd.f32 %v504, %v2463
        %v3310 = vadd.f32 %v505, %v2466
        %v3311 = vadd.f32 %v506, %v2471
        %v3312 = vadd.f32 %v507, %v2474
        %v3313 = vadd.f32 %v508, %v2479
        %v3314 = vadd.f32 %v509, %v2482
        %v3315 = vadd.f32 %v510, %v2487
        %v3316 = vadd.f32 %v511, %v2490
        %v3317 = vadd.f32 %v512, %v2495
        %v3318 = vadd.f32 %v513, %v2498
        %v3319 = vadd.f32 %v514, %v2503
        %v3320 = vadd.f32 %v515, %v2506
        %v3321 = vadd.f32 %v516, %v2511
        %v3322 = vadd.f32 %v517, %v2514
        %v3323 = vadd.f32 %v518, %v2519
        %v3324 = vadd.f32 %v519, %v2522
        %v3325 = vadd.f32 %v520, %v2527
        %v3326 = vadd.f32 %v521, %v2530
        %v3327 = vadd.f32 %v522, %v2535
        %v3328 = vadd.f32 %v523, %v2538
        %v3329 = vadd.f32 %v524, %v2543
        %v3330 = vadd.f32 %v525, %v2546
        %v3331 = vadd.f32 %v526, %v2551
        %v3332 = vadd.f32 %v527, %v2554
        %v3333 = vadd.f32 %v528, %v2559
        %v3334 = vadd.f32 %v529, %v2562
        %v3335 = vadd.f32 %v530, %v2567
        %v3336 = vadd.f32 %v531, %v2570
        %v3337 = vadd.f32 %v532, %v2575
        %v3338 = vadd.f32 %v533, %v2578
        %v3339 = vadd.f32 %v534, %v2583
        %v3340 = vadd.f32 %v535, %v2586
        %v3341 = vadd.f32 %v536, %v2591
        %v3342 = vadd.f32 %v537, %v2594
        %v3343 = vadd.f32 %v538, %v2599
        %v3344 = vadd.f32 %v539, %v2602
        %v3345 = vadd.f32 %v540, %v2607
        %v3346 = vadd.f32 %v541, %v2610
        %v3347 = vadd.f32 %v542, %v2615
        %v3348 = vadd.f32 %v543, %v2618
        %v3349 = vadd.f32 %v544, %v2623
        %v3350 = vadd.f32 %v545, %v2626
        %v3351 = vadd.f32 %v546, %v2631
        %v3352 = vadd.f32 %v547, %v2634
        %v3353 = vadd.f32 %v548, %v2639
        %v3354 = vadd.f32 %v549, %v2642
        %v3355 = vadd.f32 %v550, %v2647
        %v3356 = vadd.f32 %v551, %v2650
        %v3357 = vadd.f32 %v552, %v2655
        %v3358 = vadd.f32 %v553, %v2658
        %v3359 = vadd.f32 %v554, %v2663
        %v3360 = vadd.f32 %v555, %v2666
        %v3361 = vadd.f32 %v556, %v2671
        %v3362 = vadd.f32 %v557, %v2674
        %v3363 = vadd.f32 %v558, %v2679
        %v3364 = vadd.f32 %v559, %v2682
        %v3365 = vadd.f32 %v560, %v2687
        %v3366 = vadd.f32 %v561, %v2690
        %v3367 = vadd.f32 %v562, %v2695
        %v3368 = vadd.f32 %v563, %v2698
        %v3369 = vadd.f32 %v564, %v2703
        %v3370 = vadd.f32 %v565, %v2706
        %v3371 = vadd.f32 %v566, %v2711
        %v3372 = vadd.f32 %v567, %v2714
        %v3373 = vadd.f32 %v568, %v2719
        %v3374 = vadd.f32 %v569, %v2722
        %v3375 = vadd.f32 %v570, %v2727
        %v3376 = vadd.f32 %v571, %v2730
        %v3377 = vadd.f32 %v572, %v2735
        %v3378 = vadd.f32 %v573, %v2738
        %v3379 = vadd.f32 %v574, %v2743
        %v3380 = vadd.f32 %v575, %v2746
        %v3381 = vadd.f32 %v576, %v2751
        %v3382 = vadd.f32 %v577, %v2754
        %v3383 = vadd.f32 %v578, %v2759
        %v3384 = vadd.f32 %v579, %v2762
        %v3385 = vadd.f32 %v580, %v2767
        %v3386 = vadd.f32 %v581, %v2770
        %v3387 = vadd.f32 %v582, %v2775
        %v3388 = vadd.f32 %v583, %v2778
        %v3389 = vadd.f32 %v584, %v2783
        %v3390 = vadd.f32 %v585, %v2786
        %v3391 = vadd.f32 %v586, %v2791
        %v3392 = vadd.f32 %v587, %v2794
        %v3393 = vadd.f32 %v588, %v2799
        %v3394 = vadd.f32 %v589, %v2802
        %v3395 = vadd.f32 %v590, %v2807
        %v3396 = vadd.f32 %v591, %v2810
        %v3397 = vadd.f32 %v592, %v2815
        %v3398 = vadd.f32 %v593, %v2818
        %v3399 = vadd.f32 %v594, %v2823
        %v3400 = vadd.f32 %v595, %v2826
        %v3401 = vadd.f32 %v596, %v2831
        %v3402 = vadd.f32 %v597, %v2834
        %v3403 = vadd.f32 %v598, %v2839
        %v3404 = vadd.f32 %v599, %v2842
        %v3405 = vadd.f32 %v600, %v2847
        %v3406 = vadd.f32 %v601, %v2850
        %v3407 = vadd.f32 %v602, %v2855
        %v3408 = vadd.f32 %v603, %v2858
        %v3409 = vadd.f32 %v604, %v2863
        %v3410 = vadd.f32 %v605, %v2866
        %v3411 = vadd.f32 %v606, %v2871
        %v3412 = vadd.f32 %v607, %v2874
        %v3413 = vadd.f32 %v608, %v2879
        %v3414 = vadd.f32 %v609, %v2882
        %v3415 = vadd.f32 %v610, %v2887
        %v3416 = vadd.f32 %v611, %v2890
        %v3417 = vadd.f32 %v612, %v2895
        %v3418 = vadd.f32 %v613, %v2898
        %v3419 = vadd.f32 %v614, %v2903
        %v3420 = vadd.f32 %v615, %v2906
        %v3421 = vadd.f32 %v616, %v2911
        %v3422 = vadd.f32 %v617, %v2914
        %v3423 = vadd.f32 %v618, %v2919
        %v3424 = vadd.f32 %v619, %v2922
        %v3425 = vadd.f32 %v620, %v2927
        %v3426 = vadd.f32 %v621, %v2930
        %v3427 = vadd.f32 %v622, %v2935
        %v3428 = vadd.f32 %v623, %v2938
        %v3429 = vadd.f32 %v624, %v2943
        %v3430 = vadd.f32 %v625, %v2946
        %v3431 = vadd.f32 %v626, %v2951
        %v3432 = vadd.f32 %v627, %v2954
        %v3433 = vadd.f32 %v628, %v2959
        %v3434 = vadd.f32 %v629, %v2962
        %v3435 = vadd.f32 %v630, %v2967
        %v3436 = vadd.f32 %v631, %v2970
        %v3437 = vadd.f32 %v632, %v2975
        %v3438 = vadd.f32 %v633, %v2978
        %v3439 = vadd.f32 %v634, %v2983
        %v3440 = vadd.f32 %v635, %v2986
        %v3441 = vadd.f32 %v636, %v2991
        %v3442 = vadd.f32 %v637, %v2994
        %v3443 = vadd.f32 %v638, %v2999
        %v3444 = vadd.f32 %v639, %v3002
        %v3445 = vadd.f32 %v640, %v3007
        %v3446 = vadd.f32 %v641, %v3010
        %v3447 = vadd.f32 %v642, %v3015
        %v3448 = vadd.f32 %v643, %v3018
        %v3449 = vadd.f32 %v644, %v3023
        %v3450 = vadd.f32 %v645, %v3026
        %v3451 = vadd.f32 %v646, %v3031
        %v3452 = vadd.f32 %v647, %v3034
        %v3453 = vadd.f32 %v648, %v3039
        %v3454 = vadd.f32 %v649, %v3042
        %v3455 = vadd.f32 %v650, %v3047
        %v3456 = vadd.f32 %v651, %v3050
        %v3457 = vadd.f32 %v652, %v3055
        %v3458 = vadd.f32 %v653, %v3058
        %v3459 = vadd.f32 %v654, %v3063
        %v3460 = vadd.f32 %v655, %v3066
        %v3461 = vadd.f32 %v656, %v3071
        %v3462 = vadd.f32 %v657, %v3074
        %v3463 = vadd.f32 %v658, %v3079
        %v3464 = vadd.f32 %v659, %v3082
        %v3465 = vadd.f32 %v660, %v3087
        %v3466 = vadd.f32 %v661, %v3090
        %v3467 = vadd.f32 %v662, %v3095
        %v3468 = vadd.f32 %v663, %v3098
        %v3469 = vadd.f32 %v664, %v3103
        %v3470 = vadd.f32 %v665, %v3106
        %v3471 = vadd.f32 %v666, %v3111
        %v3472 = vadd.f32 %v667, %v3114
        %v3473 = vadd.f32 %v668, %v3119
        %v3474 = vadd.f32 %v669, %v3122
        %v3475 = vadd.f32 %v670, %v3127
        %v3476 = vadd.f32 %v671, %v3130
        %v3477 = vadd.f32 %v672, %v3135
        %v3478 = vadd.f32 %v673, %v3138
        %v3479 = vadd.f32 %v674, %v3143
        %v3480 = vadd.f32 %v675, %v3146
        %v3481 = vadd.f32 %v676, %v3151
        %v3482 = vadd.f32 %v677, %v3154
        %v3483 = vadd.f32 %v678, %v3159
        %v3484 = vadd.f32 %v679, %v3162
        %v3485 = vadd.f32 %v680, %v3167
        %v3486 = vadd.f32 %v681, %v3170
        %v3487 = vadd.f32 %v682, %v3175
        %v3488 = vadd.f32 %v683, %v3178
        %v3489 = vadd.f32 %v684, %v3183
        %v3490 = vadd.f32 %v685, %v3186
        %v3491 = vadd.f32 %v686, %v3191
        %v3492 = vadd.f32 %v687, %v3194
        %v3493 = vadd.f32 %v688, %v3199
        %v3494 = vadd.f32 %v689, %v3202
        %v3495 = vadd.f32 %v690, %v3207
        %v3496 = vadd.f32 %v691, %v3210
        %v3497 = vadd.f32 %v692, %v3215
        %v3498 = vadd.f32 %v693, %v3218
        %v3499 = vadd.f32 %v694, %v3223
        %v3500 = vadd.f32 %v695, %v3226
        %v3501 = vadd.f32 %v696, %v3231
        %v3502 = vadd.f32 %v697, %v3234
        %v3503 = vadd.f32 %v698, %v3239
        %v3504 = vadd.f32 %v699, %v3242
        %v3505 = vadd.f32 %v700, %v3247
        %v3506 = vadd.f32 %v701, %v3250
        %v3507 = vadd.f32 %v702, %v3255
        %v3508 = vadd.f32 %v703, %v3258
        %v3509 = vadd.f32 %v704, %v3263
        %v3510 = vadd.f32 %v705, %v3266
        %v3511 = vadd.f32 %v706, %v3271
        %v3512 = vadd.f32 %v707, %v3274
        %v3513 = vadd.f32 %v708, %v3279
        %v3514 = vadd.f32 %v709, %v3282
        %v3515 = vadd.f32 %v710, %v3287
        %v3516 = vadd.f32 %v711, %v3290
        %3517 = vst [vmem:[#allocation2] sm:$0xff] %v3293
        %3518 = vst [vmem:[#allocation2 + $0x8] sm:$0xff] %v3294
        %3519 = vst [vmem:[#allocation2 + $0x10] sm:$0xff] %v3295
        %3520 = vst [vmem:[#allocation2 + $0x18] sm:$0xff] %v3296
        %3521 = vst [vmem:[#allocation2 + $0x20] sm:$0xff] %v3297
        %3522 = vst [vmem:[#allocation2 + $0x28] sm:$0xff] %v3298
        %3523 = vst [vmem:[#allocation2 + $0x30] sm:$0xff] %v3299
        %3524 = vst [vmem:[#allocation2 + $0x38] sm:$0xff] %v3300
        %3525 = vst [vmem:[#allocation2 + $0x40] sm:$0xff] %v3301
        %3526 = vst [vmem:[#allocation2 + $0x48] sm:$0xff] %v3302
        %3527 = vst [vmem:[#allocation2 + $0x50] sm:$0xff] %v3303
        %3528 = vst [vmem:[#allocation2 + $0x58] sm:$0xff] %v3304
        %3529 = vst [vmem:[#allocation2 + $0x60] sm:$0xff] %v3305
        %3530 = vst [vmem:[#allocation2 + $0x68] sm:$0xff] %v3306
        %3531 = vst [vmem:[#allocation2 + $0x70] sm:$0xff] %v3307
        %3532 = vst [vmem:[#allocation2 + $0x78] sm:$0xff] %v3308
        %3533 = vst [vmem:[#allocation2 + $0x80] sm:$0xff] %v3309
        %3534 = vst [vmem:[#allocation2 + $0x88] sm:$0xff] %v3310
        %3535 = vst [vmem:[#allocation2 + $0x90] sm:$0xff] %v3311
        %3536 = vst [vmem:[#allocation2 + $0x98] sm:$0xff] %v3312
        %3537 = vst [vmem:[#allocation2 + $0xa0] sm:$0xff] %v3313
        %3538 = vst [vmem:[#allocation2 + $0xa8] sm:$0xff] %v3314
        %3539 = vst [vmem:[#allocation2 + $0xb0] sm:$0xff] %v3315
        %3540 = vst [vmem:[#allocation2 + $0xb8] sm:$0xff] %v3316
        %3541 = vst [vmem:[#allocation2 + $0xc0] sm:$0xff] %v3317
        %3542 = vst [vmem:[#allocation2 + $0xc8] sm:$0xff] %v3318
        %3543 = vst [vmem:[#allocation2 + $0xd0] sm:$0xff] %v3319
        %3544 = vst [vmem:[#allocation2 + $0xd8] sm:$0xff] %v3320
        %3545 = vst [vmem:[#allocation2 + $0xe0] sm:$0xff] %v3321
        %3546 = vst [vmem:[#allocation2 + $0xe8] sm:$0xff] %v3322
        %3547 = vst [vmem:[#allocation2 + $0xf0] sm:$0xff] %v3323
        %3548 = vst [vmem:[#allocation2 + $0xf8] sm:$0xff] %v3324
        %3549 = vst [vmem:[#allocation2 + $0x100] sm:$0xff] %v3325
        %3550 = vst [vmem:[#allocation2 + $0x108] sm:$0xff] %v3326
        %3551 = vst [vmem:[#allocation2 + $0x110] sm:$0xff] %v3327
        %3552 = vst [vmem:[#allocation2 + $0x118] sm:$0xff] %v3328
        %3553 = vst [vmem:[#allocation2 + $0x120] sm:$0xff] %v3329
        %3554 = vst [vmem:[#allocation2 + $0x128] sm:$0xff] %v3330
        %3555 = vst [vmem:[#allocation2 + $0x130] sm:$0xff] %v3331
        %3556 = vst [vmem:[#allocation2 + $0x138] sm:$0xff] %v3332
        %3557 = vst [vmem:[#allocation2 + $0x140] sm:$0xff] %v3333
        %3558 = vst [vmem:[#allocation2 + $0x148] sm:$0xff] %v3334
        %3559 = vst [vmem:[#allocation2 + $0x150] sm:$0xff] %v3335
        %3560 = vst [vmem:[#allocation2 + $0x158] sm:$0xff] %v3336
        %3561 = vst [vmem:[#allocation2 + $0x160] sm:$0xff] %v3337
        %3562 = vst [vmem:[#allocation2 + $0x168] sm:$0xff] %v3338
        %3563 = vst [vmem:[#allocation2 + $0x170] sm:$0xff] %v3339
        %3564 = vst [vmem:[#allocation2 + $0x178] sm:$0xff] %v3340
        %3565 = vst [vmem:[#allocation2 + $0x180] sm:$0xff] %v3341
        %3566 = vst [vmem:[#allocation2 + $0x188] sm:$0xff] %v3342
        %3567 = vst [vmem:[#allocation2 + $0x190] sm:$0xff] %v3343
        %3568 = vst [vmem:[#allocation2 + $0x198] sm:$0xff] %v3344
        %3569 = vst [vmem:[#allocation2 + $0x1a0] sm:$0xff] %v3345
        %3570 = vst [vmem:[#allocation2 + $0x1a8] sm:$0xff] %v3346
        %3571 = vst [vmem:[#allocation2 + $0x1b0] sm:$0xff] %v3347
        %3572 = vst [vmem:[#allocation2 + $0x1b8] sm:$0xff] %v3348
        %3573 = vst [vmem:[#allocation2 + $0x1c0] sm:$0xff] %v3349
        %3574 = vst [vmem:[#allocation2 + $0x1c8] sm:$0xff] %v3350
        %3575 = vst [vmem:[#allocation2 + $0x1d0] sm:$0xff] %v3351
        %3576 = vst [vmem:[#allocation2 + $0x1d8] sm:$0xff] %v3352
        %3577 = vst [vmem:[#allocation2 + $0x1e0] sm:$0xff] %v3353
        %3578 = vst [vmem:[#allocation2 + $0x1e8] sm:$0xff] %v3354
        %3579 = vst [vmem:[#allocation2 + $0x1f0] sm:$0xff] %v3355
        %3580 = vst [vmem:[#allocation2 + $0x1f8] sm:$0xff] %v3356
        %3581 = vst [vmem:[#allocation2 + $0x200] sm:$0xff] %v3357
        %3582 = vst [vmem:[#allocation2 + $0x208] sm:$0xff] %v3358
        %3583 = vst [vmem:[#allocation2 + $0x210] sm:$0xff] %v3359
        %3584 = vst [vmem:[#allocation2 + $0x218] sm:$0xff] %v3360
        %3585 = vst [vmem:[#allocation2 + $0x220] sm:$0xff] %v3361
        %3586 = vst [vmem:[#allocation2 + $0x228] sm:$0xff] %v3362
        %3587 = vst [vmem:[#allocation2 + $0x230] sm:$0xff] %v3363
        %3588 = vst [vmem:[#allocation2 + $0x238] sm:$0xff] %v3364
        %3589 = vst [vmem:[#allocation2 + $0x240] sm:$0xff] %v3365
        %3590 = vst [vmem:[#allocation2 + $0x248] sm:$0xff] %v3366
        %3591 = vst [vmem:[#allocation2 + $0x250] sm:$0xff] %v3367
        %3592 = vst [vmem:[#allocation2 + $0x258] sm:$0xff] %v3368
        %3593 = vst [vmem:[#allocation2 + $0x260] sm:$0xff] %v3369
        %3594 = vst [vmem:[#allocation2 + $0x268] sm:$0xff] %v3370
        %3595 = vst [vmem:[#allocation2 + $0x270] sm:$0xff] %v3371
        %3596 = vst [vmem:[#allocation2 + $0x278] sm:$0xff] %v3372
        %3597 = vst [vmem:[#allocation2 + $0x280] sm:$0xff] %v3373
        %3598 = vst [vmem:[#allocation2 + $0x288] sm:$0xff] %v3374
        %3599 = vst [vmem:[#allocation2 + $0x290] sm:$0xff] %v3375
        %3600 = vst [vmem:[#allocation2 + $0x298] sm:$0xff] %v3376
        %3601 = vst [vmem:[#allocation2 + $0x2a0] sm:$0xff] %v3377
        %3602 = vst [vmem:[#allocation2 + $0x2a8] sm:$0xff] %v3378
        %3603 = vst [vmem:[#allocation2 + $0x2b0] sm:$0xff] %v3379
        %3604 = vst [vmem:[#allocation2 + $0x2b8] sm:$0xff] %v3380
        %3605 = vst [vmem:[#allocation2 + $0x2c0] sm:$0xff] %v3381
        %3606 = vst [vmem:[#allocation2 + $0x2c8] sm:$0xff] %v3382
        %3607 = vst [vmem:[#allocation2 + $0x2d0] sm:$0xff] %v3383
        %3608 = vst [vmem:[#allocation2 + $0x2d8] sm:$0xff] %v3384
        %3609 = vst [vmem:[#allocation2 + $0x2e0] sm:$0xff] %v3385
        %3610 = vst [vmem:[#allocation2 + $0x2e8] sm:$0xff] %v3386
        %3611 = vst [vmem:[#allocation2 + $0x2f0] sm:$0xff] %v3387
        %3612 = vst [vmem:[#allocation2 + $0x2f8] sm:$0xff] %v3388
        %3613 = vst [vmem:[#allocation2 + $0x300] sm:$0xff] %v3389
        %3614 = vst [vmem:[#allocation2 + $0x308] sm:$0xff] %v3390
        %3615 = vst [vmem:[#allocation2 + $0x310] sm:$0xff] %v3391
        %3616 = vst [vmem:[#allocation2 + $0x318] sm:$0xff] %v3392
        %3617 = vst [vmem:[#allocation2 + $0x320] sm:$0xff] %v3393
        %3618 = vst [vmem:[#allocation2 + $0x328] sm:$0xff] %v3394
        %3619 = vst [vmem:[#allocation2 + $0x330] sm:$0xff] %v3395
        %3620 = vst [vmem:[#allocation2 + $0x338] sm:$0xff] %v3396
        %3621 = vst [vmem:[#allocation2 + $0x340] sm:$0xff] %v3397
        %3622 = vst [vmem:[#allocation2 + $0x348] sm:$0xff] %v3398
        %3623 = vst [vmem:[#allocation2 + $0x350] sm:$0xff] %v3399
        %3624 = vst [vmem:[#allocation2 + $0x358] sm:$0xff] %v3400
        %3625 = vst [vmem:[#allocation2 + $0x360] sm:$0xff] %v3401
        %3626 = vst [vmem:[#allocation2 + $0x368] sm:$0xff] %v3402
        %3627 = vst [vmem:[#allocation2 + $0x370] sm:$0xff] %v3403
        %3628 = vst [vmem:[#allocation2 + $0x378] sm:$0xff] %v3404
        %3629 = vst [vmem:[#allocation2 + $0x380] sm:$0xff] %v3405
        %3630 = vst [vmem:[#allocation2 + $0x388] sm:$0xff] %v3406
        %3631 = vst [vmem:[#allocation2 + $0x390] sm:$0xff] %v3407
        %3632 = vst [vmem:[#allocation2 + $0x398] sm:$0xff] %v3408
        %3633 = vst [vmem:[#allocation2 + $0x3a0] sm:$0xff] %v3409
        %3634 = vst [vmem:[#allocation2 + $0x3a8] sm:$0xff] %v3410
        %3635 = vst [vmem:[#allocation2 + $0x3b0] sm:$0xff] %v3411
        %3636 = vst [vmem:[#allocation2 + $0x3b8] sm:$0xff] %v3412
        %3637 = vst [vmem:[#allocation2 + $0x3c0] sm:$0xff] %v3413
        %3638 = vst [vmem:[#allocation2 + $0x3c8] sm:$0xff] %v3414
        %3639 = vst [vmem:[#allocation2 + $0x3d0] sm:$0xff] %v3415
        %3640 = vst [vmem:[#allocation2 + $0x3d8] sm:$0xff] %v3416
        %3641 = vst [vmem:[#allocation2 + $0x3e0] sm:$0xff] %v3417
        %3642 = vst [vmem:[#allocation2 + $0x3e8] sm:$0xff] %v3418
        %3643 = vst [vmem:[#allocation2 + $0x3f0] sm:$0xff] %v3419
        %3644 = vst [vmem:[#allocation2 + $0x3f8] sm:$0xff] %v3420
        %3645 = vst [vmem:[#allocation2 + $0x400] sm:$0xff] %v3421
        %3646 = vst [vmem:[#allocation2 + $0x408] sm:$0xff] %v3422
        %3647 = vst [vmem:[#allocation2 + $0x410] sm:$0xff] %v3423
        %3648 = vst [vmem:[#allocation2 + $0x418] sm:$0xff] %v3424
        %3649 = vst [vmem:[#allocation2 + $0x420] sm:$0xff] %v3425
        %3650 = vst [vmem:[#allocation2 + $0x428] sm:$0xff] %v3426
        %3651 = vst [vmem:[#allocation2 + $0x430] sm:$0xff] %v3427
        %3652 = vst [vmem:[#allocation2 + $0x438] sm:$0xff] %v3428
        %3653 = vst [vmem:[#allocation2 + $0x440] sm:$0xff] %v3429
        %3654 = vst [vmem:[#allocation2 + $0x448] sm:$0xff] %v3430
        %3655 = vst [vmem:[#allocation2 + $0x450] sm:$0xff] %v3431
        %3656 = vst [vmem:[#allocation2 + $0x458] sm:$0xff] %v3432
        %3657 = vst [vmem:[#allocation2 + $0x460] sm:$0xff] %v3433
        %3658 = vst [vmem:[#allocation2 + $0x468] sm:$0xff] %v3434
        %3659 = vst [vmem:[#allocation2 + $0x470] sm:$0xff] %v3435
        %3660 = vst [vmem:[#allocation2 + $0x478] sm:$0xff] %v3436
        %3661 = vst [vmem:[#allocation2 + $0x480] sm:$0xff] %v3437
        %3662 = vst [vmem:[#allocation2 + $0x488] sm:$0xff] %v3438
        %3663 = vst [vmem:[#allocation2 + $0x490] sm:$0xff] %v3439
        %3664 = vst [vmem:[#allocation2 + $0x498] sm:$0xff] %v3440
        %3665 = vst [vmem:[#allocation2 + $0x4a0] sm:$0xff] %v3441
        %3666 = vst [vmem:[#allocation2 + $0x4a8] sm:$0xff] %v3442
        %3667 = vst [vmem:[#allocation2 + $0x4b0] sm:$0xff] %v3443
        %3668 = vst [vmem:[#allocation2 + $0x4b8] sm:$0xff] %v3444
        %3669 = vst [vmem:[#allocation2 + $0x4c0] sm:$0xff] %v3445
        %3670 = vst [vmem:[#allocation2 + $0x4c8] sm:$0xff] %v3446
        %3671 = vst [vmem:[#allocation2 + $0x4d0] sm:$0xff] %v3447
        %3672 = vst [vmem:[#allocation2 + $0x4d8] sm:$0xff] %v3448
        %3673 = vst [vmem:[#allocation2 + $0x4e0] sm:$0xff] %v3449
        %3674 = vst [vmem:[#allocation2 + $0x4e8] sm:$0xff] %v3450
        %3675 = vst [vmem:[#allocation2 + $0x4f0] sm:$0xff] %v3451
        %3676 = vst [vmem:[#allocation2 + $0x4f8] sm:$0xff] %v3452
        %3677 = vst [vmem:[#allocation2 + $0x500] sm:$0xff] %v3453
        %3678 = vst [vmem:[#allocation2 + $0x508] sm:$0xff] %v3454
        %3679 = vst [vmem:[#allocation2 + $0x510] sm:$0xff] %v3455
        %3680 = vst [vmem:[#allocation2 + $0x518] sm:$0xff] %v3456
        %3681 = vst [vmem:[#allocation2 + $0x520] sm:$0xff] %v3457
        %3682 = vst [vmem:[#allocation2 + $0x528] sm:$0xff] %v3458
        %3683 = vst [vmem:[#allocation2 + $0x530] sm:$0xff] %v3459
        %3684 = vst [vmem:[#allocation2 + $0x538] sm:$0xff] %v3460
        %3685 = vst [vmem:[#allocation2 + $0x540] sm:$0xff] %v3461
        %3686 = vst [vmem:[#allocation2 + $0x548] sm:$0xff] %v3462
        %3687 = vst [vmem:[#allocation2 + $0x550] sm:$0xff] %v3463
        %3688 = vst [vmem:[#allocation2 + $0x558] sm:$0xff] %v3464
        %3689 = vst [vmem:[#allocation2 + $0x560] sm:$0xff] %v3465
        %3690 = vst [vmem:[#allocation2 + $0x568] sm:$0xff] %v3466
        %3691 = vst [vmem:[#allocation2 + $0x570] sm:$0xff] %v3467
        %3692 = vst [vmem:[#allocation2 + $0x578] sm:$0xff] %v3468
        %3693 = vst [vmem:[#allocation2 + $0x580] sm:$0xff] %v3469
        %3694 = vst [vmem:[#allocation2 + $0x588] sm:$0xff] %v3470
        %3695 = vst [vmem:[#allocation2 + $0x590] sm:$0xff] %v3471
        %3696 = vst [vmem:[#allocation2 + $0x598] sm:$0xff] %v3472
        %3697 = vst [vmem:[#allocation2 + $0x5a0] sm:$0xff] %v3473
        %3698 = vst [vmem:[#allocation2 + $0x5a8] sm:$0xff] %v3474
        %3699 = vst [vmem:[#allocation2 + $0x5b0] sm:$0xff] %v3475
        %3700 = vst [vmem:[#allocation2 + $0x5b8] sm:$0xff] %v3476
        %3701 = vst [vmem:[#allocation2 + $0x5c0] sm:$0xff] %v3477
        %3702 = vst [vmem:[#allocation2 + $0x5c8] sm:$0xff] %v3478
        %3703 = vst [vmem:[#allocation2 + $0x5d0] sm:$0xff] %v3479
        %3704 = vst [vmem:[#allocation2 + $0x5d8] sm:$0xff] %v3480
        %3705 = vst [vmem:[#allocation2 + $0x5e0] sm:$0xff] %v3481
        %3706 = vst [vmem:[#allocation2 + $0x5e8] sm:$0xff] %v3482
        %3707 = vst [vmem:[#allocation2 + $0x5f0] sm:$0xff] %v3483
        %3708 = vst [vmem:[#allocation2 + $0x5f8] sm:$0xff] %v3484
        %3709 = vst [vmem:[#allocation2 + $0x600] sm:$0xff] %v3485
        %3710 = vst [vmem:[#allocation2 + $0x608] sm:$0xff] %v3486
        %3711 = vst [vmem:[#allocation2 + $0x610] sm:$0xff] %v3487
        %3712 = vst [vmem:[#allocation2 + $0x618] sm:$0xff] %v3488
        %3713 = vst [vmem:[#allocation2 + $0x620] sm:$0xff] %v3489
        %3714 = vst [vmem:[#allocation2 + $0x628] sm:$0xff] %v3490
        %3715 = vst [vmem:[#allocation2 + $0x630] sm:$0xff] %v3491
        %3716 = vst [vmem:[#allocation2 + $0x638] sm:$0xff] %v3492
        %3717 = vst [vmem:[#allocation2 + $0x640] sm:$0xff] %v3493
        %3718 = vst [vmem:[#allocation2 + $0x648] sm:$0xff] %v3494
        %3719 = vst [vmem:[#allocation2 + $0x650] sm:$0xff] %v3495
        %3720 = vst [vmem:[#allocation2 + $0x658] sm:$0xff] %v3496
        %3721 = vst [vmem:[#allocation2 + $0x660] sm:$0xff] %v3497
        %3722 = vst [vmem:[#allocation2 + $0x668] sm:$0xff] %v3498
        %3723 = vst [vmem:[#allocation2 + $0x670] sm:$0xff] %v3499
        %3724 = vst [vmem:[#allocation2 + $0x678] sm:$0xff] %v3500
        %3725 = vst [vmem:[#allocation2 + $0x680] sm:$0xff] %v3501
        %3726 = vst [vmem:[#allocation2 + $0x688] sm:$0xff] %v3502
        %3727 = vst [vmem:[#allocation2 + $0x690] sm:$0xff] %v3503
        %3728 = vst [vmem:[#allocation2 + $0x698] sm:$0xff] %v3504
        %3729 = vst [vmem:[#allocation2 + $0x6a0] sm:$0xff] %v3505
        %3730 = vst [vmem:[#allocation2 + $0x6a8] sm:$0xff] %v3506
        %3731 = vst [vmem:[#allocation2 + $0x6b0] sm:$0xff] %v3507
        %3732 = vst [vmem:[#allocation2 + $0x6b8] sm:$0xff] %v3508
        %3733 = vst [vmem:[#allocation2 + $0x6c0] sm:$0xff] %v3509
        %3734 = vst [vmem:[#allocation2 + $0x6c8] sm:$0xff] %v3510
        %3735 = vst [vmem:[#allocation2 + $0x6d0] sm:$0xff] %v3511
        %3736 = vst [vmem:[#allocation2 + $0x6d8] sm:$0xff] %v3512
        %3737 = vst [vmem:[#allocation2 + $0x6e0] sm:$0xff] %v3513
        %3738 = vst [vmem:[#allocation2 + $0x6e8] sm:$0xff] %v3514
        %3739 = vst [vmem:[#allocation2 + $0x6f0] sm:$0xff] %v3515
        %3740 = vst [vmem:[#allocation2 + $0x6f8] sm:$0xff] %v3516
        // Predicated region
        $region37: #{stem_conv_bn.1} parent=31 // pred_check
          %p3741 = pneg %p260
        $region38: #{stem_conv_bn.1} parent=31 // pred_check_branch
          %3743 = sbr.rel (%p3741) target = $region40
        $region39: #{stem_conv_bn.1} parent=31 // pred_region
          %v3744 = vld [vmem:[#allocation2] sm:$0xff]
          %v3745 = vld [vmem:[#allocation2 + $0x8] sm:$0xff]
          %v3746 = vld [vmem:[#allocation2 + $0x10] sm:$0xff]
          %v3747 = vld [vmem:[#allocation2 + $0x18] sm:$0xff]
          %v3748 = vld [vmem:[#allocation2 + $0x20] sm:$0xff]
          %v3749 = vld [vmem:[#allocation2 + $0x28] sm:$0xff]
          %v3750 = vld [vmem:[#allocation2 + $0x30] sm:$0xff]
          %v3751 = vld [vmem:[#allocation2 + $0x38] sm:$0xff]
          %v3752 = vld [vmem:[#allocation2 + $0x40] sm:$0xff]
          %v3753 = vld [vmem:[#allocation2 + $0x48] sm:$0xff]
          %v3754 = vld [vmem:[#allocation2 + $0x50] sm:$0xff]
          %v3755 = vld [vmem:[#allocation2 + $0x58] sm:$0xff]
          %v3756 = vld [vmem:[#allocation2 + $0x60] sm:$0xff]
          %v3757 = vld [vmem:[#allocation2 + $0x68] sm:$0xff]
          %v3758 = vld [vmem:[#allocation2 + $0x70] sm:$0xff]
          %v3759 = vld [vmem:[#allocation2 + $0x78] sm:$0xff]
          %v3760 = vld [vmem:[#allocation2 + $0x80] sm:$0xff]
          %v3761 = vld [vmem:[#allocation2 + $0x88] sm:$0xff]
          %v3762 = vld [vmem:[#allocation2 + $0x90] sm:$0xff]
          %v3763 = vld [vmem:[#allocation2 + $0x98] sm:$0xff]
          %v3764 = vld [vmem:[#allocation2 + $0xa0] sm:$0xff]
          %v3765 = vld [vmem:[#allocation2 + $0xa8] sm:$0xff]
          %v3766 = vld [vmem:[#allocation2 + $0xb0] sm:$0xff]
          %v3767 = vld [vmem:[#allocation2 + $0xb8] sm:$0xff]
          %v3768 = vld [vmem:[#allocation2 + $0xc0] sm:$0xff]
          %v3769 = vld [vmem:[#allocation2 + $0xc8] sm:$0xff]
          %v3770 = vld [vmem:[#allocation2 + $0xd0] sm:$0xff]
          %v3771 = vld [vmem:[#allocation2 + $0xd8] sm:$0xff]
          %v3772 = vld [vmem:[#allocation2 + $0xe0] sm:$0xff]
          %v3773 = vld [vmem:[#allocation2 + $0xe8] sm:$0xff]
          %v3774 = vld [vmem:[#allocation2 + $0xf0] sm:$0xff]
          %v3775 = vld [vmem:[#allocation2 + $0xf8] sm:$0xff]
          %v3776 = vld [vmem:[#allocation2 + $0x100] sm:$0xff]
          %v3777 = vld [vmem:[#allocation2 + $0x108] sm:$0xff]
          %v3778 = vld [vmem:[#allocation2 + $0x110] sm:$0xff]
          %v3779 = vld [vmem:[#allocation2 + $0x118] sm:$0xff]
          %v3780 = vld [vmem:[#allocation2 + $0x120] sm:$0xff]
          %v3781 = vld [vmem:[#allocation2 + $0x128] sm:$0xff]
          %v3782 = vld [vmem:[#allocation2 + $0x130] sm:$0xff]
          %v3783 = vld [vmem:[#allocation2 + $0x138] sm:$0xff]
          %v3784 = vld [vmem:[#allocation2 + $0x140] sm:$0xff]
          %v3785 = vld [vmem:[#allocation2 + $0x148] sm:$0xff]
          %v3786 = vld [vmem:[#allocation2 + $0x150] sm:$0xff]
          %v3787 = vld [vmem:[#allocation2 + $0x158] sm:$0xff]
          %v3788 = vld [vmem:[#allocation2 + $0x160] sm:$0xff]
          %v3789 = vld [vmem:[#allocation2 + $0x168] sm:$0xff]
          %v3790 = vld [vmem:[#allocation2 + $0x170] sm:$0xff]
          %v3791 = vld [vmem:[#allocation2 + $0x178] sm:$0xff]
          %v3792 = vld [vmem:[#allocation2 + $0x180] sm:$0xff]
          %v3793 = vld [vmem:[#allocation2 + $0x188] sm:$0xff]
          %v3794 = vld [vmem:[#allocation2 + $0x190] sm:$0xff]
          %v3795 = vld [vmem:[#allocation2 + $0x198] sm:$0xff]
          %v3796 = vld [vmem:[#allocation2 + $0x1a0] sm:$0xff]
          %v3797 = vld [vmem:[#allocation2 + $0x1a8] sm:$0xff]
          %v3798 = vld [vmem:[#allocation2 + $0x1b0] sm:$0xff]
          %v3799 = vld [vmem:[#allocation2 + $0x1b8] sm:$0xff]
          %v3800 = vld [vmem:[#allocation2 + $0x1c0] sm:$0xff]
          %v3801 = vld [vmem:[#allocation2 + $0x1c8] sm:$0xff]
          %v3802 = vld [vmem:[#allocation2 + $0x1d0] sm:$0xff]
          %v3803 = vld [vmem:[#allocation2 + $0x1d8] sm:$0xff]
          %v3804 = vld [vmem:[#allocation2 + $0x1e0] sm:$0xff]
          %v3805 = vld [vmem:[#allocation2 + $0x1e8] sm:$0xff]
          %v3806 = vld [vmem:[#allocation2 + $0x1f0] sm:$0xff]
          %v3807 = vld [vmem:[#allocation2 + $0x1f8] sm:$0xff]
          %v3808 = vld [vmem:[#allocation2 + $0x200] sm:$0xff]
          %v3809 = vld [vmem:[#allocation2 + $0x208] sm:$0xff]
          %v3810 = vld [vmem:[#allocation2 + $0x210] sm:$0xff]
          %v3811 = vld [vmem:[#allocation2 + $0x218] sm:$0xff]
          %v3812 = vld [vmem:[#allocation2 + $0x220] sm:$0xff]
          %v3813 = vld [vmem:[#allocation2 + $0x228] sm:$0xff]
          %v3814 = vld [vmem:[#allocation2 + $0x230] sm:$0xff]
          %v3815 = vld [vmem:[#allocation2 + $0x238] sm:$0xff]
          %v3816 = vld [vmem:[#allocation2 + $0x240] sm:$0xff]
          %v3817 = vld [vmem:[#allocation2 + $0x248] sm:$0xff]
          %v3818 = vld [vmem:[#allocation2 + $0x250] sm:$0xff]
          %v3819 = vld [vmem:[#allocation2 + $0x258] sm:$0xff]
          %v3820 = vld [vmem:[#allocation2 + $0x260] sm:$0xff]
          %v3821 = vld [vmem:[#allocation2 + $0x268] sm:$0xff]
          %v3822 = vld [vmem:[#allocation2 + $0x270] sm:$0xff]
          %v3823 = vld [vmem:[#allocation2 + $0x278] sm:$0xff]
          %v3824 = vld [vmem:[#allocation2 + $0x280] sm:$0xff]
          %v3825 = vld [vmem:[#allocation2 + $0x288] sm:$0xff]
          %v3826 = vld [vmem:[#allocation2 + $0x290] sm:$0xff]
          %v3827 = vld [vmem:[#allocation2 + $0x298] sm:$0xff]
          %v3828 = vld [vmem:[#allocation2 + $0x2a0] sm:$0xff]
          %v3829 = vld [vmem:[#allocation2 + $0x2a8] sm:$0xff]
          %v3830 = vld [vmem:[#allocation2 + $0x2b0] sm:$0xff]
          %v3831 = vld [vmem:[#allocation2 + $0x2b8] sm:$0xff]
          %v3832 = vld [vmem:[#allocation2 + $0x2c0] sm:$0xff]
          %v3833 = vld [vmem:[#allocation2 + $0x2c8] sm:$0xff]
          %v3834 = vld [vmem:[#allocation2 + $0x2d0] sm:$0xff]
          %v3835 = vld [vmem:[#allocation2 + $0x2d8] sm:$0xff]
          %v3836 = vld [vmem:[#allocation2 + $0x2e0] sm:$0xff]
          %v3837 = vld [vmem:[#allocation2 + $0x2e8] sm:$0xff]
          %v3838 = vld [vmem:[#allocation2 + $0x2f0] sm:$0xff]
          %v3839 = vld [vmem:[#allocation2 + $0x2f8] sm:$0xff]
          %v3840 = vld [vmem:[#allocation2 + $0x300] sm:$0xff]
          %v3841 = vld [vmem:[#allocation2 + $0x308] sm:$0xff]
          %v3842 = vld [vmem:[#allocation2 + $0x310] sm:$0xff]
          %v3843 = vld [vmem:[#allocation2 + $0x318] sm:$0xff]
          %v3844 = vld [vmem:[#allocation2 + $0x320] sm:$0xff]
          %v3845 = vld [vmem:[#allocation2 + $0x328] sm:$0xff]
          %v3846 = vld [vmem:[#allocation2 + $0x330] sm:$0xff]
          %v3847 = vld [vmem:[#allocation2 + $0x338] sm:$0xff]
          %v3848 = vld [vmem:[#allocation2 + $0x340] sm:$0xff]
          %v3849 = vld [vmem:[#allocation2 + $0x348] sm:$0xff]
          %v3850 = vld [vmem:[#allocation2 + $0x350] sm:$0xff]
          %v3851 = vld [vmem:[#allocation2 + $0x358] sm:$0xff]
          %v3852 = vld [vmem:[#allocation2 + $0x360] sm:$0xff]
          %v3853 = vld [vmem:[#allocation2 + $0x368] sm:$0xff]
          %v3854 = vld [vmem:[#allocation2 + $0x370] sm:$0xff]
          %v3855 = vld [vmem:[#allocation2 + $0x378] sm:$0xff]
          %v3856 = vld [vmem:[#allocation2 + $0x380] sm:$0xff]
          %v3857 = vld [vmem:[#allocation2 + $0x388] sm:$0xff]
          %v3858 = vld [vmem:[#allocation2 + $0x390] sm:$0xff]
          %v3859 = vld [vmem:[#allocation2 + $0x398] sm:$0xff]
          %v3860 = vld [vmem:[#allocation2 + $0x3a0] sm:$0xff]
          %v3861 = vld [vmem:[#allocation2 + $0x3a8] sm:$0xff]
          %v3862 = vld [vmem:[#allocation2 + $0x3b0] sm:$0xff]
          %v3863 = vld [vmem:[#allocation2 + $0x3b8] sm:$0xff]
          %v3864 = vld [vmem:[#allocation2 + $0x3c0] sm:$0xff]
          %v3865 = vld [vmem:[#allocation2 + $0x3c8] sm:$0xff]
          %v3866 = vld [vmem:[#allocation2 + $0x3d0] sm:$0xff]
          %v3867 = vld [vmem:[#allocation2 + $0x3d8] sm:$0xff]
          %v3868 = vld [vmem:[#allocation2 + $0x3e0] sm:$0xff]
          %v3869 = vld [vmem:[#allocation2 + $0x3e8] sm:$0xff]
          %v3870 = vld [vmem:[#allocation2 + $0x3f0] sm:$0xff]
          %v3871 = vld [vmem:[#allocation2 + $0x3f8] sm:$0xff]
          %v3872 = vld [vmem:[#allocation2 + $0x400] sm:$0xff]
          %v3873 = vld [vmem:[#allocation2 + $0x408] sm:$0xff]
          %v3874 = vld [vmem:[#allocation2 + $0x410] sm:$0xff]
          %v3875 = vld [vmem:[#allocation2 + $0x418] sm:$0xff]
          %v3876 = vld [vmem:[#allocation2 + $0x420] sm:$0xff]
          %v3877 = vld [vmem:[#allocation2 + $0x428] sm:$0xff]
          %v3878 = vld [vmem:[#allocation2 + $0x430] sm:$0xff]
          %v3879 = vld [vmem:[#allocation2 + $0x438] sm:$0xff]
          %v3880 = vld [vmem:[#allocation2 + $0x440] sm:$0xff]
          %v3881 = vld [vmem:[#allocation2 + $0x448] sm:$0xff]
          %v3882 = vld [vmem:[#allocation2 + $0x450] sm:$0xff]
          %v3883 = vld [vmem:[#allocation2 + $0x458] sm:$0xff]
          %v3884 = vld [vmem:[#allocation2 + $0x460] sm:$0xff]
          %v3885 = vld [vmem:[#allocation2 + $0x468] sm:$0xff]
          %v3886 = vld [vmem:[#allocation2 + $0x470] sm:$0xff]
          %v3887 = vld [vmem:[#allocation2 + $0x478] sm:$0xff]
          %v3888 = vld [vmem:[#allocation2 + $0x480] sm:$0xff]
          %v3889 = vld [vmem:[#allocation2 + $0x488] sm:$0xff]
          %v3890 = vld [vmem:[#allocation2 + $0x490] sm:$0xff]
          %v3891 = vld [vmem:[#allocation2 + $0x498] sm:$0xff]
          %v3892 = vld [vmem:[#allocation2 + $0x4a0] sm:$0xff]
          %v3893 = vld [vmem:[#allocation2 + $0x4a8] sm:$0xff]
          %v3894 = vld [vmem:[#allocation2 + $0x4b0] sm:$0xff]
          %v3895 = vld [vmem:[#allocation2 + $0x4b8] sm:$0xff]
          %v3896 = vld [vmem:[#allocation2 + $0x4c0] sm:$0xff]
          %v3897 = vld [vmem:[#allocation2 + $0x4c8] sm:$0xff]
          %v3898 = vld [vmem:[#allocation2 + $0x4d0] sm:$0xff]
          %v3899 = vld [vmem:[#allocation2 + $0x4d8] sm:$0xff]
          %v3900 = vld [vmem:[#allocation2 + $0x4e0] sm:$0xff]
          %v3901 = vld [vmem:[#allocation2 + $0x4e8] sm:$0xff]
          %v3902 = vld [vmem:[#allocation2 + $0x4f0] sm:$0xff]
          %v3903 = vld [vmem:[#allocation2 + $0x4f8] sm:$0xff]
          %v3904 = vld [vmem:[#allocation2 + $0x500] sm:$0xff]
          %v3905 = vld [vmem:[#allocation2 + $0x508] sm:$0xff]
          %v3906 = vld [vmem:[#allocation2 + $0x510] sm:$0xff]
          %v3907 = vld [vmem:[#allocation2 + $0x518] sm:$0xff]
          %v3908 = vld [vmem:[#allocation2 + $0x520] sm:$0xff]
          %v3909 = vld [vmem:[#allocation2 + $0x528] sm:$0xff]
          %v3910 = vld [vmem:[#allocation2 + $0x530] sm:$0xff]
          %v3911 = vld [vmem:[#allocation2 + $0x538] sm:$0xff]
          %v3912 = vld [vmem:[#allocation2 + $0x540] sm:$0xff]
          %v3913 = vld [vmem:[#allocation2 + $0x548] sm:$0xff]
          %v3914 = vld [vmem:[#allocation2 + $0x550] sm:$0xff]
          %v3915 = vld [vmem:[#allocation2 + $0x558] sm:$0xff]
          %v3916 = vld [vmem:[#allocation2 + $0x560] sm:$0xff]
          %v3917 = vld [vmem:[#allocation2 + $0x568] sm:$0xff]
          %v3918 = vld [vmem:[#allocation2 + $0x570] sm:$0xff]
          %v3919 = vld [vmem:[#allocation2 + $0x578] sm:$0xff]
          %v3920 = vld [vmem:[#allocation2 + $0x580] sm:$0xff]
          %v3921 = vld [vmem:[#allocation2 + $0x588] sm:$0xff]
          %v3922 = vld [vmem:[#allocation2 + $0x590] sm:$0xff]
          %v3923 = vld [vmem:[#allocation2 + $0x598] sm:$0xff]
          %v3924 = vld [vmem:[#allocation2 + $0x5a0] sm:$0xff]
          %v3925 = vld [vmem:[#allocation2 + $0x5a8] sm:$0xff]
          %v3926 = vld [vmem:[#allocation2 + $0x5b0] sm:$0xff]
          %v3927 = vld [vmem:[#allocation2 + $0x5b8] sm:$0xff]
          %v3928 = vld [vmem:[#allocation2 + $0x5c0] sm:$0xff]
          %v3929 = vld [vmem:[#allocation2 + $0x5c8] sm:$0xff]
          %v3930 = vld [vmem:[#allocation2 + $0x5d0] sm:$0xff]
          %v3931 = vld [vmem:[#allocation2 + $0x5d8] sm:$0xff]
          %v3932 = vld [vmem:[#allocation2 + $0x5e0] sm:$0xff]
          %v3933 = vld [vmem:[#allocation2 + $0x5e8] sm:$0xff]
          %v3934 = vld [vmem:[#allocation2 + $0x5f0] sm:$0xff]
          %v3935 = vld [vmem:[#allocation2 + $0x5f8] sm:$0xff]
          %v3936 = vld [vmem:[#allocation2 + $0x600] sm:$0xff]
          %v3937 = vld [vmem:[#allocation2 + $0x608] sm:$0xff]
          %v3938 = vld [vmem:[#allocation2 + $0x610] sm:$0xff]
          %v3939 = vld [vmem:[#allocation2 + $0x618] sm:$0xff]
          %v3940 = vld [vmem:[#allocation2 + $0x620] sm:$0xff]
          %v3941 = vld [vmem:[#allocation2 + $0x628] sm:$0xff]
          %v3942 = vld [vmem:[#allocation2 + $0x630] sm:$0xff]
          %v3943 = vld [vmem:[#allocation2 + $0x638] sm:$0xff]
          %v3944 = vld [vmem:[#allocation2 + $0x640] sm:$0xff]
          %v3945 = vld [vmem:[#allocation2 + $0x648] sm:$0xff]
          %v3946 = vld [vmem:[#allocation2 + $0x650] sm:$0xff]
          %v3947 = vld [vmem:[#allocation2 + $0x658] sm:$0xff]
          %v3948 = vld [vmem:[#allocation2 + $0x660] sm:$0xff]
          %v3949 = vld [vmem:[#allocation2 + $0x668] sm:$0xff]
          %v3950 = vld [vmem:[#allocation2 + $0x670] sm:$0xff]
          %v3951 = vld [vmem:[#allocation2 + $0x678] sm:$0xff]
          %v3952 = vld [vmem:[#allocation2 + $0x680] sm:$0xff]
          %v3953 = vld [vmem:[#allocation2 + $0x688] sm:$0xff]
          %v3954 = vld [vmem:[#allocation2 + $0x690] sm:$0xff]
          %v3955 = vld [vmem:[#allocation2 + $0x698] sm:$0xff]
          %v3956 = vld [vmem:[#allocation2 + $0x6a0] sm:$0xff]
          %v3957 = vld [vmem:[#allocation2 + $0x6a8] sm:$0xff]
          %v3958 = vld [vmem:[#allocation2 + $0x6b0] sm:$0xff]
          %v3959 = vld [vmem:[#allocation2 + $0x6b8] sm:$0xff]
          %v3960 = vld [vmem:[#allocation2 + $0x6c0] sm:$0xff]
          %v3961 = vld [vmem:[#allocation2 + $0x6c8] sm:$0xff]
          %v3962 = vld [vmem:[#allocation2 + $0x6d0] sm:$0xff]
          %v3963 = vld [vmem:[#allocation2 + $0x6d8] sm:$0xff]
          %v3964 = vld [vmem:[#allocation2 + $0x6e0] sm:$0xff]
          %v3965 = vld [vmem:[#allocation2 + $0x6e8] sm:$0xff]
          %v3966 = vld [vmem:[#allocation2 + $0x6f0] sm:$0xff]
          %v3967 = vld [vmem:[#allocation2 + $0x6f8] sm:$0xff]
          %v3968 = vld [vmem:[%s257] sm:$0x1]
          %v3970 = vlaneseq
          %v3971 = vshrl.u32 %v3970, 7
          %v3972 = vsub.s32 0, %v3971
          %v3973 = vrot.slane %v3968, %v3972
          %v3975 = vadd.f32 %v3744, %v3973
          %v3976 = vadd.f32 %v3745, %v3973
          %v3977 = vadd.f32 %v3746, %v3973
          %v3978 = vadd.f32 %v3747, %v3973
          %v3979 = vadd.f32 %v3748, %v3973
          %v3980 = vadd.f32 %v3749, %v3973
          %v3981 = vadd.f32 %v3750, %v3973
          %v3982 = vadd.f32 %v3751, %v3973
          %v3983 = vadd.f32 %v3752, %v3973
          %v3984 = vadd.f32 %v3753, %v3973
          %v3985 = vadd.f32 %v3754, %v3973
          %v3986 = vadd.f32 %v3755, %v3973
          %v3987 = vadd.f32 %v3756, %v3973
          %v3988 = vadd.f32 %v3757, %v3973
          %v3989 = vadd.f32 %v3758, %v3973
          %v3990 = vadd.f32 %v3759, %v3973
          %v3991 = vadd.f32 %v3760, %v3973
          %v3992 = vadd.f32 %v3761, %v3973
          %v3993 = vadd.f32 %v3762, %v3973
          %v3994 = vadd.f32 %v3763, %v3973
          %v3995 = vadd.f32 %v3764, %v3973
          %v3996 = vadd.f32 %v3765, %v3973
          %v3997 = vadd.f32 %v3766, %v3973
          %v3998 = vadd.f32 %v3767, %v3973
          %v3999 = vadd.f32 %v3768, %v3973
          %v4000 = vadd.f32 %v3769, %v3973
          %v4001 = vadd.f32 %v3770, %v3973
          %v4002 = vadd.f32 %v3771, %v3973
          %v4003 = vadd.f32 %v3772, %v3973
          %v4004 = vadd.f32 %v3773, %v3973
          %v4005 = vadd.f32 %v3774, %v3973
          %v4006 = vadd.f32 %v3775, %v3973
          %v4007 = vadd.f32 %v3776, %v3973
          %v4008 = vadd.f32 %v3777, %v3973
          %v4009 = vadd.f32 %v3778, %v3973
          %v4010 = vadd.f32 %v3779, %v3973
          %v4011 = vadd.f32 %v3780, %v3973
          %v4012 = vadd.f32 %v3781, %v3973
          %v4013 = vadd.f32 %v3782, %v3973
          %v4014 = vadd.f32 %v3783, %v3973
          %v4015 = vadd.f32 %v3784, %v3973
          %v4016 = vadd.f32 %v3785, %v3973
          %v4017 = vadd.f32 %v3786, %v3973
          %v4018 = vadd.f32 %v3787, %v3973
          %v4019 = vadd.f32 %v3788, %v3973
          %v4020 = vadd.f32 %v3789, %v3973
          %v4021 = vadd.f32 %v3790, %v3973
          %v4022 = vadd.f32 %v3791, %v3973
          %v4023 = vadd.f32 %v3792, %v3973
          %v4024 = vadd.f32 %v3793, %v3973
          %v4025 = vadd.f32 %v3794, %v3973
          %v4026 = vadd.f32 %v3795, %v3973
          %v4027 = vadd.f32 %v3796, %v3973
          %v4028 = vadd.f32 %v3797, %v3973
          %v4029 = vadd.f32 %v3798, %v3973
          %v4030 = vadd.f32 %v3799, %v3973
          %v4031 = vadd.f32 %v3800, %v3973
          %v4032 = vadd.f32 %v3801, %v3973
          %v4033 = vadd.f32 %v3802, %v3973
          %v4034 = vadd.f32 %v3803, %v3973
          %v4035 = vadd.f32 %v3804, %v3973
          %v4036 = vadd.f32 %v3805, %v3973
          %v4037 = vadd.f32 %v3806, %v3973
          %v4038 = vadd.f32 %v3807, %v3973
          %v4039 = vadd.f32 %v3808, %v3973
          %v4040 = vadd.f32 %v3809, %v3973
          %v4041 = vadd.f32 %v3810, %v3973
          %v4042 = vadd.f32 %v3811, %v3973
          %v4043 = vadd.f32 %v3812, %v3973
          %v4044 = vadd.f32 %v3813, %v3973
          %v4045 = vadd.f32 %v3814, %v3973
          %v4046 = vadd.f32 %v3815, %v3973
          %v4047 = vadd.f32 %v3816, %v3973
          %v4048 = vadd.f32 %v3817, %v3973
          %v4049 = vadd.f32 %v3818, %v3973
          %v4050 = vadd.f32 %v3819, %v3973
          %v4051 = vadd.f32 %v3820, %v3973
          %v4052 = vadd.f32 %v3821, %v3973
          %v4053 = vadd.f32 %v3822, %v3973
          %v4054 = vadd.f32 %v3823, %v3973
          %v4055 = vadd.f32 %v3824, %v3973
          %v4056 = vadd.f32 %v3825, %v3973
          %v4057 = vadd.f32 %v3826, %v3973
          %v4058 = vadd.f32 %v3827, %v3973
          %v4059 = vadd.f32 %v3828, %v3973
          %v4060 = vadd.f32 %v3829, %v3973
          %v4061 = vadd.f32 %v3830, %v3973
          %v4062 = vadd.f32 %v3831, %v3973
          %v4063 = vadd.f32 %v3832, %v3973
          %v4064 = vadd.f32 %v3833, %v3973
          %v4065 = vadd.f32 %v3834, %v3973
          %v4066 = vadd.f32 %v3835, %v3973
          %v4067 = vadd.f32 %v3836, %v3973
          %v4068 = vadd.f32 %v3837, %v3973
          %v4069 = vadd.f32 %v3838, %v3973
          %v4070 = vadd.f32 %v3839, %v3973
          %v4071 = vadd.f32 %v3840, %v3973
          %v4072 = vadd.f32 %v3841, %v3973
          %v4073 = vadd.f32 %v3842, %v3973
          %v4074 = vadd.f32 %v3843, %v3973
          %v4075 = vadd.f32 %v3844, %v3973
          %v4076 = vadd.f32 %v3845, %v3973
          %v4077 = vadd.f32 %v3846, %v3973
          %v4078 = vadd.f32 %v3847, %v3973
          %v4079 = vadd.f32 %v3848, %v3973
          %v4080 = vadd.f32 %v3849, %v3973
          %v4081 = vadd.f32 %v3850, %v3973
          %v4082 = vadd.f32 %v3851, %v3973
          %v4083 = vadd.f32 %v3852, %v3973
          %v4084 = vadd.f32 %v3853, %v3973
          %v4085 = vadd.f32 %v3854, %v3973
          %v4086 = vadd.f32 %v3855, %v3973
          %v4087 = vadd.f32 %v3856, %v3973
          %v4088 = vadd.f32 %v3857, %v3973
          %v4089 = vadd.f32 %v3858, %v3973
          %v4090 = vadd.f32 %v3859, %v3973
          %v4091 = vadd.f32 %v3860, %v3973
          %v4092 = vadd.f32 %v3861, %v3973
          %v4093 = vadd.f32 %v3862, %v3973
          %v4094 = vadd.f32 %v3863, %v3973
          %v4095 = vadd.f32 %v3864, %v3973
          %v4096 = vadd.f32 %v3865, %v3973
          %v4097 = vadd.f32 %v3866, %v3973
          %v4098 = vadd.f32 %v3867, %v3973
          %v4099 = vadd.f32 %v3868, %v3973
          %v4100 = vadd.f32 %v3869, %v3973
          %v4101 = vadd.f32 %v3870, %v3973
          %v4102 = vadd.f32 %v3871, %v3973
          %v4103 = vadd.f32 %v3872, %v3973
          %v4104 = vadd.f32 %v3873, %v3973
          %v4105 = vadd.f32 %v3874, %v3973
          %v4106 = vadd.f32 %v3875, %v3973
          %v4107 = vadd.f32 %v3876, %v3973
          %v4108 = vadd.f32 %v3877, %v3973
          %v4109 = vadd.f32 %v3878, %v3973
          %v4110 = vadd.f32 %v3879, %v3973
          %v4111 = vadd.f32 %v3880, %v3973
          %v4112 = vadd.f32 %v3881, %v3973
          %v4113 = vadd.f32 %v3882, %v3973
          %v4114 = vadd.f32 %v3883, %v3973
          %v4115 = vadd.f32 %v3884, %v3973
          %v4116 = vadd.f32 %v3885, %v3973
          %v4117 = vadd.f32 %v3886, %v3973
          %v4118 = vadd.f32 %v3887, %v3973
          %v4119 = vadd.f32 %v3888, %v3973
          %v4120 = vadd.f32 %v3889, %v3973
          %v4121 = vadd.f32 %v3890, %v3973
          %v4122 = vadd.f32 %v3891, %v3973
          %v4123 = vadd.f32 %v3892, %v3973
          %v4124 = vadd.f32 %v3893, %v3973
          %v4125 = vadd.f32 %v3894, %v3973
          %v4126 = vadd.f32 %v3895, %v3973
          %v4127 = vadd.f32 %v3896, %v3973
          %v4128 = vadd.f32 %v3897, %v3973
          %v4129 = vadd.f32 %v3898, %v3973
          %v4130 = vadd.f32 %v3899, %v3973
          %v4131 = vadd.f32 %v3900, %v3973
          %v4132 = vadd.f32 %v3901, %v3973
          %v4133 = vadd.f32 %v3902, %v3973
          %v4134 = vadd.f32 %v3903, %v3973
          %v4135 = vadd.f32 %v3904, %v3973
          %v4136 = vadd.f32 %v3905, %v3973
          %v4137 = vadd.f32 %v3906, %v3973
          %v4138 = vadd.f32 %v3907, %v3973
          %v4139 = vadd.f32 %v3908, %v3973
          %v4140 = vadd.f32 %v3909, %v3973
          %v4141 = vadd.f32 %v3910, %v3973
          %v4142 = vadd.f32 %v3911, %v3973
          %v4143 = vadd.f32 %v3912, %v3973
          %v4144 = vadd.f32 %v3913, %v3973
          %v4145 = vadd.f32 %v3914, %v3973
          %v4146 = vadd.f32 %v3915, %v3973
          %v4147 = vadd.f32 %v3916, %v3973
          %v4148 = vadd.f32 %v3917, %v3973
          %v4149 = vadd.f32 %v3918, %v3973
          %v4150 = vadd.f32 %v3919, %v3973
          %v4151 = vadd.f32 %v3920, %v3973
          %v4152 = vadd.f32 %v3921, %v3973
          %v4153 = vadd.f32 %v3922, %v3973
          %v4154 = vadd.f32 %v3923, %v3973
          %v4155 = vadd.f32 %v3924, %v3973
          %v4156 = vadd.f32 %v3925, %v3973
          %v4157 = vadd.f32 %v3926, %v3973
          %v4158 = vadd.f32 %v3927, %v3973
          %v4159 = vadd.f32 %v3928, %v3973
          %v4160 = vadd.f32 %v3929, %v3973
          %v4161 = vadd.f32 %v3930, %v3973
          %v4162 = vadd.f32 %v3931, %v3973
          %v4163 = vadd.f32 %v3932, %v3973
          %v4164 = vadd.f32 %v3933, %v3973
          %v4165 = vadd.f32 %v3934, %v3973
          %v4166 = vadd.f32 %v3935, %v3973
          %v4167 = vadd.f32 %v3936, %v3973
          %v4168 = vadd.f32 %v3937, %v3973
          %v4169 = vadd.f32 %v3938, %v3973
          %v4170 = vadd.f32 %v3939, %v3973
          %v4171 = vadd.f32 %v3940, %v3973
          %v4172 = vadd.f32 %v3941, %v3973
          %v4173 = vadd.f32 %v3942, %v3973
          %v4174 = vadd.f32 %v3943, %v3973
          %v4175 = vadd.f32 %v3944, %v3973
          %v4176 = vadd.f32 %v3945, %v3973
          %v4177 = vadd.f32 %v3946, %v3973
          %v4178 = vadd.f32 %v3947, %v3973
          %v4179 = vadd.f32 %v3948, %v3973
          %v4180 = vadd.f32 %v3949, %v3973
          %v4181 = vadd.f32 %v3950, %v3973
          %v4182 = vadd.f32 %v3951, %v3973
          %v4183 = vadd.f32 %v3952, %v3973
          %v4184 = vadd.f32 %v3953, %v3973
          %v4185 = vadd.f32 %v3954, %v3973
          %v4186 = vadd.f32 %v3955, %v3973
          %v4187 = vadd.f32 %v3956, %v3973
          %v4188 = vadd.f32 %v3957, %v3973
          %v4189 = vadd.f32 %v3958, %v3973
          %v4190 = vadd.f32 %v3959, %v3973
          %v4191 = vadd.f32 %v3960, %v3973
          %v4192 = vadd.f32 %v3961, %v3973
          %v4193 = vadd.f32 %v3962, %v3973
          %v4194 = vadd.f32 %v3963, %v3973
          %v4195 = vadd.f32 %v3964, %v3973
          %v4196 = vadd.f32 %v3965, %v3973
          %v4197 = vadd.f32 %v3966, %v3973
          %v4198 = vadd.f32 %v3967, %v3973
          %v4199 = vmax.f32 %v3975, 0.0
          %v4200 = vmax.f32 %v3976, 0.0
          %v4201 = vmax.f32 %v3977, 0.0
          %v4202 = vmax.f32 %v3978, 0.0
          %v4203 = vmax.f32 %v3979, 0.0
          %v4204 = vmax.f32 %v3980, 0.0
          %v4205 = vmax.f32 %v3981, 0.0
          %v4206 = vmax.f32 %v3982, 0.0
          %v4207 = vmax.f32 %v3983, 0.0
          %v4208 = vmax.f32 %v3984, 0.0
          %v4209 = vmax.f32 %v3985, 0.0
          %v4210 = vmax.f32 %v3986, 0.0
          %v4211 = vmax.f32 %v3987, 0.0
          %v4212 = vmax.f32 %v3988, 0.0
          %v4213 = vmax.f32 %v3989, 0.0
          %v4214 = vmax.f32 %v3990, 0.0
          %v4215 = vmax.f32 %v3991, 0.0
          %v4216 = vmax.f32 %v3992, 0.0
          %v4217 = vmax.f32 %v3993, 0.0
          %v4218 = vmax.f32 %v3994, 0.0
          %v4219 = vmax.f32 %v3995, 0.0
          %v4220 = vmax.f32 %v3996, 0.0
          %v4221 = vmax.f32 %v3997, 0.0
          %v4222 = vmax.f32 %v3998, 0.0
          %v4223 = vmax.f32 %v3999, 0.0
          %v4224 = vmax.f32 %v4000, 0.0
          %v4225 = vmax.f32 %v4001, 0.0
          %v4226 = vmax.f32 %v4002, 0.0
          %v4227 = vmax.f32 %v4003, 0.0
          %v4228 = vmax.f32 %v4004, 0.0
          %v4229 = vmax.f32 %v4005, 0.0
          %v4230 = vmax.f32 %v4006, 0.0
          %v4231 = vmax.f32 %v4007, 0.0
          %v4232 = vmax.f32 %v4008, 0.0
          %v4233 = vmax.f32 %v4009, 0.0
          %v4234 = vmax.f32 %v4010, 0.0
          %v4235 = vmax.f32 %v4011, 0.0
          %v4236 = vmax.f32 %v4012, 0.0
          %v4237 = vmax.f32 %v4013, 0.0
          %v4238 = vmax.f32 %v4014, 0.0
          %v4239 = vmax.f32 %v4015, 0.0
          %v4240 = vmax.f32 %v4016, 0.0
          %v4241 = vmax.f32 %v4017, 0.0
          %v4242 = vmax.f32 %v4018, 0.0
          %v4243 = vmax.f32 %v4019, 0.0
          %v4244 = vmax.f32 %v4020, 0.0
          %v4245 = vmax.f32 %v4021, 0.0
          %v4246 = vmax.f32 %v4022, 0.0
          %v4247 = vmax.f32 %v4023, 0.0
          %v4248 = vmax.f32 %v4024, 0.0
          %v4249 = vmax.f32 %v4025, 0.0
          %v4250 = vmax.f32 %v4026, 0.0
          %v4251 = vmax.f32 %v4027, 0.0
          %v4252 = vmax.f32 %v4028, 0.0
          %v4253 = vmax.f32 %v4029, 0.0
          %v4254 = vmax.f32 %v4030, 0.0
          %v4255 = vmax.f32 %v4031, 0.0
          %v4256 = vmax.f32 %v4032, 0.0
          %v4257 = vmax.f32 %v4033, 0.0
          %v4258 = vmax.f32 %v4034, 0.0
          %v4259 = vmax.f32 %v4035, 0.0
          %v4260 = vmax.f32 %v4036, 0.0
          %v4261 = vmax.f32 %v4037, 0.0
          %v4262 = vmax.f32 %v4038, 0.0
          %v4263 = vmax.f32 %v4039, 0.0
          %v4264 = vmax.f32 %v4040, 0.0
          %v4265 = vmax.f32 %v4041, 0.0
          %v4266 = vmax.f32 %v4042, 0.0
          %v4267 = vmax.f32 %v4043, 0.0
          %v4268 = vmax.f32 %v4044, 0.0
          %v4269 = vmax.f32 %v4045, 0.0
          %v4270 = vmax.f32 %v4046, 0.0
          %v4271 = vmax.f32 %v4047, 0.0
          %v4272 = vmax.f32 %v4048, 0.0
          %v4273 = vmax.f32 %v4049, 0.0
          %v4274 = vmax.f32 %v4050, 0.0
          %v4275 = vmax.f32 %v4051, 0.0
          %v4276 = vmax.f32 %v4052, 0.0
          %v4277 = vmax.f32 %v4053, 0.0
          %v4278 = vmax.f32 %v4054, 0.0
          %v4279 = vmax.f32 %v4055, 0.0
          %v4280 = vmax.f32 %v4056, 0.0
          %v4281 = vmax.f32 %v4057, 0.0
          %v4282 = vmax.f32 %v4058, 0.0
          %v4283 = vmax.f32 %v4059, 0.0
          %v4284 = vmax.f32 %v4060, 0.0
          %v4285 = vmax.f32 %v4061, 0.0
          %v4286 = vmax.f32 %v4062, 0.0
          %v4287 = vmax.f32 %v4063, 0.0
          %v4288 = vmax.f32 %v4064, 0.0
          %v4289 = vmax.f32 %v4065, 0.0
          %v4290 = vmax.f32 %v4066, 0.0
          %v4291 = vmax.f32 %v4067, 0.0
          %v4292 = vmax.f32 %v4068, 0.0
          %v4293 = vmax.f32 %v4069, 0.0
          %v4294 = vmax.f32 %v4070, 0.0
          %v4295 = vmax.f32 %v4071, 0.0
          %v4296 = vmax.f32 %v4072, 0.0
          %v4297 = vmax.f32 %v4073, 0.0
          %v4298 = vmax.f32 %v4074, 0.0
          %v4299 = vmax.f32 %v4075, 0.0
          %v4300 = vmax.f32 %v4076, 0.0
          %v4301 = vmax.f32 %v4077, 0.0
          %v4302 = vmax.f32 %v4078, 0.0
          %v4303 = vmax.f32 %v4079, 0.0
          %v4304 = vmax.f32 %v4080, 0.0
          %v4305 = vmax.f32 %v4081, 0.0
          %v4306 = vmax.f32 %v4082, 0.0
          %v4307 = vmax.f32 %v4083, 0.0
          %v4308 = vmax.f32 %v4084, 0.0
          %v4309 = vmax.f32 %v4085, 0.0
          %v4310 = vmax.f32 %v4086, 0.0
          %v4311 = vmax.f32 %v4087, 0.0
          %v4312 = vmax.f32 %v4088, 0.0
          %v4313 = vmax.f32 %v4089, 0.0
          %v4314 = vmax.f32 %v4090, 0.0
          %v4315 = vmax.f32 %v4091, 0.0
          %v4316 = vmax.f32 %v4092, 0.0
          %v4317 = vmax.f32 %v4093, 0.0
          %v4318 = vmax.f32 %v4094, 0.0
          %v4319 = vmax.f32 %v4095, 0.0
          %v4320 = vmax.f32 %v4096, 0.0
          %v4321 = vmax.f32 %v4097, 0.0
          %v4322 = vmax.f32 %v4098, 0.0
          %v4323 = vmax.f32 %v4099, 0.0
          %v4324 = vmax.f32 %v4100, 0.0
          %v4325 = vmax.f32 %v4101, 0.0
          %v4326 = vmax.f32 %v4102, 0.0
          %v4327 = vmax.f32 %v4103, 0.0
          %v4328 = vmax.f32 %v4104, 0.0
          %v4329 = vmax.f32 %v4105, 0.0
          %v4330 = vmax.f32 %v4106, 0.0
          %v4331 = vmax.f32 %v4107, 0.0
          %v4332 = vmax.f32 %v4108, 0.0
          %v4333 = vmax.f32 %v4109, 0.0
          %v4334 = vmax.f32 %v4110, 0.0
          %v4335 = vmax.f32 %v4111, 0.0
          %v4336 = vmax.f32 %v4112, 0.0
          %v4337 = vmax.f32 %v4113, 0.0
          %v4338 = vmax.f32 %v4114, 0.0
          %v4339 = vmax.f32 %v4115, 0.0
          %v4340 = vmax.f32 %v4116, 0.0
          %v4341 = vmax.f32 %v4117, 0.0
          %v4342 = vmax.f32 %v4118, 0.0
          %v4343 = vmax.f32 %v4119, 0.0
          %v4344 = vmax.f32 %v4120, 0.0
          %v4345 = vmax.f32 %v4121, 0.0
          %v4346 = vmax.f32 %v4122, 0.0
          %v4347 = vmax.f32 %v4123, 0.0
          %v4348 = vmax.f32 %v4124, 0.0
          %v4349 = vmax.f32 %v4125, 0.0
          %v4350 = vmax.f32 %v4126, 0.0
          %v4351 = vmax.f32 %v4127, 0.0
          %v4352 = vmax.f32 %v4128, 0.0
          %v4353 = vmax.f32 %v4129, 0.0
          %v4354 = vmax.f32 %v4130, 0.0
          %v4355 = vmax.f32 %v4131, 0.0
          %v4356 = vmax.f32 %v4132, 0.0
          %v4357 = vmax.f32 %v4133, 0.0
          %v4358 = vmax.f32 %v4134, 0.0
          %v4359 = vmax.f32 %v4135, 0.0
          %v4360 = vmax.f32 %v4136, 0.0
          %v4361 = vmax.f32 %v4137, 0.0
          %v4362 = vmax.f32 %v4138, 0.0
          %v4363 = vmax.f32 %v4139, 0.0
          %v4364 = vmax.f32 %v4140, 0.0
          %v4365 = vmax.f32 %v4141, 0.0
          %v4366 = vmax.f32 %v4142, 0.0
          %v4367 = vmax.f32 %v4143, 0.0
          %v4368 = vmax.f32 %v4144, 0.0
          %v4369 = vmax.f32 %v4145, 0.0
          %v4370 = vmax.f32 %v4146, 0.0
          %v4371 = vmax.f32 %v4147, 0.0
          %v4372 = vmax.f32 %v4148, 0.0
          %v4373 = vmax.f32 %v4149, 0.0
          %v4374 = vmax.f32 %v4150, 0.0
          %v4375 = vmax.f32 %v4151, 0.0
          %v4376 = vmax.f32 %v4152, 0.0
          %v4377 = vmax.f32 %v4153, 0.0
          %v4378 = vmax.f32 %v4154, 0.0
          %v4379 = vmax.f32 %v4155, 0.0
          %v4380 = vmax.f32 %v4156, 0.0
          %v4381 = vmax.f32 %v4157, 0.0
          %v4382 = vmax.f32 %v4158, 0.0
          %v4383 = vmax.f32 %v4159, 0.0
          %v4384 = vmax.f32 %v4160, 0.0
          %v4385 = vmax.f32 %v4161, 0.0
          %v4386 = vmax.f32 %v4162, 0.0
          %v4387 = vmax.f32 %v4163, 0.0
          %v4388 = vmax.f32 %v4164, 0.0
          %v4389 = vmax.f32 %v4165, 0.0
          %v4390 = vmax.f32 %v4166, 0.0
          %v4391 = vmax.f32 %v4167, 0.0
          %v4392 = vmax.f32 %v4168, 0.0
          %v4393 = vmax.f32 %v4169, 0.0
          %v4394 = vmax.f32 %v4170, 0.0
          %v4395 = vmax.f32 %v4171, 0.0
          %v4396 = vmax.f32 %v4172, 0.0
          %v4397 = vmax.f32 %v4173, 0.0
          %v4398 = vmax.f32 %v4174, 0.0
          %v4399 = vmax.f32 %v4175, 0.0
          %v4400 = vmax.f32 %v4176, 0.0
          %v4401 = vmax.f32 %v4177, 0.0
          %v4402 = vmax.f32 %v4178, 0.0
          %v4403 = vmax.f32 %v4179, 0.0
          %v4404 = vmax.f32 %v4180, 0.0
          %v4405 = vmax.f32 %v4181, 0.0
          %v4406 = vmax.f32 %v4182, 0.0
          %v4407 = vmax.f32 %v4183, 0.0
          %v4408 = vmax.f32 %v4184, 0.0
          %v4409 = vmax.f32 %v4185, 0.0
          %v4410 = vmax.f32 %v4186, 0.0
          %v4411 = vmax.f32 %v4187, 0.0
          %v4412 = vmax.f32 %v4188, 0.0
          %v4413 = vmax.f32 %v4189, 0.0
          %v4414 = vmax.f32 %v4190, 0.0
          %v4415 = vmax.f32 %v4191, 0.0
          %v4416 = vmax.f32 %v4192, 0.0
          %v4417 = vmax.f32 %v4193, 0.0
          %v4418 = vmax.f32 %v4194, 0.0
          %v4419 = vmax.f32 %v4195, 0.0
          %v4420 = vmax.f32 %v4196, 0.0
          %v4421 = vmax.f32 %v4197, 0.0
          %v4422 = vmax.f32 %v4198, 0.0
          %v4423 = vpack.c.bf16 %v4200, %v4199
          %v4424 = vpack.c.bf16 %v4202, %v4201
          %v4425 = vpack.c.bf16 %v4204, %v4203
          %v4426 = vpack.c.bf16 %v4206, %v4205
          %v4427 = vpack.c.bf16 %v4208, %v4207
          %v4428 = vpack.c.bf16 %v4210, %v4209
          %v4429 = vpack.c.bf16 %v4212, %v4211
          %v4430 = vpack.c.bf16 %v4214, %v4213
          %v4431 = vpack.c.bf16 %v4216, %v4215
          %v4432 = vpack.c.bf16 %v4218, %v4217
          %v4433 = vpack.c.bf16 %v4220, %v4219
          %v4434 = vpack.c.bf16 %v4222, %v4221
          %v4435 = vpack.c.bf16 %v4224, %v4223
          %v4436 = vpack.c.bf16 %v4226, %v4225
          %v4437 = vpack.c.bf16 %v4228, %v4227
          %v4438 = vpack.c.bf16 %v4230, %v4229
          %v4439 = vpack.c.bf16 %v4232, %v4231
          %v4440 = vpack.c.bf16 %v4234, %v4233
          %v4441 = vpack.c.bf16 %v4236, %v4235
          %v4442 = vpack.c.bf16 %v4238, %v4237
          %v4443 = vpack.c.bf16 %v4240, %v4239
          %v4444 = vpack.c.bf16 %v4242, %v4241
          %v4445 = vpack.c.bf16 %v4244, %v4243
          %v4446 = vpack.c.bf16 %v4246, %v4245
          %v4447 = vpack.c.bf16 %v4248, %v4247
          %v4448 = vpack.c.bf16 %v4250, %v4249
          %v4449 = vpack.c.bf16 %v4252, %v4251
          %v4450 = vpack.c.bf16 %v4254, %v4253
          %v4451 = vpack.c.bf16 %v4256, %v4255
          %v4452 = vpack.c.bf16 %v4258, %v4257
          %v4453 = vpack.c.bf16 %v4260, %v4259
          %v4454 = vpack.c.bf16 %v4262, %v4261
          %v4455 = vpack.c.bf16 %v4264, %v4263
          %v4456 = vpack.c.bf16 %v4266, %v4265
          %v4457 = vpack.c.bf16 %v4268, %v4267
          %v4458 = vpack.c.bf16 %v4270, %v4269
          %v4459 = vpack.c.bf16 %v4272, %v4271
          %v4460 = vpack.c.bf16 %v4274, %v4273
          %v4461 = vpack.c.bf16 %v4276, %v4275
          %v4462 = vpack.c.bf16 %v4278, %v4277
          %v4463 = vpack.c.bf16 %v4280, %v4279
          %v4464 = vpack.c.bf16 %v4282, %v4281
          %v4465 = vpack.c.bf16 %v4284, %v4283
          %v4466 = vpack.c.bf16 %v4286, %v4285
          %v4467 = vpack.c.bf16 %v4288, %v4287
          %v4468 = vpack.c.bf16 %v4290, %v4289
          %v4469 = vpack.c.bf16 %v4292, %v4291
          %v4470 = vpack.c.bf16 %v4294, %v4293
          %v4471 = vpack.c.bf16 %v4296, %v4295
          %v4472 = vpack.c.bf16 %v4298, %v4297
          %v4473 = vpack.c.bf16 %v4300, %v4299
          %v4474 = vpack.c.bf16 %v4302, %v4301
          %v4475 = vpack.c.bf16 %v4304, %v4303
          %v4476 = vpack.c.bf16 %v4306, %v4305
          %v4477 = vpack.c.bf16 %v4308, %v4307
          %v4478 = vpack.c.bf16 %v4310, %v4309
          %v4479 = vpack.c.bf16 %v4312, %v4311
          %v4480 = vpack.c.bf16 %v4314, %v4313
          %v4481 = vpack.c.bf16 %v4316, %v4315
          %v4482 = vpack.c.bf16 %v4318, %v4317
          %v4483 = vpack.c.bf16 %v4320, %v4319
          %v4484 = vpack.c.bf16 %v4322, %v4321
          %v4485 = vpack.c.bf16 %v4324, %v4323
          %v4486 = vpack.c.bf16 %v4326, %v4325
          %v4487 = vpack.c.bf16 %v4328, %v4327
          %v4488 = vpack.c.bf16 %v4330, %v4329
          %v4489 = vpack.c.bf16 %v4332, %v4331
          %v4490 = vpack.c.bf16 %v4334, %v4333
          %v4491 = vpack.c.bf16 %v4336, %v4335
          %v4492 = vpack.c.bf16 %v4338, %v4337
          %v4493 = vpack.c.bf16 %v4340, %v4339
          %v4494 = vpack.c.bf16 %v4342, %v4341
          %v4495 = vpack.c.bf16 %v4344, %v4343
          %v4496 = vpack.c.bf16 %v4346, %v4345
          %v4497 = vpack.c.bf16 %v4348, %v4347
          %v4498 = vpack.c.bf16 %v4350, %v4349
          %v4499 = vpack.c.bf16 %v4352, %v4351
          %v4500 = vpack.c.bf16 %v4354, %v4353
          %v4501 = vpack.c.bf16 %v4356, %v4355
          %v4502 = vpack.c.bf16 %v4358, %v4357
          %v4503 = vpack.c.bf16 %v4360, %v4359
          %v4504 = vpack.c.bf16 %v4362, %v4361
          %v4505 = vpack.c.bf16 %v4364, %v4363
          %v4506 = vpack.c.bf16 %v4366, %v4365
          %v4507 = vpack.c.bf16 %v4368, %v4367
          %v4508 = vpack.c.bf16 %v4370, %v4369
          %v4509 = vpack.c.bf16 %v4372, %v4371
          %v4510 = vpack.c.bf16 %v4374, %v4373
          %v4511 = vpack.c.bf16 %v4376, %v4375
          %v4512 = vpack.c.bf16 %v4378, %v4377
          %v4513 = vpack.c.bf16 %v4380, %v4379
          %v4514 = vpack.c.bf16 %v4382, %v4381
          %v4515 = vpack.c.bf16 %v4384, %v4383
          %v4516 = vpack.c.bf16 %v4386, %v4385
          %v4517 = vpack.c.bf16 %v4388, %v4387
          %v4518 = vpack.c.bf16 %v4390, %v4389
          %v4519 = vpack.c.bf16 %v4392, %v4391
          %v4520 = vpack.c.bf16 %v4394, %v4393
          %v4521 = vpack.c.bf16 %v4396, %v4395
          %v4522 = vpack.c.bf16 %v4398, %v4397
          %v4523 = vpack.c.bf16 %v4400, %v4399
          %v4524 = vpack.c.bf16 %v4402, %v4401
          %v4525 = vpack.c.bf16 %v4404, %v4403
          %v4526 = vpack.c.bf16 %v4406, %v4405
          %v4527 = vpack.c.bf16 %v4408, %v4407
          %v4528 = vpack.c.bf16 %v4410, %v4409
          %v4529 = vpack.c.bf16 %v4412, %v4411
          %v4530 = vpack.c.bf16 %v4414, %v4413
          %v4531 = vpack.c.bf16 %v4416, %v4415
          %v4532 = vpack.c.bf16 %v4418, %v4417
          %v4533 = vpack.c.bf16 %v4420, %v4419
          %v4534 = vpack.c.bf16 %v4422, %v4421
          %v4647 = vunpack.c.l.b16 %v4423
          %v4648 = vunpack.c.h.b16 %v4423
          %v4649 = vunpack.c.l.b16 %v4424
          %v4650 = vunpack.c.h.b16 %v4424
          %v4651 = vunpack.c.l.b16 %v4425
          %v4652 = vunpack.c.h.b16 %v4425
          %v4653 = vunpack.c.l.b16 %v4426
          %v4654 = vunpack.c.h.b16 %v4426
          %v4655 = vunpack.c.l.b16 %v4427
          %v4656 = vunpack.c.h.b16 %v4427
          %v4657 = vunpack.c.l.b16 %v4428
          %v4658 = vunpack.c.h.b16 %v4428
          %v4659 = vunpack.c.l.b16 %v4429
          %v4660 = vunpack.c.h.b16 %v4429
          %v4661 = vunpack.c.l.b16 %v4430
          %v4662 = vunpack.c.h.b16 %v4430
          %v4663 = vunpack.c.l.b16 %v4431
          %v4664 = vunpack.c.h.b16 %v4431
          %v4665 = vunpack.c.l.b16 %v4432
          %v4666 = vunpack.c.h.b16 %v4432
          %v4667 = vunpack.c.l.b16 %v4433
          %v4668 = vunpack.c.h.b16 %v4433
          %v4669 = vunpack.c.l.b16 %v4434
          %v4670 = vunpack.c.h.b16 %v4434
          %v4671 = vunpack.c.l.b16 %v4435
          %v4672 = vunpack.c.h.b16 %v4435
          %v4673 = vunpack.c.l.b16 %v4436
          %v4674 = vunpack.c.h.b16 %v4436
          %v4675 = vunpack.c.l.b16 %v4437
          %v4676 = vunpack.c.h.b16 %v4437
          %v4677 = vunpack.c.l.b16 %v4438
          %v4678 = vunpack.c.h.b16 %v4438
          %v4679 = vunpack.c.l.b16 %v4439
          %v4680 = vunpack.c.h.b16 %v4439
          %v4681 = vunpack.c.l.b16 %v4440
          %v4682 = vunpack.c.h.b16 %v4440
          %v4683 = vunpack.c.l.b16 %v4441
          %v4684 = vunpack.c.h.b16 %v4441
          %v4685 = vunpack.c.l.b16 %v4442
          %v4686 = vunpack.c.h.b16 %v4442
          %v4687 = vunpack.c.l.b16 %v4443
          %v4688 = vunpack.c.h.b16 %v4443
          %v4689 = vunpack.c.l.b16 %v4444
          %v4690 = vunpack.c.h.b16 %v4444
          %v4691 = vunpack.c.l.b16 %v4445
          %v4692 = vunpack.c.h.b16 %v4445
          %v4693 = vunpack.c.l.b16 %v4446
          %v4694 = vunpack.c.h.b16 %v4446
          %v4695 = vunpack.c.l.b16 %v4447
          %v4696 = vunpack.c.h.b16 %v4447
          %v4697 = vunpack.c.l.b16 %v4448
          %v4698 = vunpack.c.h.b16 %v4448
          %v4699 = vunpack.c.l.b16 %v4449
          %v4700 = vunpack.c.h.b16 %v4449
          %v4701 = vunpack.c.l.b16 %v4450
          %v4702 = vunpack.c.h.b16 %v4450
          %v4703 = vunpack.c.l.b16 %v4451
          %v4704 = vunpack.c.h.b16 %v4451
          %v4705 = vunpack.c.l.b16 %v4452
          %v4706 = vunpack.c.h.b16 %v4452
          %v4707 = vunpack.c.l.b16 %v4453
          %v4708 = vunpack.c.h.b16 %v4453
          %v4709 = vunpack.c.l.b16 %v4454
          %v4710 = vunpack.c.h.b16 %v4454
          %v4711 = vunpack.c.l.b16 %v4455
          %v4712 = vunpack.c.h.b16 %v4455
          %v4713 = vunpack.c.l.b16 %v4456
          %v4714 = vunpack.c.h.b16 %v4456
          %v4715 = vunpack.c.l.b16 %v4457
          %v4716 = vunpack.c.h.b16 %v4457
          %v4717 = vunpack.c.l.b16 %v4458
          %v4718 = vunpack.c.h.b16 %v4458
          %v4719 = vunpack.c.l.b16 %v4459
          %v4720 = vunpack.c.h.b16 %v4459
          %v4721 = vunpack.c.l.b16 %v4460
          %v4722 = vunpack.c.h.b16 %v4460
          %v4723 = vunpack.c.l.b16 %v4461
          %v4724 = vunpack.c.h.b16 %v4461
          %v4725 = vunpack.c.l.b16 %v4462
          %v4726 = vunpack.c.h.b16 %v4462
          %v4727 = vunpack.c.l.b16 %v4463
          %v4728 = vunpack.c.h.b16 %v4463
          %v4729 = vunpack.c.l.b16 %v4464
          %v4730 = vunpack.c.h.b16 %v4464
          %v4731 = vunpack.c.l.b16 %v4465
          %v4732 = vunpack.c.h.b16 %v4465
          %v4733 = vunpack.c.l.b16 %v4466
          %v4734 = vunpack.c.h.b16 %v4466
          %v4735 = vunpack.c.l.b16 %v4467
          %v4736 = vunpack.c.h.b16 %v4467
          %v4737 = vunpack.c.l.b16 %v4468
          %v4738 = vunpack.c.h.b16 %v4468
          %v4739 = vunpack.c.l.b16 %v4469
          %v4740 = vunpack.c.h.b16 %v4469
          %v4741 = vunpack.c.l.b16 %v4470
          %v4742 = vunpack.c.h.b16 %v4470
          %v4743 = vunpack.c.l.b16 %v4471
          %v4744 = vunpack.c.h.b16 %v4471
          %v4745 = vunpack.c.l.b16 %v4472
          %v4746 = vunpack.c.h.b16 %v4472
          %v4747 = vunpack.c.l.b16 %v4473
          %v4748 = vunpack.c.h.b16 %v4473
          %v4749 = vunpack.c.l.b16 %v4474
          %v4750 = vunpack.c.h.b16 %v4474
          %v4751 = vunpack.c.l.b16 %v4475
          %v4752 = vunpack.c.h.b16 %v4475
          %v4753 = vunpack.c.l.b16 %v4476
          %v4754 = vunpack.c.h.b16 %v4476
          %v4755 = vunpack.c.l.b16 %v4477
          %v4756 = vunpack.c.h.b16 %v4477
          %v4757 = vunpack.c.l.b16 %v4478
          %v4758 = vunpack.c.h.b16 %v4478
          %v4759 = vunpack.c.l.b16 %v4479
          %v4760 = vunpack.c.h.b16 %v4479
          %v4761 = vunpack.c.l.b16 %v4480
          %v4762 = vunpack.c.h.b16 %v4480
          %v4763 = vunpack.c.l.b16 %v4481
          %v4764 = vunpack.c.h.b16 %v4481
          %v4765 = vunpack.c.l.b16 %v4482
          %v4766 = vunpack.c.h.b16 %v4482
          %v4767 = vunpack.c.l.b16 %v4483
          %v4768 = vunpack.c.h.b16 %v4483
          %v4769 = vunpack.c.l.b16 %v4484
          %v4770 = vunpack.c.h.b16 %v4484
          %v4771 = vunpack.c.l.b16 %v4485
          %v4772 = vunpack.c.h.b16 %v4485
          %v4773 = vunpack.c.l.b16 %v4486
          %v4774 = vunpack.c.h.b16 %v4486
          %v4775 = vunpack.c.l.b16 %v4487
          %v4776 = vunpack.c.h.b16 %v4487
          %v4777 = vunpack.c.l.b16 %v4488
          %v4778 = vunpack.c.h.b16 %v4488
          %v4779 = vunpack.c.l.b16 %v4489
          %v4780 = vunpack.c.h.b16 %v4489
          %v4781 = vunpack.c.l.b16 %v4490
          %v4782 = vunpack.c.h.b16 %v4490
          %v4783 = vunpack.c.l.b16 %v4491
          %v4784 = vunpack.c.h.b16 %v4491
          %v4785 = vunpack.c.l.b16 %v4492
          %v4786 = vunpack.c.h.b16 %v4492
          %v4787 = vunpack.c.l.b16 %v4493
          %v4788 = vunpack.c.h.b16 %v4493
          %v4789 = vunpack.c.l.b16 %v4494
          %v4790 = vunpack.c.h.b16 %v4494
          %v4791 = vunpack.c.l.b16 %v4495
          %v4792 = vunpack.c.h.b16 %v4495
          %v4793 = vunpack.c.l.b16 %v4496
          %v4794 = vunpack.c.h.b16 %v4496
          %v4795 = vunpack.c.l.b16 %v4497
          %v4796 = vunpack.c.h.b16 %v4497
          %v4797 = vunpack.c.l.b16 %v4498
          %v4798 = vunpack.c.h.b16 %v4498
          %v4799 = vunpack.c.l.b16 %v4499
          %v4800 = vunpack.c.h.b16 %v4499
          %v4801 = vunpack.c.l.b16 %v4500
          %v4802 = vunpack.c.h.b16 %v4500
          %v4803 = vunpack.c.l.b16 %v4501
          %v4804 = vunpack.c.h.b16 %v4501
          %v4805 = vunpack.c.l.b16 %v4502
          %v4806 = vunpack.c.h.b16 %v4502
          %v4807 = vunpack.c.l.b16 %v4503
          %v4808 = vunpack.c.h.b16 %v4503
          %v4809 = vunpack.c.l.b16 %v4504
          %v4810 = vunpack.c.h.b16 %v4504
          %v4811 = vunpack.c.l.b16 %v4505
          %v4812 = vunpack.c.h.b16 %v4505
          %v4813 = vunpack.c.l.b16 %v4506
          %v4814 = vunpack.c.h.b16 %v4506
          %v4815 = vunpack.c.l.b16 %v4507
          %v4816 = vunpack.c.h.b16 %v4507
          %v4817 = vunpack.c.l.b16 %v4508
          %v4818 = vunpack.c.h.b16 %v4508
          %v4819 = vunpack.c.l.b16 %v4509
          %v4820 = vunpack.c.h.b16 %v4509
          %v4821 = vunpack.c.l.b16 %v4510
          %v4822 = vunpack.c.h.b16 %v4510
          %v4823 = vunpack.c.l.b16 %v4511
          %v4824 = vunpack.c.h.b16 %v4511
          %v4825 = vunpack.c.l.b16 %v4512
          %v4826 = vunpack.c.h.b16 %v4512
          %v4827 = vunpack.c.l.b16 %v4513
          %v4828 = vunpack.c.h.b16 %v4513
          %v4829 = vunpack.c.l.b16 %v4514
          %v4830 = vunpack.c.h.b16 %v4514
          %v4831 = vunpack.c.l.b16 %v4515
          %v4832 = vunpack.c.h.b16 %v4515
          %v4833 = vunpack.c.l.b16 %v4516
          %v4834 = vunpack.c.h.b16 %v4516
          %v4835 = vunpack.c.l.b16 %v4517
          %v4836 = vunpack.c.h.b16 %v4517
          %v4837 = vunpack.c.l.b16 %v4518
          %v4838 = vunpack.c.h.b16 %v4518
          %v4839 = vunpack.c.l.b16 %v4519
          %v4840 = vunpack.c.h.b16 %v4519
          %v4841 = vunpack.c.l.b16 %v4520
          %v4842 = vunpack.c.h.b16 %v4520
          %v4843 = vunpack.c.l.b16 %v4521
          %v4844 = vunpack.c.h.b16 %v4521
          %v4845 = vunpack.c.l.b16 %v4522
          %v4846 = vunpack.c.h.b16 %v4522
          %v4847 = vunpack.c.l.b16 %v4523
          %v4848 = vunpack.c.h.b16 %v4523
          %v4849 = vunpack.c.l.b16 %v4524
          %v4850 = vunpack.c.h.b16 %v4524
          %v4851 = vunpack.c.l.b16 %v4525
          %v4852 = vunpack.c.h.b16 %v4525
          %v4853 = vunpack.c.l.b16 %v4526
          %v4854 = vunpack.c.h.b16 %v4526
          %v4855 = vunpack.c.l.b16 %v4527
          %v4856 = vunpack.c.h.b16 %v4527
          %v4857 = vunpack.c.l.b16 %v4528
          %v4858 = vunpack.c.h.b16 %v4528
          %v4859 = vunpack.c.l.b16 %v4529
          %v4860 = vunpack.c.h.b16 %v4529
          %v4861 = vunpack.c.l.b16 %v4530
          %v4862 = vunpack.c.h.b16 %v4530
          %v4863 = vunpack.c.l.b16 %v4531
          %v4864 = vunpack.c.h.b16 %v4531
          %v4865 = vunpack.c.l.b16 %v4532
          %v4866 = vunpack.c.h.b16 %v4532
          %v4867 = vunpack.c.l.b16 %v4533
          %v4868 = vunpack.c.h.b16 %v4533
          %v4869 = vunpack.c.l.b16 %v4534
          %v4870 = vunpack.c.h.b16 %v4534
          %v4871 = vpack.c.b16 %v4647, %v4647
          %v4872 = vpack.c.b16 %v4648, %v4648
          %v4873 = vpack.c.b16 %v4649, %v4649
          %v4874 = vpack.c.b16 %v4650, %v4650
          %v4875 = vpack.c.b16 %v4651, %v4651
          %v4876 = vpack.c.b16 %v4652, %v4652
          %v4877 = vpack.c.b16 %v4653, %v4653
          %v4878 = vpack.c.b16 %v4654, %v4654
          %v4879 = vpack.c.b16 %v4655, %v4655
          %v4880 = vpack.c.b16 %v4656, %v4656
          %v4881 = vpack.c.b16 %v4657, %v4657
          %v4882 = vpack.c.b16 %v4658, %v4658
          %v4883 = vpack.c.b16 %v4659, %v4659
          %v4884 = vpack.c.b16 %v4660, %v4660
          %v4885 = vpack.c.b16 %v4661, %v4661
          %v4886 = vpack.c.b16 %v4662, %v4662
          %v4887 = vpack.c.b16 %v4663, %v4663
          %v4888 = vpack.c.b16 %v4664, %v4664
          %v4889 = vpack.c.b16 %v4665, %v4665
          %v4890 = vpack.c.b16 %v4666, %v4666
          %v4891 = vpack.c.b16 %v4667, %v4667
          %v4892 = vpack.c.b16 %v4668, %v4668
          %v4893 = vpack.c.b16 %v4669, %v4669
          %v4894 = vpack.c.b16 %v4670, %v4670
          %v4895 = vpack.c.b16 %v4671, %v4671
          %v4896 = vpack.c.b16 %v4672, %v4672
          %v4897 = vpack.c.b16 %v4673, %v4673
          %v4898 = vpack.c.b16 %v4674, %v4674
          %v4899 = vpack.c.b16 %v4675, %v4675
          %v4900 = vpack.c.b16 %v4676, %v4676
          %v4901 = vpack.c.b16 %v4677, %v4677
          %v4902 = vpack.c.b16 %v4678, %v4678
          %v4903 = vpack.c.b16 %v4679, %v4679
          %v4904 = vpack.c.b16 %v4680, %v4680
          %v4905 = vpack.c.b16 %v4681, %v4681
          %v4906 = vpack.c.b16 %v4682, %v4682
          %v4907 = vpack.c.b16 %v4683, %v4683
          %v4908 = vpack.c.b16 %v4684, %v4684
          %v4909 = vpack.c.b16 %v4685, %v4685
          %v4910 = vpack.c.b16 %v4686, %v4686
          %v4911 = vpack.c.b16 %v4687, %v4687
          %v4912 = vpack.c.b16 %v4688, %v4688
          %v4913 = vpack.c.b16 %v4689, %v4689
          %v4914 = vpack.c.b16 %v4690, %v4690
          %v4915 = vpack.c.b16 %v4691, %v4691
          %v4916 = vpack.c.b16 %v4692, %v4692
          %v4917 = vpack.c.b16 %v4693, %v4693
          %v4918 = vpack.c.b16 %v4694, %v4694
          %v4919 = vpack.c.b16 %v4695, %v4695
          %v4920 = vpack.c.b16 %v4696, %v4696
          %v4921 = vpack.c.b16 %v4697, %v4697
          %v4922 = vpack.c.b16 %v4698, %v4698
          %v4923 = vpack.c.b16 %v4699, %v4699
          %v4924 = vpack.c.b16 %v4700, %v4700
          %v4925 = vpack.c.b16 %v4701, %v4701
          %v4926 = vpack.c.b16 %v4702, %v4702
          %v4927 = vpack.c.b16 %v4703, %v4703
          %v4928 = vpack.c.b16 %v4704, %v4704
          %v4929 = vpack.c.b16 %v4705, %v4705
          %v4930 = vpack.c.b16 %v4706, %v4706
          %v4931 = vpack.c.b16 %v4707, %v4707
          %v4932 = vpack.c.b16 %v4708, %v4708
          %v4933 = vpack.c.b16 %v4709, %v4709
          %v4934 = vpack.c.b16 %v4710, %v4710
          %v4935 = vpack.c.b16 %v4711, %v4711
          %v4936 = vpack.c.b16 %v4712, %v4712
          %v4937 = vpack.c.b16 %v4713, %v4713
          %v4938 = vpack.c.b16 %v4714, %v4714
          %v4939 = vpack.c.b16 %v4715, %v4715
          %v4940 = vpack.c.b16 %v4716, %v4716
          %v4941 = vpack.c.b16 %v4717, %v4717
          %v4942 = vpack.c.b16 %v4718, %v4718
          %v4943 = vpack.c.b16 %v4719, %v4719
          %v4944 = vpack.c.b16 %v4720, %v4720
          %v4945 = vpack.c.b16 %v4721, %v4721
          %v4946 = vpack.c.b16 %v4722, %v4722
          %v4947 = vpack.c.b16 %v4723, %v4723
          %v4948 = vpack.c.b16 %v4724, %v4724
          %v4949 = vpack.c.b16 %v4725, %v4725
          %v4950 = vpack.c.b16 %v4726, %v4726
          %v4951 = vpack.c.b16 %v4727, %v4727
          %v4952 = vpack.c.b16 %v4728, %v4728
          %v4953 = vpack.c.b16 %v4729, %v4729
          %v4954 = vpack.c.b16 %v4730, %v4730
          %v4955 = vpack.c.b16 %v4731, %v4731
          %v4956 = vpack.c.b16 %v4732, %v4732
          %v4957 = vpack.c.b16 %v4733, %v4733
          %v4958 = vpack.c.b16 %v4734, %v4734
          %v4959 = vpack.c.b16 %v4735, %v4735
          %v4960 = vpack.c.b16 %v4736, %v4736
          %v4961 = vpack.c.b16 %v4737, %v4737
          %v4962 = vpack.c.b16 %v4738, %v4738
          %v4963 = vpack.c.b16 %v4739, %v4739
          %v4964 = vpack.c.b16 %v4740, %v4740
          %v4965 = vpack.c.b16 %v4741, %v4741
          %v4966 = vpack.c.b16 %v4742, %v4742
          %v4967 = vpack.c.b16 %v4743, %v4743
          %v4968 = vpack.c.b16 %v4744, %v4744
          %v4969 = vpack.c.b16 %v4745, %v4745
          %v4970 = vpack.c.b16 %v4746, %v4746
          %v4971 = vpack.c.b16 %v4747, %v4747
          %v4972 = vpack.c.b16 %v4748, %v4748
          %v4973 = vpack.c.b16 %v4749, %v4749
          %v4974 = vpack.c.b16 %v4750, %v4750
          %v4975 = vpack.c.b16 %v4751, %v4751
          %v4976 = vpack.c.b16 %v4752, %v4752
          %v4977 = vpack.c.b16 %v4753, %v4753
          %v4978 = vpack.c.b16 %v4754, %v4754
          %v4979 = vpack.c.b16 %v4755, %v4755
          %v4980 = vpack.c.b16 %v4756, %v4756
          %v4981 = vpack.c.b16 %v4757, %v4757
          %v4982 = vpack.c.b16 %v4758, %v4758
          %v4983 = vpack.c.b16 %v4759, %v4759
          %v4984 = vpack.c.b16 %v4760, %v4760
          %v4985 = vpack.c.b16 %v4761, %v4761
          %v4986 = vpack.c.b16 %v4762, %v4762
          %v4987 = vpack.c.b16 %v4763, %v4763
          %v4988 = vpack.c.b16 %v4764, %v4764
          %v4989 = vpack.c.b16 %v4765, %v4765
          %v4990 = vpack.c.b16 %v4766, %v4766
          %v4991 = vpack.c.b16 %v4767, %v4767
          %v4992 = vpack.c.b16 %v4768, %v4768
          %v4993 = vpack.c.b16 %v4769, %v4769
          %v4994 = vpack.c.b16 %v4770, %v4770
          %v4995 = vpack.c.b16 %v4771, %v4771
          %v4996 = vpack.c.b16 %v4772, %v4772
          %v4997 = vpack.c.b16 %v4773, %v4773
          %v4998 = vpack.c.b16 %v4774, %v4774
          %v4999 = vpack.c.b16 %v4775, %v4775
          %v5000 = vpack.c.b16 %v4776, %v4776
          %v5001 = vpack.c.b16 %v4777, %v4777
          %v5002 = vpack.c.b16 %v4778, %v4778
          %v5003 = vpack.c.b16 %v4779, %v4779
          %v5004 = vpack.c.b16 %v4780, %v4780
          %v5005 = vpack.c.b16 %v4781, %v4781
          %v5006 = vpack.c.b16 %v4782, %v4782
          %v5007 = vpack.c.b16 %v4783, %v4783
          %v5008 = vpack.c.b16 %v4784, %v4784
          %v5009 = vpack.c.b16 %v4785, %v4785
          %v5010 = vpack.c.b16 %v4786, %v4786
          %v5011 = vpack.c.b16 %v4787, %v4787
          %v5012 = vpack.c.b16 %v4788, %v4788
          %v5013 = vpack.c.b16 %v4789, %v4789
          %v5014 = vpack.c.b16 %v4790, %v4790
          %v5015 = vpack.c.b16 %v4791, %v4791
          %v5016 = vpack.c.b16 %v4792, %v4792
          %v5017 = vpack.c.b16 %v4793, %v4793
          %v5018 = vpack.c.b16 %v4794, %v4794
          %v5019 = vpack.c.b16 %v4795, %v4795
          %v5020 = vpack.c.b16 %v4796, %v4796
          %v5021 = vpack.c.b16 %v4797, %v4797
          %v5022 = vpack.c.b16 %v4798, %v4798
          %v5023 = vpack.c.b16 %v4799, %v4799
          %v5024 = vpack.c.b16 %v4800, %v4800
          %v5025 = vpack.c.b16 %v4801, %v4801
          %v5026 = vpack.c.b16 %v4802, %v4802
          %v5027 = vpack.c.b16 %v4803, %v4803
          %v5028 = vpack.c.b16 %v4804, %v4804
          %v5029 = vpack.c.b16 %v4805, %v4805
          %v5030 = vpack.c.b16 %v4806, %v4806
          %v5031 = vpack.c.b16 %v4807, %v4807
          %v5032 = vpack.c.b16 %v4808, %v4808
          %v5033 = vpack.c.b16 %v4809, %v4809
          %v5034 = vpack.c.b16 %v4810, %v4810
          %v5035 = vpack.c.b16 %v4811, %v4811
          %v5036 = vpack.c.b16 %v4812, %v4812
          %v5037 = vpack.c.b16 %v4813, %v4813
          %v5038 = vpack.c.b16 %v4814, %v4814
          %v5039 = vpack.c.b16 %v4815, %v4815
          %v5040 = vpack.c.b16 %v4816, %v4816
          %v5041 = vpack.c.b16 %v4817, %v4817
          %v5042 = vpack.c.b16 %v4818, %v4818
          %v5043 = vpack.c.b16 %v4819, %v4819
          %v5044 = vpack.c.b16 %v4820, %v4820
          %v5045 = vpack.c.b16 %v4821, %v4821
          %v5046 = vpack.c.b16 %v4822, %v4822
          %v5047 = vpack.c.b16 %v4823, %v4823
          %v5048 = vpack.c.b16 %v4824, %v4824
          %v5049 = vpack.c.b16 %v4825, %v4825
          %v5050 = vpack.c.b16 %v4826, %v4826
          %v5051 = vpack.c.b16 %v4827, %v4827
          %v5052 = vpack.c.b16 %v4828, %v4828
          %v5053 = vpack.c.b16 %v4829, %v4829
          %v5054 = vpack.c.b16 %v4830, %v4830
          %v5055 = vpack.c.b16 %v4831, %v4831
          %v5056 = vpack.c.b16 %v4832, %v4832
          %v5057 = vpack.c.b16 %v4833, %v4833
          %v5058 = vpack.c.b16 %v4834, %v4834
          %v5059 = vpack.c.b16 %v4835, %v4835
          %v5060 = vpack.c.b16 %v4836, %v4836
          %v5061 = vpack.c.b16 %v4837, %v4837
          %v5062 = vpack.c.b16 %v4838, %v4838
          %v5063 = vpack.c.b16 %v4839, %v4839
          %v5064 = vpack.c.b16 %v4840, %v4840
          %v5065 = vpack.c.b16 %v4841, %v4841
          %v5066 = vpack.c.b16 %v4842, %v4842
          %v5067 = vpack.c.b16 %v4843, %v4843
          %v5068 = vpack.c.b16 %v4844, %v4844
          %v5069 = vpack.c.b16 %v4845, %v4845
          %v5070 = vpack.c.b16 %v4846, %v4846
          %v5071 = vpack.c.b16 %v4847, %v4847
          %v5072 = vpack.c.b16 %v4848, %v4848
          %v5073 = vpack.c.b16 %v4849, %v4849
          %v5074 = vpack.c.b16 %v4850, %v4850
          %v5075 = vpack.c.b16 %v4851, %v4851
          %v5076 = vpack.c.b16 %v4852, %v4852
          %v5077 = vpack.c.b16 %v4853, %v4853
          %v5078 = vpack.c.b16 %v4854, %v4854
          %v5079 = vpack.c.b16 %v4855, %v4855
          %v5080 = vpack.c.b16 %v4856, %v4856
          %v5081 = vpack.c.b16 %v4857, %v4857
          %v5082 = vpack.c.b16 %v4858, %v4858
          %v5083 = vpack.c.b16 %v4859, %v4859
          %v5084 = vpack.c.b16 %v4860, %v4860
          %v5085 = vpack.c.b16 %v4861, %v4861
          %v5086 = vpack.c.b16 %v4862, %v4862
          %v5087 = vpack.c.b16 %v4863, %v4863
          %v5088 = vpack.c.b16 %v4864, %v4864
          %v5089 = vpack.c.b16 %v4865, %v4865
          %v5090 = vpack.c.b16 %v4866, %v4866
          %v5091 = vpack.c.b16 %v4867, %v4867
          %v5092 = vpack.c.b16 %v4868, %v4868
          %v5093 = vpack.c.b16 %v4869, %v4869
          %v5094 = vpack.c.b16 %v4870, %v4870
          %5319 = vst [vmem:[%s233] sm:$0xf] %v4871
          %5320 = vst [vmem:[%s233 + $0x4] sm:$0xf] %v4872
          %5321 = vst [vmem:[%s233 + $0x8] sm:$0xf] %v4873
          %5322 = vst [vmem:[%s233 + $0xc] sm:$0xf] %v4874
          %5323 = vst [vmem:[%s233 + $0x10] sm:$0xf] %v4875
          %5324 = vst [vmem:[%s233 + $0x14] sm:$0xf] %v4876
          %5325 = vst [vmem:[%s233 + $0x18] sm:$0xf] %v4877
          %5326 = vst [vmem:[%s233 + $0x1c] sm:$0xf] %v4878
          %5327 = vst [vmem:[%s233 + $0x20] sm:$0xf] %v4879
          %5328 = vst [vmem:[%s233 + $0x24] sm:$0xf] %v4880
          %5329 = vst [vmem:[%s233 + $0x28] sm:$0xf] %v4881
          %5330 = vst [vmem:[%s233 + $0x2c] sm:$0xf] %v4882
          %5331 = vst [vmem:[%s233 + $0x30] sm:$0xf] %v4883
          %5332 = vst [vmem:[%s233 + $0x34] sm:$0xf] %v4884
          %5333 = vst [vmem:[%s233 + $0x38] sm:$0xf] %v4885
          %5334 = vst [vmem:[%s233 + $0x3c] sm:$0xf] %v4886
          %5335 = vst [vmem:[%s233 + $0x40] sm:$0xf] %v4887
          %5336 = vst [vmem:[%s233 + $0x44] sm:$0xf] %v4888
          %5337 = vst [vmem:[%s233 + $0x48] sm:$0xf] %v4889
          %5338 = vst [vmem:[%s233 + $0x4c] sm:$0xf] %v4890
          %5339 = vst [vmem:[%s233 + $0x50] sm:$0xf] %v4891
          %5340 = vst [vmem:[%s233 + $0x54] sm:$0xf] %v4892
          %5341 = vst [vmem:[%s233 + $0x58] sm:$0xf] %v4893
          %5342 = vst [vmem:[%s233 + $0x5c] sm:$0xf] %v4894
          %5343 = vst [vmem:[%s233 + $0x60] sm:$0xf] %v4895
          %5344 = vst [vmem:[%s233 + $0x64] sm:$0xf] %v4896
          %5345 = vst [vmem:[%s233 + $0x68] sm:$0xf] %v4897
          %5346 = vst [vmem:[%s233 + $0x6c] sm:$0xf] %v4898
          %5347 = vst [vmem:[%s233 + $0x70] sm:$0xf] %v4899
          %5348 = vst [vmem:[%s233 + $0x74] sm:$0xf] %v4900
          %5349 = vst [vmem:[%s233 + $0x78] sm:$0xf] %v4901
          %5350 = vst [vmem:[%s233 + $0x7c] sm:$0xf] %v4902
          %5351 = vst [vmem:[%s233 + $0x80] sm:$0xf] %v4903
          %5352 = vst [vmem:[%s233 + $0x84] sm:$0xf] %v4904
          %5353 = vst [vmem:[%s233 + $0x88] sm:$0xf] %v4905
          %5354 = vst [vmem:[%s233 + $0x8c] sm:$0xf] %v4906
          %5355 = vst [vmem:[%s233 + $0x90] sm:$0xf] %v4907
          %5356 = vst [vmem:[%s233 + $0x94] sm:$0xf] %v4908
          %5357 = vst [vmem:[%s233 + $0x98] sm:$0xf] %v4909
          %5358 = vst [vmem:[%s233 + $0x9c] sm:$0xf] %v4910
          %5359 = vst [vmem:[%s233 + $0xa0] sm:$0xf] %v4911
          %5360 = vst [vmem:[%s233 + $0xa4] sm:$0xf] %v4912
          %5361 = vst [vmem:[%s233 + $0xa8] sm:$0xf] %v4913
          %5362 = vst [vmem:[%s233 + $0xac] sm:$0xf] %v4914
          %5363 = vst [vmem:[%s233 + $0xb0] sm:$0xf] %v4915
          %5364 = vst [vmem:[%s233 + $0xb4] sm:$0xf] %v4916
          %5365 = vst [vmem:[%s233 + $0xb8] sm:$0xf] %v4917
          %5366 = vst [vmem:[%s233 + $0xbc] sm:$0xf] %v4918
          %5367 = vst [vmem:[%s233 + $0xc0] sm:$0xf] %v4919
          %5368 = vst [vmem:[%s233 + $0xc4] sm:$0xf] %v4920
          %5369 = vst [vmem:[%s233 + $0xc8] sm:$0xf] %v4921
          %5370 = vst [vmem:[%s233 + $0xcc] sm:$0xf] %v4922
          %5371 = vst [vmem:[%s233 + $0xd0] sm:$0xf] %v4923
          %5372 = vst [vmem:[%s233 + $0xd4] sm:$0xf] %v4924
          %5373 = vst [vmem:[%s233 + $0xd8] sm:$0xf] %v4925
          %5374 = vst [vmem:[%s233 + $0xdc] sm:$0xf] %v4926
          %5375 = vst [vmem:[%s233 + $0xe0] sm:$0xf] %v4927
          %5376 = vst [vmem:[%s233 + $0xe4] sm:$0xf] %v4928
          %5377 = vst [vmem:[%s233 + $0xe8] sm:$0xf] %v4929
          %5378 = vst [vmem:[%s233 + $0xec] sm:$0xf] %v4930
          %5379 = vst [vmem:[%s233 + $0xf0] sm:$0xf] %v4931
          %5380 = vst [vmem:[%s233 + $0xf4] sm:$0xf] %v4932
          %5381 = vst [vmem:[%s233 + $0xf8] sm:$0xf] %v4933
          %5382 = vst [vmem:[%s233 + $0xfc] sm:$0xf] %v4934
          %5383 = vst [vmem:[%s233 + $0x100] sm:$0xf] %v4935
          %5384 = vst [vmem:[%s233 + $0x104] sm:$0xf] %v4936
          %5385 = vst [vmem:[%s233 + $0x108] sm:$0xf] %v4937
          %5386 = vst [vmem:[%s233 + $0x10c] sm:$0xf] %v4938
          %5387 = vst [vmem:[%s233 + $0x110] sm:$0xf] %v4939
          %5388 = vst [vmem:[%s233 + $0x114] sm:$0xf] %v4940
          %5389 = vst [vmem:[%s233 + $0x118] sm:$0xf] %v4941
          %5390 = vst [vmem:[%s233 + $0x11c] sm:$0xf] %v4942
          %5391 = vst [vmem:[%s233 + $0x120] sm:$0xf] %v4943
          %5392 = vst [vmem:[%s233 + $0x124] sm:$0xf] %v4944
          %5393 = vst [vmem:[%s233 + $0x128] sm:$0xf] %v4945
          %5394 = vst [vmem:[%s233 + $0x12c] sm:$0xf] %v4946
          %5395 = vst [vmem:[%s233 + $0x130] sm:$0xf] %v4947
          %5396 = vst [vmem:[%s233 + $0x134] sm:$0xf] %v4948
          %5397 = vst [vmem:[%s233 + $0x138] sm:$0xf] %v4949
          %5398 = vst [vmem:[%s233 + $0x13c] sm:$0xf] %v4950
          %5399 = vst [vmem:[%s233 + $0x140] sm:$0xf] %v4951
          %5400 = vst [vmem:[%s233 + $0x144] sm:$0xf] %v4952
          %5401 = vst [vmem:[%s233 + $0x148] sm:$0xf] %v4953
          %5402 = vst [vmem:[%s233 + $0x14c] sm:$0xf] %v4954
          %5403 = vst [vmem:[%s233 + $0x150] sm:$0xf] %v4955
          %5404 = vst [vmem:[%s233 + $0x154] sm:$0xf] %v4956
          %5405 = vst [vmem:[%s233 + $0x158] sm:$0xf] %v4957
          %5406 = vst [vmem:[%s233 + $0x15c] sm:$0xf] %v4958
          %5407 = vst [vmem:[%s233 + $0x160] sm:$0xf] %v4959
          %5408 = vst [vmem:[%s233 + $0x164] sm:$0xf] %v4960
          %5409 = vst [vmem:[%s233 + $0x168] sm:$0xf] %v4961
          %5410 = vst [vmem:[%s233 + $0x16c] sm:$0xf] %v4962
          %5411 = vst [vmem:[%s233 + $0x170] sm:$0xf] %v4963
          %5412 = vst [vmem:[%s233 + $0x174] sm:$0xf] %v4964
          %5413 = vst [vmem:[%s233 + $0x178] sm:$0xf] %v4965
          %5414 = vst [vmem:[%s233 + $0x17c] sm:$0xf] %v4966
          %5415 = vst [vmem:[%s233 + $0x180] sm:$0xf] %v4967
          %5416 = vst [vmem:[%s233 + $0x184] sm:$0xf] %v4968
          %5417 = vst [vmem:[%s233 + $0x188] sm:$0xf] %v4969
          %5418 = vst [vmem:[%s233 + $0x18c] sm:$0xf] %v4970
          %5419 = vst [vmem:[%s233 + $0x190] sm:$0xf] %v4971
          %5420 = vst [vmem:[%s233 + $0x194] sm:$0xf] %v4972
          %5421 = vst [vmem:[%s233 + $0x198] sm:$0xf] %v4973
          %5422 = vst [vmem:[%s233 + $0x19c] sm:$0xf] %v4974
          %5423 = vst [vmem:[%s233 + $0x1a0] sm:$0xf] %v4975
          %5424 = vst [vmem:[%s233 + $0x1a4] sm:$0xf] %v4976
          %5425 = vst [vmem:[%s233 + $0x1a8] sm:$0xf] %v4977
          %5426 = vst [vmem:[%s233 + $0x1ac] sm:$0xf] %v4978
          %5427 = vst [vmem:[%s233 + $0x1b0] sm:$0xf] %v4979
          %5428 = vst [vmem:[%s233 + $0x1b4] sm:$0xf] %v4980
          %5429 = vst [vmem:[%s233 + $0x1b8] sm:$0xf] %v4981
          %5430 = vst [vmem:[%s233 + $0x1bc] sm:$0xf] %v4982
          %5431 = vst [vmem:[%s233 + $0x1c0] sm:$0xf] %v4983
          %5432 = vst [vmem:[%s233 + $0x1c4] sm:$0xf] %v4984
          %5433 = vst [vmem:[%s233 + $0x1c8] sm:$0xf] %v4985
          %5434 = vst [vmem:[%s233 + $0x1cc] sm:$0xf] %v4986
          %5435 = vst [vmem:[%s233 + $0x1d0] sm:$0xf] %v4987
          %5436 = vst [vmem:[%s233 + $0x1d4] sm:$0xf] %v4988
          %5437 = vst [vmem:[%s233 + $0x1d8] sm:$0xf] %v4989
          %5438 = vst [vmem:[%s233 + $0x1dc] sm:$0xf] %v4990
          %5439 = vst [vmem:[%s233 + $0x1e0] sm:$0xf] %v4991
          %5440 = vst [vmem:[%s233 + $0x1e4] sm:$0xf] %v4992
          %5441 = vst [vmem:[%s233 + $0x1e8] sm:$0xf] %v4993
          %5442 = vst [vmem:[%s233 + $0x1ec] sm:$0xf] %v4994
          %5443 = vst [vmem:[%s233 + $0x1f0] sm:$0xf] %v4995
          %5444 = vst [vmem:[%s233 + $0x1f4] sm:$0xf] %v4996
          %5445 = vst [vmem:[%s233 + $0x1f8] sm:$0xf] %v4997
          %5446 = vst [vmem:[%s233 + $0x1fc] sm:$0xf] %v4998
          %5447 = vst [vmem:[%s233 + $0x200] sm:$0xf] %v4999
          %5448 = vst [vmem:[%s233 + $0x204] sm:$0xf] %v5000
          %5449 = vst [vmem:[%s233 + $0x208] sm:$0xf] %v5001
          %5450 = vst [vmem:[%s233 + $0x20c] sm:$0xf] %v5002
          %5451 = vst [vmem:[%s233 + $0x210] sm:$0xf] %v5003
          %5452 = vst [vmem:[%s233 + $0x214] sm:$0xf] %v5004
          %5453 = vst [vmem:[%s233 + $0x218] sm:$0xf] %v5005
          %5454 = vst [vmem:[%s233 + $0x21c] sm:$0xf] %v5006
          %5455 = vst [vmem:[%s233 + $0x220] sm:$0xf] %v5007
          %5456 = vst [vmem:[%s233 + $0x224] sm:$0xf] %v5008
          %5457 = vst [vmem:[%s233 + $0x228] sm:$0xf] %v5009
          %5458 = vst [vmem:[%s233 + $0x22c] sm:$0xf] %v5010
          %5459 = vst [vmem:[%s233 + $0x230] sm:$0xf] %v5011
          %5460 = vst [vmem:[%s233 + $0x234] sm:$0xf] %v5012
          %5461 = vst [vmem:[%s233 + $0x238] sm:$0xf] %v5013
          %5462 = vst [vmem:[%s233 + $0x23c] sm:$0xf] %v5014
          %5463 = vst [vmem:[%s233 + $0x240] sm:$0xf] %v5015
          %5464 = vst [vmem:[%s233 + $0x244] sm:$0xf] %v5016
          %5465 = vst [vmem:[%s233 + $0x248] sm:$0xf] %v5017
          %5466 = vst [vmem:[%s233 + $0x24c] sm:$0xf] %v5018
          %5467 = vst [vmem:[%s233 + $0x250] sm:$0xf] %v5019
          %5468 = vst [vmem:[%s233 + $0x254] sm:$0xf] %v5020
          %5469 = vst [vmem:[%s233 + $0x258] sm:$0xf] %v5021
          %5470 = vst [vmem:[%s233 + $0x25c] sm:$0xf] %v5022
          %5471 = vst [vmem:[%s233 + $0x260] sm:$0xf] %v5023
          %5472 = vst [vmem:[%s233 + $0x264] sm:$0xf] %v5024
          %5473 = vst [vmem:[%s233 + $0x268] sm:$0xf] %v5025
          %5474 = vst [vmem:[%s233 + $0x26c] sm:$0xf] %v5026
          %5475 = vst [vmem:[%s233 + $0x270] sm:$0xf] %v5027
          %5476 = vst [vmem:[%s233 + $0x274] sm:$0xf] %v5028
          %5477 = vst [vmem:[%s233 + $0x278] sm:$0xf] %v5029
          %5478 = vst [vmem:[%s233 + $0x27c] sm:$0xf] %v5030
          %5479 = vst [vmem:[%s233 + $0x280] sm:$0xf] %v5031
          %5480 = vst [vmem:[%s233 + $0x284] sm:$0xf] %v5032
          %5481 = vst [vmem:[%s233 + $0x288] sm:$0xf] %v5033
          %5482 = vst [vmem:[%s233 + $0x28c] sm:$0xf] %v5034
          %5483 = vst [vmem:[%s233 + $0x290] sm:$0xf] %v5035
          %5484 = vst [vmem:[%s233 + $0x294] sm:$0xf] %v5036
          %5485 = vst [vmem:[%s233 + $0x298] sm:$0xf] %v5037
          %5486 = vst [vmem:[%s233 + $0x29c] sm:$0xf] %v5038
          %5487 = vst [vmem:[%s233 + $0x2a0] sm:$0xf] %v5039
          %5488 = vst [vmem:[%s233 + $0x2a4] sm:$0xf] %v5040
          %5489 = vst [vmem:[%s233 + $0x2a8] sm:$0xf] %v5041
          %5490 = vst [vmem:[%s233 + $0x2ac] sm:$0xf] %v5042
          %5491 = vst [vmem:[%s233 + $0x2b0] sm:$0xf] %v5043
          %5492 = vst [vmem:[%s233 + $0x2b4] sm:$0xf] %v5044
          %5493 = vst [vmem:[%s233 + $0x2b8] sm:$0xf] %v5045
          %5494 = vst [vmem:[%s233 + $0x2bc] sm:$0xf] %v5046
          %5495 = vst [vmem:[%s233 + $0x2c0] sm:$0xf] %v5047
          %5496 = vst [vmem:[%s233 + $0x2c4] sm:$0xf] %v5048
          %5497 = vst [vmem:[%s233 + $0x2c8] sm:$0xf] %v5049
          %5498 = vst [vmem:[%s233 + $0x2cc] sm:$0xf] %v5050
          %5499 = vst [vmem:[%s233 + $0x2d0] sm:$0xf] %v5051
          %5500 = vst [vmem:[%s233 + $0x2d4] sm:$0xf] %v5052
          %5501 = vst [vmem:[%s233 + $0x2d8] sm:$0xf] %v5053
          %5502 = vst [vmem:[%s233 + $0x2dc] sm:$0xf] %v5054
          %5503 = vst [vmem:[%s233 + $0x2e0] sm:$0xf] %v5055
          %5504 = vst [vmem:[%s233 + $0x2e4] sm:$0xf] %v5056
          %5505 = vst [vmem:[%s233 + $0x2e8] sm:$0xf] %v5057
          %5506 = vst [vmem:[%s233 + $0x2ec] sm:$0xf] %v5058
          %5507 = vst [vmem:[%s233 + $0x2f0] sm:$0xf] %v5059
          %5508 = vst [vmem:[%s233 + $0x2f4] sm:$0xf] %v5060
          %5509 = vst [vmem:[%s233 + $0x2f8] sm:$0xf] %v5061
          %5510 = vst [vmem:[%s233 + $0x2fc] sm:$0xf] %v5062
          %5511 = vst [vmem:[%s233 + $0x300] sm:$0xf] %v5063
          %5512 = vst [vmem:[%s233 + $0x304] sm:$0xf] %v5064
          %5513 = vst [vmem:[%s233 + $0x308] sm:$0xf] %v5065
          %5514 = vst [vmem:[%s233 + $0x30c] sm:$0xf] %v5066
          %5515 = vst [vmem:[%s233 + $0x310] sm:$0xf] %v5067
          %5516 = vst [vmem:[%s233 + $0x314] sm:$0xf] %v5068
          %5517 = vst [vmem:[%s233 + $0x318] sm:$0xf] %v5069
          %5518 = vst [vmem:[%s233 + $0x31c] sm:$0xf] %v5070
          %5519 = vst [vmem:[%s233 + $0x320] sm:$0xf] %v5071
          %5520 = vst [vmem:[%s233 + $0x324] sm:$0xf] %v5072
          %5521 = vst [vmem:[%s233 + $0x328] sm:$0xf] %v5073
          %5522 = vst [vmem:[%s233 + $0x32c] sm:$0xf] %v5074
          %5523 = vst [vmem:[%s233 + $0x330] sm:$0xf] %v5075
          %5524 = vst [vmem:[%s233 + $0x334] sm:$0xf] %v5076
          %5525 = vst [vmem:[%s233 + $0x338] sm:$0xf] %v5077
          %5526 = vst [vmem:[%s233 + $0x33c] sm:$0xf] %v5078
          %5527 = vst [vmem:[%s233 + $0x340] sm:$0xf] %v5079
          %5528 = vst [vmem:[%s233 + $0x344] sm:$0xf] %v5080
          %5529 = vst [vmem:[%s233 + $0x348] sm:$0xf] %v5081
          %5530 = vst [vmem:[%s233 + $0x34c] sm:$0xf] %v5082
          %5531 = vst [vmem:[%s233 + $0x350] sm:$0xf] %v5083
          %5532 = vst [vmem:[%s233 + $0x354] sm:$0xf] %v5084
          %5533 = vst [vmem:[%s233 + $0x358] sm:$0xf] %v5085
          %5534 = vst [vmem:[%s233 + $0x35c] sm:$0xf] %v5086
          %5535 = vst [vmem:[%s233 + $0x360] sm:$0xf] %v5087
          %5536 = vst [vmem:[%s233 + $0x364] sm:$0xf] %v5088
          %5537 = vst [vmem:[%s233 + $0x368] sm:$0xf] %v5089
          %5538 = vst [vmem:[%s233 + $0x36c] sm:$0xf] %v5090
          %5539 = vst [vmem:[%s233 + $0x370] sm:$0xf] %v5091
          %5540 = vst [vmem:[%s233 + $0x374] sm:$0xf] %v5092
          %5541 = vst [vmem:[%s233 + $0x378] sm:$0xf] %v5093
          %5542 = vst [vmem:[%s233 + $0x37c] sm:$0xf] %v5094
        $region40: #{stem_conv_bn.1} parent=31 // pred_fallthru
          _
        %s5543 = sand.u32 %s128, 1
        %s5544 = scalar_lea.sflag [#allocation4], %s5543
        %s5545 = sand.u32 %s128, 1
        %s5546 = smul.addr %s5545, 896
        %s5547 = scalar_lea.vmem [#allocation3], %s5546
        // Predicated region
        $region41: #{stem_conv_bn.1} parent=31 // pred_check
          %p5548 = pneg %p138
        $region42: #{stem_conv_bn.1} parent=31 // pred_check_branch
          %5550 = sbr.rel (%p5548) target = $region44
        $region43: #{stem_conv_bn.1} parent=31 // pred_region
          %s5551 = smul.u32 224, %s22
          %s5553 = ssub.s32 14336, 14336
          %5554 = vsyncadd %s5544, %s5553
          %s5555 = sadd.s32 %s23, %s5551
          %s5556 = smul.addr %s5555, 64
          %s5557 = scalar_lea.hbm %s3, %s5556
          %s5558 = sshll.u32 %s5547, 4
          %s5559 = int_to_ptr.vmem [resolvable:$true] %s5558
          %5564 = dma.vmem_to_hbm [thread:$0]  %s5559, 14336, %s5557, %s5544, 64, 64, 4
        $region44: #{stem_conv_bn.1} parent=31 // pred_fallthru
          _
      $region32: #{stem_conv_bn.1} parent=5 // pred_fallthru
        _
      %p5565 = scmp.le.s32.totalorder 2, %s12
      // Predicated region
      $region45: #{stem_conv_bn.1} parent=5 // pred_check
        %p5566 = pneg %p5565
      $region46: #{stem_conv_bn.1} parent=5 // pred_check_branch
        %5568 = sbr.rel (%p5566) target = $region48
      $region47: #{stem_conv_bn.1} parent=5 // pred_region
        %s5569 = ssub.s32 %s12, 2
        // Predicated region
        $region49: #{stem_conv_bn.1} parent=47 // pred_check
          %p5570 = pneg %p144
        $region50: #{stem_conv_bn.1} parent=47 // pred_check_branch
          %5572 = sbr.rel (%p5570) target = $region52
        $region51: #{stem_conv_bn.1} parent=47 // pred_region
          %s5573 = sand.u32 %s129, 1
          %s5574 = scalar_lea.sflag [#allocation4], %s5573
          %s5575 = sand.u32 %s129, 1
          %s5576 = smul.addr %s5575, 896
          %s5577 = scalar_lea.vmem [#allocation3], %s5576
          %5578 = dma.done %s5574, 14336
        $region52: #{stem_conv_bn.1} parent=47 // pred_fallthru
          _
      $region48: #{stem_conv_bn.1} parent=5 // pred_fallthru
        _
    $region6: #{stem_conv_bn.1} parent=1 // loop_footer
      %s16 = sadd.s32 1, %s12
    $region7: #{stem_conv_bn.1} parent=1 // loop_footer_branch
      %11 = sbr.rel target = $region3
    $region8: #{stem_conv_bn.1} parent=1 // loop_exit
      _
    %5579 = vsyncpa [#allocation4], 1
    %s5580 = scalar_lea.sflag [#allocation4], 1
    %5581 = vsyncpa %s5580, 1

</llo_original>
